<compile_context>
chip_gen: v7x
topology: tpu7x:2x2x1
jax: 0.10.0
libtpu: 0.0.40
codegen_flags: <defaults>
</compile_context>

<pallas_src>
import functools

import jax
import jax.numpy as jnp
from jax.experimental import pallas as pl
from jax.experimental.pallas import tpu as pltpu


# ---------------------------------------------------------------------------
# Kernels
# ---------------------------------------------------------------------------
def _conv_bn_stats_kernel(x_main_ref, x_prev_ref, x_next_ref,
                          m_main_ref, m_prev_ref, m_next_ref,
                          w_ref, isc_ref, ish_ref,
                          y_ref, s1_ref, s2_ref,
                          slab_ref, stk_ref, *,
                          shifts, hb, tile, cin, fuse_input_act):
    """3x3 conv (single K=9*Cin MXU matmul) + partial BN stats for one tile.

    x_*_ref : (Cin, tile)/(Cin, hb) bf16  main tile / halo views of the flat
                                          zero-padded activation array.
    m_*_ref : (1, tile)/(1, hb)    bf16  validity mask (1 real px, 0 pad/tail).
    w_ref   : (Cout, 9*Cin)        bf16  folded tap weights, K-order (tap, ci).
    isc/ish : (Cin, 1)             f32   fused scale/shift of the PREVIOUS BN
                                         (used only when fuse_input_act=True).
    y_ref   : (Cout, tile)         bf16  raw conv output (zero at padding).
    s1/s2   : (1, Cout, 1)         f32   per-core partial sum / sum-of-squares.
    slab_ref: (Cin, tile+2*hb)     bf16  scratch: halo'd input window.
    stk_ref : (9*Cin, tile)        bf16  scratch: stacked MXU operand.
    """
    j = pl.program_id(1)

    @pl.when(j == 0)
    def _init():
        s1_ref[...] = jnp.zeros_like(s1_ref)
        s2_ref[...] = jnp.zeros_like(s2_ref)

    # Assemble the halo'd slab [prev-tail | main tile | next-head] in VMEM.
    slab_ref[:, 0:hb] = x_prev_ref[...]
    slab_ref[:, hb:hb + tile] = x_main_ref[...]
    slab_ref[:, hb + tile:hb + tile + hb] = x_next_ref[...]

    # Validity mask over the slab (multiplicative 0/1, f32).
    mskf = jnp.concatenate(
        [m_prev_ref[...], m_main_ref[...], m_next_ref[...]],
        axis=1).astype(jnp.float32)                       # (1, tile + 2*hb)

    if fuse_input_act:
        # Fuse the previous layer's BN+ReLU into the load path: the slab holds
        # the RAW previous conv output; normalize, ReLU, then re-zero padding.
        v = slab_ref[...].astype(jnp.float32)
        v = jnp.maximum(v * isc_ref[...] + ish_ref[...], 0.0) * mskf
        slab_ref[...] = v.astype(slab_ref.dtype)

    # Stack the 9 shifted views -> (9*Cin, tile): a single deep MXU matmul
    # instead of 9 shallow accumulated ones.
    for k, s in enumerate(shifts):
        stk_ref[k * cin:(k + 1) * cin, :] = slab_ref[:, hb + s:hb + s + tile]

    y = jnp.dot(w_ref[...], stk_ref[...], preferred_element_type=jnp.float32)
    mt = mskf[:, hb:hb + tile]                            # (1, tile)
    y = y * mt                                            # zero pad / tail
    y_ref[...] = y.astype(y_ref.dtype)

    # Per-channel, per-core partial batch statistics (pads contribute 0).
    s1_ref[...] += jnp.sum(y, axis=1, keepdims=True)[None]
    s2_ref[...] += jnp.sum(y * y, axis=1, keepdims=True)[None]


def _bn_relu_kernel(y_ref, sc_ref, sh_ref, o_ref):
    """Final BN+ReLU apply: o = relu(y * scale + shift), emitted in bf16."""
    y = y_ref[...].astype(jnp.float32)
    o_ref[...] = jnp.maximum(y * sc_ref[...] + sh_ref[...], 0.0).astype(o_ref.dtype)


# ---------------------------------------------------------------------------
# Sizing helpers (generation-aware)
# ---------------------------------------------------------------------------
def _vmem_capacity():
    try:
        cap = getattr(pltpu.get_tpu_info(), "vmem_capacity_bytes", None)
        if cap:
            return int(cap)
    except Exception:
        pass
    return 64 * 1024 * 1024   # conservative fallback (v7x physical)


def _pick_tile(mp_total, cmax, cout, hb, budget):
    """Largest power-of-two pixel tile whose per-step VMEM footprint (inputs,
    weights, scratch and f32 temporaries, double-buffered) fits the budget."""
    def need(t):
        slab = t + 2 * hb
        return (4 * cmax * t              # main input block, bf16 x2 buffers
                + 8 * cmax * hb           # halo input blocks
                + 4 * t + 8 * hb          # mask blocks (bf16)
                + 4 * cout * t            # conv output block, bf16 x2 buffers
                + 4 * 9 * cout * cmax     # folded tap weights
                + 2 * cmax * slab         # slab scratch (bf16)
                + 18 * cmax * t           # stacked MXU operand (bf16)
                + 4 * cmax * slab         # f32 fused-activation temporary
                + 8 * cout * t)           # f32 matmul result / masked copy

    cap = max(512, min(8192, pl.next_power_of_2(max(1, mp_total // 2))))
    tile = 512
    while tile * 2 <= cap and need(tile * 2) <= budget:
        tile *= 2
    return tile


# ---------------------------------------------------------------------------
# Wrappers
# ---------------------------------------------------------------------------
def _conv_bn_stats(x_arr, m_arr, w, in_scale, in_shift, *,
                   tile, hb, wp, total_tiles, vmem_limit, fuse_input_act):
    cout, cin = w.shape[0], w.shape[1]
    lpad = total_tiles * tile
    slab_len = tile + 2 * hb
    t2 = total_tiles // 2
    r = tile // hb
    nhb = total_tiles * r

    shifts = tuple((dy - 1) * wp + (dx - 1) for dy in range(3) for dx in range(3))
    # K-order (tap, cin) matches the in-kernel stacking order.
    w2d = jnp.transpose(w, (0, 2, 3, 1)).reshape(cout, 9 * cin).astype(jnp.bfloat16)

    kernel = functools.partial(
        _conv_bn_stats_kernel, shifts=shifts, hb=hb, tile=tile, cin=cin,
        fuse_input_act=fuse_input_act)

    def tidx(c, j):
        return c * t2 + j

    grid_spec = pltpu.PrefetchScalarGridSpec(
        num_scalar_prefetch=0,
        grid=(2, t2),
        in_specs=[
            # activation: main tile + 128-aligned prev-tail / next-head halos
            pl.BlockSpec((cin, tile), lambda c, j: (0, tidx(c, j))),
            pl.BlockSpec((cin, hb),
                         lambda c, j: (0, jnp.maximum(tidx(c, j) * r - 1, 0))),
            pl.BlockSpec((cin, hb),
                         lambda c, j: (0, jnp.minimum((tidx(c, j) + 1) * r, nhb - 1))),
            # validity mask, windowed identically
            pl.BlockSpec((1, tile), lambda c, j: (0, tidx(c, j))),
            pl.BlockSpec((1, hb),
                         lambda c, j: (0, jnp.maximum(tidx(c, j) * r - 1, 0))),
            pl.BlockSpec((1, hb),
                         lambda c, j: (0, jnp.minimum((tidx(c, j) + 1) * r, nhb - 1))),
            pl.BlockSpec((cout, 9 * cin), lambda c, j: (0, 0)),   # tap weights
            pl.BlockSpec((cin, 1), lambda c, j: (0, 0)),          # fused scale
            pl.BlockSpec((cin, 1), lambda c, j: (0, 0)),          # fused shift
        ],
        out_specs=(
            pl.BlockSpec((cout, tile), lambda c, j: (0, tidx(c, j))),
            pl.BlockSpec((1, cout, 1), lambda c, j: (c, 0, 0)),   # partial sum
            pl.BlockSpec((1, cout, 1), lambda c, j: (c, 0, 0)),   # partial sumsq
        ),
        scratch_shapes=[
            pltpu.VMEM((cin, slab_len), jnp.bfloat16),
            pltpu.VMEM((9 * cin, tile), jnp.bfloat16),
        ],
    )

    flops = 2 * cout * 9 * cin * lpad
    bytes_accessed = (cin + cout) * lpad * 2 + lpad * 2 + 9 * cout * cin * 2

    y, s1, s2 = pl.pallas_call(
        kernel,
        out_shape=(
            jax.ShapeDtypeStruct((cout, lpad), jnp.bfloat16),
            jax.ShapeDtypeStruct((2, cout, 1), jnp.float32),
            jax.ShapeDtypeStruct((2, cout, 1), jnp.float32),
        ),
        grid_spec=grid_spec,
        compiler_params=pltpu.CompilerParams(
            # BN-stat accumulation runs along the inner axis; the outer axis
            # is parallel so v7x can shard it across both TensorCores.
            dimension_semantics=("parallel", "arbitrary"),
            vmem_limit_bytes=vmem_limit,
        ),
        cost_estimate=pl.CostEstimate(
            flops=flops, transcendentals=0, bytes_accessed=bytes_accessed),
    )(x_arr, x_arr, x_arr, m_arr, m_arr, m_arr, w2d,
      in_scale.reshape(cin, 1).astype(jnp.float32),
      in_shift.reshape(cin, 1).astype(jnp.float32))
    return y, s1, s2


def _bn_affine(s1, s2, gamma, beta, count, eps):
    """Combine per-core partial sums into BN scale/shift (tiny XLA ops)."""
    s1 = jnp.sum(s1, axis=0)[:, 0]
    s2 = jnp.sum(s2, axis=0)[:, 0]
    mean = s1 / count
    var = jnp.maximum(s2 / count - mean * mean, 0.0)
    inv_std = jax.lax.rsqrt(var + eps)
    scale = gamma.astype(jnp.float32) * inv_std
    shift = beta.astype(jnp.float32) - mean * scale
    return scale, shift


def _bn_relu_apply(y, scale, shift, *, tile, t_data, vmem_limit):
    cout = y.shape[0]
    return pl.pallas_call(
        _bn_relu_kernel,
        out_shape=jax.ShapeDtypeStruct((cout, t_data * tile), jnp.bfloat16),
        grid_spec=pltpu.PrefetchScalarGridSpec(
            num_scalar_prefetch=0,
            grid=(t_data,),
            in_specs=[
                pl.BlockSpec((cout, tile), lambda t: (0, t + 1)),
                pl.BlockSpec((cout, 1), lambda t: (0, 0)),
                pl.BlockSpec((cout, 1), lambda t: (0, 0)),
            ],
            out_specs=pl.BlockSpec((cout, tile), lambda t: (0, t)),
        ),
        compiler_params=pltpu.CompilerParams(
            dimension_semantics=("parallel",),
            vmem_limit_bytes=vmem_limit,
        ),
    )(y, scale.reshape(cout, 1), shift.reshape(cout, 1))


def double_conv(x, params, eps=1e-5):
    """Forward pass of DoubleConv: (conv3x3 -> BN(train stats) -> ReLU) x 2."""
    n, cin, h, w = x.shape
    cout = params["w1"].shape[0]
    hp, wp = h + 2, w + 2
    mp = n * hp * wp
    count = float(n * h * w)

    halo = wp + 1
    hb = max(128, pl.next_power_of_2(halo))
    vmem_cap = _vmem_capacity()
    vmem_limit = min(int(vmem_cap * 0.85), 100 * 1024 * 1024)
    tile = _pick_tile(mp, max(cin, cout), cout, hb, vmem_limit // 2)
    tile = max(tile, hb)

    t_data = pl.cdiv(mp, tile)                 # tiles that hold real pixels
    total_tiles = t_data + 2                   # + one zero tile on each end
    total_tiles += total_tiles % 2             # even, for the 2-core split
    lpad = total_tiles * tile

    # Channels-major, spatially zero-padded, flattened layout; data at
    # columns [tile, tile+mp) so every halo window has a defined zero source.
    xpad = jnp.pad(x, ((0, 0), (0, 0), (1, 1), (1, 1)))
    xflat = jnp.transpose(xpad, (1, 0, 2, 3)).reshape(cin, mp)
    x_arr = jnp.pad(xflat, ((0, 0), (tile, lpad - tile - mp))).astype(jnp.bfloat16)

    valid = jnp.zeros((n, hp, wp), jnp.float32).at[:, 1:h + 1, 1:w + 1].set(1.0)
    m_arr = jnp.pad(valid.reshape(1, mp),
                    ((0, 0), (tile, lpad - tile - mp))).astype(jnp.bfloat16)

    common = dict(tile=tile, hb=hb, wp=wp, total_tiles=total_tiles,
                  vmem_limit=vmem_limit)

    # ---- conv1 (+ BN1 partial statistics) ---------------------------------
    one_in = jnp.ones((cin,), jnp.float32)
    zero_in = jnp.zeros((cin,), jnp.float32)
    y1, a1, q1 = _conv_bn_stats(x_arr, m_arr, params["w1"], one_in, zero_in,
                                fuse_input_act=False, **common)
    scale1, shift1 = _bn_affine(a1, q1, params["g1"], params["be1"], count, eps)

    # ---- conv2 (BN1+ReLU fused into its load path, + BN2 statistics) ------
    y2, a2, q2 = _conv_bn_stats(y1, m_arr, params["w2"], scale1, shift1,
                                fuse_input_act=True, **common)
    scale2, shift2 = _bn_affine(a2, q2, params["g2"], params["be2"], count, eps)

    # ---- final BN2 + ReLU over the data tiles only (bf16, lane-dense) -----
    out2d = _bn_relu_apply(y2, scale2, shift2, tile=tile, t_data=t_data,
                           vmem_limit=vmem_limit)

    # TODO(synk): the crop / NCHW transpose / f32 upcast stays in XLA; an
    # in-kernel crop would not be lane-dense at small W.
    out = out2d[:, :mp].reshape(cout, n, hp, wp)[:, :, 1:h + 1, 1:w + 1]
    return jnp.transpose(out, (1, 0, 2, 3)).astype(jnp.float32)


def init_params(key, in_plane, out_plane):
    k1, k2, k3, k4 = jax.random.split(key, 4)
    # b1/b2 kept for interface parity with the PyTorch module; they are
    # mathematically cancelled by train-mode BatchNorm and therefore unused.
    return {
        "w1": jax.random.normal(k1, (out_plane, in_plane, 3, 3), jnp.float32) * 0.1,
        "b1": jax.random.normal(k2, (out_plane,), jnp.float32) * 0.01,
        "g1": jnp.ones((out_plane,), jnp.float32),
        "be1": jnp.zeros((out_plane,), jnp.float32),
        "w2": jax.random.normal(k3, (out_plane, out_plane, 3, 3), jnp.float32) * 0.1,
        "b2": jax.random.normal(k4, (out_plane,), jnp.float32) * 0.01,
        "g2": jnp.ones((out_plane,), jnp.float32),
        "be2": jnp.zeros((out_plane,), jnp.float32),
    }


def _reference(x, params, eps=1e-5):
    """Pure-JAX (f32) reference with PyTorch train-mode BN semantics."""
    def block(z, w, g, b):
        y = jax.lax.conv_general_dilated(
            z, w, window_strides=(1, 1), padding=((1, 1), (1, 1)),
            dimension_numbers=("NCHW", "OIHW", "NCHW"))
        mean = jnp.mean(y, axis=(0, 2, 3), keepdims=True)
        var = jnp.mean((y - mean) ** 2, axis=(0, 2, 3), keepdims=True)
        yhat = (y - mean) * jax.lax.rsqrt(var + eps)
        return jnp.maximum(yhat * g.reshape(1, -1, 1, 1) + b.reshape(1, -1, 1, 1), 0.0)

    y = block(x, params["w1"], params["g1"], params["be1"])
    return block(y, params["w2"], params["g2"], params["be2"])


if __name__ == "__main__":
    key = jax.random.PRNGKey(0)
    kx, kp = jax.random.split(key)

    N, Cin, Cout, H, W = 2, 4, 8, 16, 16
    x = jax.random.normal(kx, (N, Cin, H, W), jnp.float32)
    params = init_params(kp, Cin, Cout)

    out = jax.jit(double_conv)(x, params)
    jax.block_until_ready(out)
    assert out.shape == (N, Cout, H, W)

    ref = _reference(x, params)
    err = float(jnp.max(jnp.abs(out - ref)))
    assert err < 1e-1, f"max abs error vs reference: {err}"
    print("KERNEL_OK")
</pallas_src>

<mosaic_0001>
module attributes {stable_mosaic.version = 11 : i64} {
  func.func @_conv_bn_stats_kernel(%arg0: i32, %arg1: i32, %arg2: memref<4x512xbf16, #tpu.memory_space<vmem>>, %arg3: memref<4x128xbf16, #tpu.memory_space<vmem>>, %arg4: memref<4x128xbf16, #tpu.memory_space<vmem>>, %arg5: memref<1x512xbf16, #tpu.memory_space<vmem>>, %arg6: memref<1x128xbf16, #tpu.memory_space<vmem>>, %arg7: memref<1x128xbf16, #tpu.memory_space<vmem>>, %arg8: memref<8x36xbf16, #tpu.memory_space<vmem>>, %arg9: memref<4x1xf32, #tpu.memory_space<vmem>>, %arg10: memref<4x1xf32, #tpu.memory_space<vmem>>, %arg11: memref<8x512xbf16, #tpu.memory_space<vmem>>, %arg12: memref<1x8x1xf32, #tpu.memory_space<vmem>>, %arg13: memref<1x8x1xf32, #tpu.memory_space<vmem>>, %arg14: memref<4x768xbf16, #tpu.memory_space<vmem>>, %arg15: memref<36x512xbf16, #tpu.memory_space<vmem>>) attributes {dimension_semantics = [#tpu.dimension_semantics<parallel>, #tpu.dimension_semantics<arbitrary>], iteration_bounds = array<i64: 2, 2>, scalar_prefetch = 0 : i64, scratch_operands = 2 : i64, tpu.core_type = #tpu.core_type<tc>, window_params = [{transform_indices = @transform_0, window_bounds = array<i64: 4, 512>}, {transform_indices = @transform_1, window_bounds = array<i64: 4, 128>}, {transform_indices = @transform_2, window_bounds = array<i64: 4, 128>}, {transform_indices = @transform_3, window_bounds = array<i64: 1, 512>}, {transform_indices = @transform_4, window_bounds = array<i64: 1, 128>}, {transform_indices = @transform_5, window_bounds = array<i64: 1, 128>}, {pipeline_mode = #tpu.pipeline_mode<synchronous>, transform_indices = @transform_6, window_bounds = array<i64: 8, 36>}, {pipeline_mode = #tpu.pipeline_mode<synchronous>, transform_indices = @transform_7, window_bounds = array<i64: 4, 1>}, {pipeline_mode = #tpu.pipeline_mode<synchronous>, transform_indices = @transform_8, window_bounds = array<i64: 4, 1>}, {transform_indices = @transform_9, window_bounds = array<i64: 8, 512>}, {transform_indices = @transform_10, window_bounds = array<i64: 1, 8, 1>}, {transform_indices = @transform_11, window_bounds = array<i64: 1, 8, 1>}]} {
    %c0_i32 = arith.constant 0 : i32
    %0 = arith.cmpi eq, %arg1, %c0_i32 : i32
    %1 = arith.extui %0 : i1 to i32
    %c0_i32_0 = arith.constant 0 : i32
    %2 = arith.cmpi ne, %1, %c0_i32_0 : i32
    scf.if %2 {
      %cst_56 = arith.constant 0.000000e+00 : f32
      %53 = vector.broadcast %cst_56 : f32 to vector<1x8x1xf32>
      %c0_57 = arith.constant 0 : index
      %c0_58 = arith.constant 0 : index
      %c0_59 = arith.constant 0 : index
      %54 = vector.load %arg12[%c0_57, %c0_58, %c0_59] : memref<1x8x1xf32, #tpu.memory_space<vmem>>, vector<1x8x1xf32>
      tpu.vector_store %arg12[%c0_57, %c0_58, %c0_59], %53 {strides = array<i32>} : memref<1x8x1xf32, #tpu.memory_space<vmem>>, vector<1x8x1xf32>,
      %cst_60 = arith.constant 0.000000e+00 : f32
      %55 = vector.broadcast %cst_60 : f32 to vector<1x8x1xf32>
      %c0_61 = arith.constant 0 : index
      %c0_62 = arith.constant 0 : index
      %c0_63 = arith.constant 0 : index
      %56 = vector.load %arg13[%c0_61, %c0_62, %c0_63] : memref<1x8x1xf32, #tpu.memory_space<vmem>>, vector<1x8x1xf32>
      tpu.vector_store %arg13[%c0_61, %c0_62, %c0_63], %55 {strides = array<i32>} : memref<1x8x1xf32, #tpu.memory_space<vmem>>, vector<1x8x1xf32>,
    } else {
    }
    %c0 = arith.constant 0 : index
    %c0_1 = arith.constant 0 : index
    %3 = vector.load %arg3[%c0, %c0_1] : memref<4x128xbf16, #tpu.memory_space<vmem>>, vector<4x128xbf16>
    %c0_2 = arith.constant 0 : index
    %c0_3 = arith.constant 0 : index
    %4 = vector.load %arg14[%c0_2, %c0_3] : memref<4x768xbf16, #tpu.memory_space<vmem>>, vector<4x128xbf16>
    tpu.vector_store %arg14[%c0_2, %c0_3], %3 {strides = array<i32>} : memref<4x768xbf16, #tpu.memory_space<vmem>>, vector<4x128xbf16>,
    %c0_4 = arith.constant 0 : index
    %c0_5 = arith.constant 0 : index
    %5 = vector.load %arg2[%c0_4, %c0_5] : memref<4x512xbf16, #tpu.memory_space<vmem>>, vector<4x512xbf16>
    %c0_6 = arith.constant 0 : index
    %c128 = arith.constant 128 : index
    %6 = vector.load %arg14[%c0_6, %c128] : memref<4x768xbf16, #tpu.memory_space<vmem>>, vector<4x512xbf16>
    tpu.vector_store %arg14[%c0_6, %c128], %5 {strides = array<i32>} : memref<4x768xbf16, #tpu.memory_space<vmem>>, vector<4x512xbf16>,
    %c0_7 = arith.constant 0 : index
    %c0_8 = arith.constant 0 : index
    %7 = vector.load %arg4[%c0_7, %c0_8] : memref<4x128xbf16, #tpu.memory_space<vmem>>, vector<4x128xbf16>
    %c0_9 = arith.constant 0 : index
    %c640 = arith.constant 640 : index
    %8 = vector.load %arg14[%c0_9, %c640] : memref<4x768xbf16, #tpu.memory_space<vmem>>, vector<4x128xbf16>
    tpu.vector_store %arg14[%c0_9, %c640], %7 {strides = array<i32>} : memref<4x768xbf16, #tpu.memory_space<vmem>>, vector<4x128xbf16>,
    %c0_10 = arith.constant 0 : index
    %c0_11 = arith.constant 0 : index
    %9 = vector.load %arg6[%c0_10, %c0_11] : memref<1x128xbf16, #tpu.memory_space<vmem>>, vector<1x128xbf16>
    %c0_12 = arith.constant 0 : index
    %c0_13 = arith.constant 0 : index
    %10 = vector.load %arg5[%c0_12, %c0_13] : memref<1x512xbf16, #tpu.memory_space<vmem>>, vector<1x512xbf16>
    %c0_14 = arith.constant 0 : index
    %c0_15 = arith.constant 0 : index
    %11 = vector.load %arg7[%c0_14, %c0_15] : memref<1x128xbf16, #tpu.memory_space<vmem>>, vector<1x128xbf16>
    %12 = tpu.concatenate %9, %10, %11 in 1 : vector<1x128xbf16>, vector<1x512xbf16>, vector<1x128xbf16> -> vector<1x768xbf16>
    %13 = arith.extf %12 : vector<1x768xbf16> to vector<1x768xf32>
    %c0_16 = arith.constant 0 : index
    %c109 = arith.constant 109 : index
    %14 = vector.load %arg14[%c0_16, %c109] : memref<4x768xbf16, #tpu.memory_space<vmem>>, vector<4x512xbf16>
    %c0_17 = arith.constant 0 : index
    %c0_18 = arith.constant 0 : index
    %15 = vector.load %arg15[%c0_17, %c0_18] : memref<36x512xbf16, #tpu.memory_space<vmem>>, vector<4x512xbf16>
    tpu.vector_store %arg15[%c0_17, %c0_18], %14 {strides = array<i32>} : memref<36x512xbf16, #tpu.memory_space<vmem>>, vector<4x512xbf16>,
    %c0_19 = arith.constant 0 : index
    %c110 = arith.constant 110 : index
    %16 = vector.load %arg14[%c0_19, %c110] : memref<4x768xbf16, #tpu.memory_space<vmem>>, vector<4x512xbf16>
    %c4 = arith.constant 4 : index
    %c0_20 = arith.constant 0 : index
    %17 = vector.load %arg15[%c4, %c0_20] : memref<36x512xbf16, #tpu.memory_space<vmem>>, vector<4x512xbf16>
    tpu.vector_store %arg15[%c4, %c0_20], %16 {strides = array<i32>} : memref<36x512xbf16, #tpu.memory_space<vmem>>, vector<4x512xbf16>,
    %c0_21 = arith.constant 0 : index
    %c111 = arith.constant 111 : index
    %18 = vector.load %arg14[%c0_21, %c111] : memref<4x768xbf16, #tpu.memory_space<vmem>>, vector<4x512xbf16>
    %c8 = arith.constant 8 : index
    %c0_22 = arith.constant 0 : index
    %19 = vector.load %arg15[%c8, %c0_22] : memref<36x512xbf16, #tpu.memory_space<vmem>>, vector<4x512xbf16>
    tpu.vector_store %arg15[%c8, %c0_22], %18 {strides = array<i32>} : memref<36x512xbf16, #tpu.memory_space<vmem>>, vector<4x512xbf16>,
    %c0_23 = arith.constant 0 : index
    %c127 = arith.constant 127 : index
    %20 = vector.load %arg14[%c0_23, %c127] : memref<4x768xbf16, #tpu.memory_space<vmem>>, vector<4x512xbf16>
    %c12 = arith.constant 12 : index
    %c0_24 = arith.constant 0 : index
    %21 = vector.load %arg15[%c12, %c0_24] : memref<36x512xbf16, #tpu.memory_space<vmem>>, vector<4x512xbf16>
    tpu.vector_store %arg15[%c12, %c0_24], %20 {strides = array<i32>} : memref<36x512xbf16, #tpu.memory_space<vmem>>, vector<4x512xbf16>,
    %c0_25 = arith.constant 0 : index
    %c128_26 = arith.constant 128 : index
    %22 = vector.load %arg14[%c0_25, %c128_26] : memref<4x768xbf16, #tpu.memory_space<vmem>>, vector<4x512xbf16>
    %c16 = arith.constant 16 : index
    %c0_27 = arith.constant 0 : index
    %23 = vector.load %arg15[%c16, %c0_27] : memref<36x512xbf16, #tpu.memory_space<vmem>>, vector<4x512xbf16>
    tpu.vector_store %arg15[%c16, %c0_27], %22 {strides = array<i32>} : memref<36x512xbf16, #tpu.memory_space<vmem>>, vector<4x512xbf16>,
    %c0_28 = arith.constant 0 : index
    %c129 = arith.constant 129 : index
    %24 = vector.load %arg14[%c0_28, %c129] : memref<4x768xbf16, #tpu.memory_space<vmem>>, vector<4x512xbf16>
    %c20 = arith.constant 20 : index
    %c0_29 = arith.constant 0 : index
    %25 = vector.load %arg15[%c20, %c0_29] : memref<36x512xbf16, #tpu.memory_space<vmem>>, vector<4x512xbf16>
    tpu.vector_store %arg15[%c20, %c0_29], %24 {strides = array<i32>} : memref<36x512xbf16, #tpu.memory_space<vmem>>, vector<4x512xbf16>,
    %c0_30 = arith.constant 0 : index
    %c145 = arith.constant 145 : index
    %26 = vector.load %arg14[%c0_30, %c145] : memref<4x768xbf16, #tpu.memory_space<vmem>>, vector<4x512xbf16>
    %c24 = arith.constant 24 : index
    %c0_31 = arith.constant 0 : index
    %27 = vector.load %arg15[%c24, %c0_31] : memref<36x512xbf16, #tpu.memory_space<vmem>>, vector<4x512xbf16>
    tpu.vector_store %arg15[%c24, %c0_31], %26 {strides = array<i32>} : memref<36x512xbf16, #tpu.memory_space<vmem>>, vector<4x512xbf16>,
    %c0_32 = arith.constant 0 : index
    %c146 = arith.constant 146 : index
    %28 = vector.load %arg14[%c0_32, %c146] : memref<4x768xbf16, #tpu.memory_space<vmem>>, vector<4x512xbf16>
    %c28 = arith.constant 28 : index
    %c0_33 = arith.constant 0 : index
    %29 = vector.load %arg15[%c28, %c0_33] : memref<36x512xbf16, #tpu.memory_space<vmem>>, vector<4x512xbf16>
    tpu.vector_store %arg15[%c28, %c0_33], %28 {strides = array<i32>} : memref<36x512xbf16, #tpu.memory_space<vmem>>, vector<4x512xbf16>,
    %c0_34 = arith.constant 0 : index
    %c147 = arith.constant 147 : index
    %30 = vector.load %arg14[%c0_34, %c147] : memref<4x768xbf16, #tpu.memory_space<vmem>>, vector<4x512xbf16>
    %c32 = arith.constant 32 : index
    %c0_35 = arith.constant 0 : index
    %31 = vector.load %arg15[%c32, %c0_35] : memref<36x512xbf16, #tpu.memory_space<vmem>>, vector<4x512xbf16>
    tpu.vector_store %arg15[%c32, %c0_35], %30 {strides = array<i32>} : memref<36x512xbf16, #tpu.memory_space<vmem>>, vector<4x512xbf16>,
    %c0_36 = arith.constant 0 : index
    %c0_37 = arith.constant 0 : index
    %32 = vector.load %arg8[%c0_36, %c0_37] : memref<8x36xbf16, #tpu.memory_space<vmem>>, vector<8x36xbf16>
    %c0_38 = arith.constant 0 : index
    %c0_39 = arith.constant 0 : index
    %33 = vector.load %arg15[%c0_38, %c0_39] : memref<36x512xbf16, #tpu.memory_space<vmem>>, vector<36x512xbf16>
    %cst = arith.constant dense<0.000000e+00> : vector<8x512xf32>
    %34 = tpu.matmul %32, %33, %cst {dimension_numbers = #tpu.dot_dimension_numbers<[1], [0], [0], [1], [0, 0, 1, 1], [], []>} : vector<8x36xbf16>, vector<36x512xbf16>, vector<8x512xf32> -> vector<8x512xf32>
    %35 = vector.extract_strided_slice %13 {offsets = [0, 128], sizes = [1, 512], strides = [1, 1]} : vector<1x768xf32> to vector<1x512xf32>
    %36 = vector.broadcast %35 : vector<1x512xf32> to vector<8x512xf32>
    %37 = arith.mulf %34, %36 : vector<8x512xf32>
    %38 = arith.truncf %37 : vector<8x512xf32> to vector<8x512xbf16>
    %c0_40 = arith.constant 0 : index
    %c0_41 = arith.constant 0 : index
    %39 = vector.load %arg11[%c0_40, %c0_41] : memref<8x512xbf16, #tpu.memory_space<vmem>>, vector<8x512xbf16>
    tpu.vector_store %arg11[%c0_40, %c0_41], %38 {strides = array<i32>} : memref<8x512xbf16, #tpu.memory_space<vmem>>, vector<8x512xbf16>,
    %c0_42 = arith.constant 0 : index
    %c0_43 = arith.constant 0 : index
    %c0_44 = arith.constant 0 : index
    %40 = vector.load %arg12[%c0_42, %c0_43, %c0_44] : memref<1x8x1xf32, #tpu.memory_space<vmem>>, vector<1x8x1xf32>
    %cst_45 = arith.constant dense<0.000000e+00> : vector<8xf32>
    %41 = vector.multi_reduction <add>, %37, %cst_45 [1] : vector<8x512xf32> to vector<8xf32>
    %42 = vector.shape_cast %41 : vector<8xf32> to vector<8x1xf32>
    %43 = vector.shape_cast %42 : vector<8x1xf32> to vector<1x8x1xf32>
    %44 = arith.addf %40, %43 : vector<1x8x1xf32>
    %c0_46 = arith.constant 0 : index
    %c0_47 = arith.constant 0 : index
    %c0_48 = arith.constant 0 : index
    %45 = vector.load %arg12[%c0_46, %c0_47, %c0_48] : memref<1x8x1xf32, #tpu.memory_space<vmem>>, vector<1x8x1xf32>
    tpu.vector_store %arg12[%c0_46, %c0_47, %c0_48], %44 {strides = array<i32>} : memref<1x8x1xf32, #tpu.memory_space<vmem>>, vector<1x8x1xf32>,
    %c0_49 = arith.constant 0 : index
    %c0_50 = arith.constant 0 : index
    %c0_51 = arith.constant 0 : index
    %46 = vector.load %arg13[%c0_49, %c0_50, %c0_51] : memref<1x8x1xf32, #tpu.memory_space<vmem>>, vector<1x8x1xf32>
    %47 = arith.mulf %37, %37 : vector<8x512xf32>
    %cst_52 = arith.constant dense<0.000000e+00> : vector<8xf32>
    %48 = vector.multi_reduction <add>, %47, %cst_52 [1] : vector<8x512xf32> to vector<8xf32>
    %49 = vector.shape_cast %48 : vector<8xf32> to vector<8x1xf32>
    %50 = vector.shape_cast %49 : vector<8x1xf32> to vector<1x8x1xf32>
    %51 = arith.addf %46, %50 : vector<1x8x1xf32>
    %c0_53 = arith.constant 0 : index
    %c0_54 = arith.constant 0 : index
    %c0_55 = arith.constant 0 : index
    %52 = vector.load %arg13[%c0_53, %c0_54, %c0_55] : memref<1x8x1xf32, #tpu.memory_space<vmem>>, vector<1x8x1xf32>
    tpu.vector_store %arg13[%c0_53, %c0_54, %c0_55], %51 {strides = array<i32>} : memref<1x8x1xf32, #tpu.memory_space<vmem>>, vector<1x8x1xf32>,
    return
  }
  func.func @transform_0(%arg0: i32, %arg1: i32) -> (i32, i32) {
    %c2_i32 = arith.constant 2 : i32
    %0 = arith.muli %arg0, %c2_i32 : i32
    %1 = arith.addi %0, %arg1 : i32
    %c0_i32 = arith.constant 0 : i32
    %c0_i32_0 = arith.constant 0 : i32
    return %c0_i32, %1 : i32, i32
  }
  func.func @transform_1(%arg0: i32, %arg1: i32) -> (i32, i32) {
    %c2_i32 = arith.constant 2 : i32
    %0 = arith.muli %arg0, %c2_i32 : i32
    %1 = arith.addi %0, %arg1 : i32
    %c4_i32 = arith.constant 4 : i32
    %2 = arith.muli %1, %c4_i32 : i32
    %c1_i32 = arith.constant 1 : i32
    %3 = arith.subi %2, %c1_i32 : i32
    %c0_i32 = arith.constant 0 : i32
    %4 = arith.maxsi %3, %c0_i32 : i32
    %c0_i32_0 = arith.constant 0 : i32
    %c0_i32_1 = arith.constant 0 : i32
    return %c0_i32_0, %4 : i32, i32
  }
  func.func @transform_2(%arg0: i32, %arg1: i32) -> (i32, i32) {
    %c2_i32 = arith.constant 2 : i32
    %0 = arith.muli %arg0, %c2_i32 : i32
    %1 = arith.addi %0, %arg1 : i32
    %c1_i32 = arith.constant 1 : i32
    %2 = arith.addi %1, %c1_i32 : i32
    %c4_i32 = arith.constant 4 : i32
    %3 = arith.muli %2, %c4_i32 : i32
    %c15_i32 = arith.constant 15 : i32
    %4 = arith.minsi %3, %c15_i32 : i32
    %c0_i32 = arith.constant 0 : i32
    %c0_i32_0 = arith.constant 0 : i32
    return %c0_i32, %4 : i32, i32
  }
  func.func @transform_3(%arg0: i32, %arg1: i32) -> (i32, i32) {
    %c2_i32 = arith.constant 2 : i32
    %0 = arith.muli %arg0, %c2_i32 : i32
    %1 = arith.addi %0, %arg1 : i32
    %c0_i32 = arith.constant 0 : i32
    %c0_i32_0 = arith.constant 0 : i32
    return %c0_i32, %1 : i32, i32
  }
  func.func @transform_4(%arg0: i32, %arg1: i32) -> (i32, i32) {
    %c2_i32 = arith.constant 2 : i32
    %0 = arith.muli %arg0, %c2_i32 : i32
    %1 = arith.addi %0, %arg1 : i32
    %c4_i32 = arith.constant 4 : i32
    %2 = arith.muli %1, %c4_i32 : i32
    %c1_i32 = arith.constant 1 : i32
    %3 = arith.subi %2, %c1_i32 : i32
    %c0_i32 = arith.constant 0 : i32
    %4 = arith.maxsi %3, %c0_i32 : i32
    %c0_i32_0 = arith.constant 0 : i32
    %c0_i32_1 = arith.constant 0 : i32
    return %c0_i32_0, %4 : i32, i32
  }
  func.func @transform_5(%arg0: i32, %arg1: i32) -> (i32, i32) {
    %c2_i32 = arith.constant 2 : i32
    %0 = arith.muli %arg0, %c2_i32 : i32
    %1 = arith.addi %0, %arg1 : i32
    %c1_i32 = arith.constant 1 : i32
    %2 = arith.addi %1, %c1_i32 : i32
    %c4_i32 = arith.constant 4 : i32
    %3 = arith.muli %2, %c4_i32 : i32
    %c15_i32 = arith.constant 15 : i32
    %4 = arith.minsi %3, %c15_i32 : i32
    %c0_i32 = arith.constant 0 : i32
    %c0_i32_0 = arith.constant 0 : i32
    return %c0_i32, %4 : i32, i32
  }
  func.func @transform_6(%arg0: i32, %arg1: i32) -> (i32, i32) {
    %c0_i32 = arith.constant 0 : i32
    %c0_i32_0 = arith.constant 0 : i32
    %c0_i32_1 = arith.constant 0 : i32
    return %c0_i32, %c0_i32_0 : i32, i32
  }
  func.func @transform_7(%arg0: i32, %arg1: i32) -> (i32, i32) {
    %c0_i32 = arith.constant 0 : i32
    %c0_i32_0 = arith.constant 0 : i32
    %c0_i32_1 = arith.constant 0 : i32
    return %c0_i32, %c0_i32_0 : i32, i32
  }
  func.func @transform_8(%arg0: i32, %arg1: i32) -> (i32, i32) {
    %c0_i32 = arith.constant 0 : i32
    %c0_i32_0 = arith.constant 0 : i32
    %c0_i32_1 = arith.constant 0 : i32
    return %c0_i32, %c0_i32_0 : i32, i32
  }
  func.func @transform_9(%arg0: i32, %arg1: i32) -> (i32, i32) {
    %c2_i32 = arith.constant 2 : i32
    %0 = arith.muli %arg0, %c2_i32 : i32
    %1 = arith.addi %0, %arg1 : i32
    %c0_i32 = arith.constant 0 : i32
    %c0_i32_0 = arith.constant 0 : i32
    return %c0_i32, %1 : i32, i32
  }
  func.func @transform_10(%arg0: i32, %arg1: i32) -> (i32, i32, i32) {
    %c0_i32 = arith.constant 0 : i32
    %c0_i32_0 = arith.constant 0 : i32
    %c0_i32_1 = arith.constant 0 : i32
    return %arg0, %c0_i32, %c0_i32_0 : i32, i32, i32
  }
  func.func @transform_11(%arg0: i32, %arg1: i32) -> (i32, i32, i32) {
    %c0_i32 = arith.constant 0 : i32
    %c0_i32_0 = arith.constant 0 : i32
    %c0_i32_1 = arith.constant 0 : i32
    return %arg0, %c0_i32, %c0_i32_0 : i32, i32, i32
  }
}

module attributes {stable_mosaic.version = 11 : i64} {
  func.func @_bn_relu_kernel(%arg0: i32, %arg1: memref<8x512xbf16, #tpu.memory_space<vmem>>, %arg2: memref<8x1xf32, #tpu.memory_space<vmem>>, %arg3: memref<8x1xf32, #tpu.memory_space<vmem>>, %arg4: memref<8x512xbf16, #tpu.memory_space<vmem>>) attributes {dimension_semantics = [#tpu.dimension_semantics<parallel>], iteration_bounds = array<i64: 2>, scalar_prefetch = 0 : i64, scratch_operands = 0 : i64, tpu.core_type = #tpu.core_type<tc>, window_params = [{transform_indices = @transform_0, window_bounds = array<i64: 8, 512>}, {pipeline_mode = #tpu.pipeline_mode<synchronous>, transform_indices = @transform_1, window_bounds = array<i64: 8, 1>}, {pipeline_mode = #tpu.pipeline_mode<synchronous>, transform_indices = @transform_2, window_bounds = array<i64: 8, 1>}, {transform_indices = @transform_3, window_bounds = array<i64: 8, 512>}]} {
    %c0 = arith.constant 0 : index
    %c0_0 = arith.constant 0 : index
    %0 = vector.load %arg1[%c0, %c0_0] : memref<8x512xbf16, #tpu.memory_space<vmem>>, vector<8x512xbf16>
    %1 = arith.extf %0 : vector<8x512xbf16> to vector<8x512xf32>
    %c0_1 = arith.constant 0 : index
    %c0_2 = arith.constant 0 : index
    %2 = vector.load %arg2[%c0_1, %c0_2] : memref<8x1xf32, #tpu.memory_space<vmem>>, vector<8x1xf32>
    %3 = vector.broadcast %2 : vector<8x1xf32> to vector<8x512xf32>
    %4 = arith.mulf %1, %3 : vector<8x512xf32>
    %c0_3 = arith.constant 0 : index
    %c0_4 = arith.constant 0 : index
    %5 = vector.load %arg3[%c0_3, %c0_4] : memref<8x1xf32, #tpu.memory_space<vmem>>, vector<8x1xf32>
    %6 = vector.broadcast %5 : vector<8x1xf32> to vector<8x512xf32>
    %7 = arith.addf %4, %6 : vector<8x512xf32>
    %cst = arith.constant 0.000000e+00 : f32
    %8 = vector.broadcast %cst : f32 to vector<8x512xf32>
    %9 = arith.maximumf %7, %8 : vector<8x512xf32>
    %10 = arith.truncf %9 : vector<8x512xf32> to vector<8x512xbf16>
    %c0_5 = arith.constant 0 : index
    %c0_6 = arith.constant 0 : index
    %11 = vector.load %arg4[%c0_5, %c0_6] : memref<8x512xbf16, #tpu.memory_space<vmem>>, vector<8x512xbf16>
    tpu.vector_store %arg4[%c0_5, %c0_6], %10 {strides = array<i32>} : memref<8x512xbf16, #tpu.memory_space<vmem>>, vector<8x512xbf16>,
    return
  }
  func.func @transform_0(%arg0: i32) -> (i32, i32) {
    %c1_i32 = arith.constant 1 : i32
    %0 = arith.addi %arg0, %c1_i32 : i32
    %c0_i32 = arith.constant 0 : i32
    %c0_i32_0 = arith.constant 0 : i32
    return %c0_i32, %0 : i32, i32
  }
  func.func @transform_1(%arg0: i32) -> (i32, i32) {
    %c0_i32 = arith.constant 0 : i32
    %c0_i32_0 = arith.constant 0 : i32
    %c0_i32_1 = arith.constant 0 : i32
    return %c0_i32, %c0_i32_0 : i32, i32
  }
  func.func @transform_2(%arg0: i32) -> (i32, i32) {
    %c0_i32 = arith.constant 0 : i32
    %c0_i32_0 = arith.constant 0 : i32
    %c0_i32_1 = arith.constant 0 : i32
    return %c0_i32, %c0_i32_0 : i32, i32
  }
  func.func @transform_3(%arg0: i32) -> (i32, i32) {
    %c0_i32 = arith.constant 0 : i32
    %c0_i32_0 = arith.constant 0 : i32
    return %c0_i32, %arg0 : i32, i32
  }
}

module attributes {stable_mosaic.version = 11 : i64} {
  func.func @_conv_bn_stats_kernel(%arg0: i32, %arg1: i32, %arg2: memref<8x512xbf16, #tpu.memory_space<vmem>>, %arg3: memref<8x128xbf16, #tpu.memory_space<vmem>>, %arg4: memref<8x128xbf16, #tpu.memory_space<vmem>>, %arg5: memref<1x512xbf16, #tpu.memory_space<vmem>>, %arg6: memref<1x128xbf16, #tpu.memory_space<vmem>>, %arg7: memref<1x128xbf16, #tpu.memory_space<vmem>>, %arg8: memref<8x72xbf16, #tpu.memory_space<vmem>>, %arg9: memref<8x1xf32, #tpu.memory_space<vmem>>, %arg10: memref<8x1xf32, #tpu.memory_space<vmem>>, %arg11: memref<8x512xbf16, #tpu.memory_space<vmem>>, %arg12: memref<1x8x1xf32, #tpu.memory_space<vmem>>, %arg13: memref<1x8x1xf32, #tpu.memory_space<vmem>>, %arg14: memref<8x768xbf16, #tpu.memory_space<vmem>>, %arg15: memref<72x512xbf16, #tpu.memory_space<vmem>>) attributes {dimension_semantics = [#tpu.dimension_semantics<parallel>, #tpu.dimension_semantics<arbitrary>], iteration_bounds = array<i64: 2, 2>, scalar_prefetch = 0 : i64, scratch_operands = 2 : i64, tpu.core_type = #tpu.core_type<tc>, window_params = [{transform_indices = @transform_0, window_bounds = array<i64: 8, 512>}, {transform_indices = @transform_1, window_bounds = array<i64: 8, 128>}, {transform_indices = @transform_2, window_bounds = array<i64: 8, 128>}, {transform_indices = @transform_3, window_bounds = array<i64: 1, 512>}, {transform_indices = @transform_4, window_bounds = array<i64: 1, 128>}, {transform_indices = @transform_5, window_bounds = array<i64: 1, 128>}, {pipeline_mode = #tpu.pipeline_mode<synchronous>, transform_indices = @transform_6, window_bounds = array<i64: 8, 72>}, {pipeline_mode = #tpu.pipeline_mode<synchronous>, transform_indices = @transform_7, window_bounds = array<i64: 8, 1>}, {pipeline_mode = #tpu.pipeline_mode<synchronous>, transform_indices = @transform_8, window_bounds = array<i64: 8, 1>}, {transform_indices = @transform_9, window_bounds = array<i64: 8, 512>}, {transform_indices = @transform_10, window_bounds = array<i64: 1, 8, 1>}, {transform_indices = @transform_11, window_bounds = array<i64: 1, 8, 1>}]} {
    %c0_i32 = arith.constant 0 : i32
    %0 = arith.cmpi eq, %arg1, %c0_i32 : i32
    %1 = arith.extui %0 : i1 to i32
    %c0_i32_0 = arith.constant 0 : i32
    %2 = arith.cmpi ne, %1, %c0_i32_0 : i32
    scf.if %2 {
      %cst_65 = arith.constant 0.000000e+00 : f32
      %67 = vector.broadcast %cst_65 : f32 to vector<1x8x1xf32>
      %c0_66 = arith.constant 0 : index
      %c0_67 = arith.constant 0 : index
      %c0_68 = arith.constant 0 : index
      %68 = vector.load %arg12[%c0_66, %c0_67, %c0_68] : memref<1x8x1xf32, #tpu.memory_space<vmem>>, vector<1x8x1xf32>
      tpu.vector_store %arg12[%c0_66, %c0_67, %c0_68], %67 {strides = array<i32>} : memref<1x8x1xf32, #tpu.memory_space<vmem>>, vector<1x8x1xf32>,
      %cst_69 = arith.constant 0.000000e+00 : f32
      %69 = vector.broadcast %cst_69 : f32 to vector<1x8x1xf32>
      %c0_70 = arith.constant 0 : index
      %c0_71 = arith.constant 0 : index
      %c0_72 = arith.constant 0 : index
      %70 = vector.load %arg13[%c0_70, %c0_71, %c0_72] : memref<1x8x1xf32, #tpu.memory_space<vmem>>, vector<1x8x1xf32>
      tpu.vector_store %arg13[%c0_70, %c0_71, %c0_72], %69 {strides = array<i32>} : memref<1x8x1xf32, #tpu.memory_space<vmem>>, vector<1x8x1xf32>,
    } else {
    }
    %c0 = arith.constant 0 : index
    %c0_1 = arith.constant 0 : index
    %3 = vector.load %arg3[%c0, %c0_1] : memref<8x128xbf16, #tpu.memory_space<vmem>>, vector<8x128xbf16>
    %c0_2 = arith.constant 0 : index
    %c0_3 = arith.constant 0 : index
    %4 = vector.load %arg14[%c0_2, %c0_3] : memref<8x768xbf16, #tpu.memory_space<vmem>>, vector<8x128xbf16>
    tpu.vector_store %arg14[%c0_2, %c0_3], %3 {strides = array<i32>} : memref<8x768xbf16, #tpu.memory_space<vmem>>, vector<8x128xbf16>,
    %c0_4 = arith.constant 0 : index
    %c0_5 = arith.constant 0 : index
    %5 = vector.load %arg2[%c0_4, %c0_5] : memref<8x512xbf16, #tpu.memory_space<vmem>>, vector<8x512xbf16>
    %c0_6 = arith.constant 0 : index
    %c128 = arith.constant 128 : index
    %6 = vector.load %arg14[%c0_6, %c128] : memref<8x768xbf16, #tpu.memory_space<vmem>>, vector<8x512xbf16>
    tpu.vector_store %arg14[%c0_6, %c128], %5 {strides = array<i32>} : memref<8x768xbf16, #tpu.memory_space<vmem>>, vector<8x512xbf16>,
    %c0_7 = arith.constant 0 : index
    %c0_8 = arith.constant 0 : index
    %7 = vector.load %arg4[%c0_7, %c0_8] : memref<8x128xbf16, #tpu.memory_space<vmem>>, vector<8x128xbf16>
    %c0_9 = arith.constant 0 : index
    %c640 = arith.constant 640 : index
    %8 = vector.load %arg14[%c0_9, %c640] : memref<8x768xbf16, #tpu.memory_space<vmem>>, vector<8x128xbf16>
    tpu.vector_store %arg14[%c0_9, %c640], %7 {strides = array<i32>} : memref<8x768xbf16, #tpu.memory_space<vmem>>, vector<8x128xbf16>,
    %c0_10 = arith.constant 0 : index
    %c0_11 = arith.constant 0 : index
    %9 = vector.load %arg6[%c0_10, %c0_11] : memref<1x128xbf16, #tpu.memory_space<vmem>>, vector<1x128xbf16>
    %c0_12 = arith.constant 0 : index
    %c0_13 = arith.constant 0 : index
    %10 = vector.load %arg5[%c0_12, %c0_13] : memref<1x512xbf16, #tpu.memory_space<vmem>>, vector<1x512xbf16>
    %c0_14 = arith.constant 0 : index
    %c0_15 = arith.constant 0 : index
    %11 = vector.load %arg7[%c0_14, %c0_15] : memref<1x128xbf16, #tpu.memory_space<vmem>>, vector<1x128xbf16>
    %12 = tpu.concatenate %9, %10, %11 in 1 : vector<1x128xbf16>, vector<1x512xbf16>, vector<1x128xbf16> -> vector<1x768xbf16>
    %13 = arith.extf %12 : vector<1x768xbf16> to vector<1x768xf32>
    %c0_16 = arith.constant 0 : index
    %c0_17 = arith.constant 0 : index
    %14 = vector.load %arg14[%c0_16, %c0_17] : memref<8x768xbf16, #tpu.memory_space<vmem>>, vector<8x768xbf16>
    %15 = arith.extf %14 : vector<8x768xbf16> to vector<8x768xf32>
    %c0_18 = arith.constant 0 : index
    %c0_19 = arith.constant 0 : index
    %16 = vector.load %arg9[%c0_18, %c0_19] : memref<8x1xf32, #tpu.memory_space<vmem>>, vector<8x1xf32>
    %17 = vector.broadcast %16 : vector<8x1xf32> to vector<8x768xf32>
    %18 = arith.mulf %15, %17 : vector<8x768xf32>
    %c0_20 = arith.constant 0 : index
    %c0_21 = arith.constant 0 : index
    %19 = vector.load %arg10[%c0_20, %c0_21] : memref<8x1xf32, #tpu.memory_space<vmem>>, vector<8x1xf32>
    %20 = vector.broadcast %19 : vector<8x1xf32> to vector<8x768xf32>
    %21 = arith.addf %18, %20 : vector<8x768xf32>
    %cst = arith.constant 0.000000e+00 : f32
    %22 = vector.broadcast %cst : f32 to vector<8x768xf32>
    %23 = arith.maximumf %21, %22 : vector<8x768xf32>
    %24 = vector.broadcast %13 : vector<1x768xf32> to vector<8x768xf32>
    %25 = arith.mulf %23, %24 : vector<8x768xf32>
    %26 = arith.truncf %25 : vector<8x768xf32> to vector<8x768xbf16>
    %c0_22 = arith.constant 0 : index
    %c0_23 = arith.constant 0 : index
    %27 = vector.load %arg14[%c0_22, %c0_23] : memref<8x768xbf16, #tpu.memory_space<vmem>>, vector<8x768xbf16>
    tpu.vector_store %arg14[%c0_22, %c0_23], %26 {strides = array<i32>} : memref<8x768xbf16, #tpu.memory_space<vmem>>, vector<8x768xbf16>,
    %c0_24 = arith.constant 0 : index
    %c109 = arith.constant 109 : index
    %28 = vector.load %arg14[%c0_24, %c109] : memref<8x768xbf16, #tpu.memory_space<vmem>>, vector<8x512xbf16>
    %c0_25 = arith.constant 0 : index
    %c0_26 = arith.constant 0 : index
    %29 = vector.load %arg15[%c0_25, %c0_26] : memref<72x512xbf16, #tpu.memory_space<vmem>>, vector<8x512xbf16>
    tpu.vector_store %arg15[%c0_25, %c0_26], %28 {strides = array<i32>} : memref<72x512xbf16, #tpu.memory_space<vmem>>, vector<8x512xbf16>,
    %c0_27 = arith.constant 0 : index
    %c110 = arith.constant 110 : index
    %30 = vector.load %arg14[%c0_27, %c110] : memref<8x768xbf16, #tpu.memory_space<vmem>>, vector<8x512xbf16>
    %c8 = arith.constant 8 : index
    %c0_28 = arith.constant 0 : index
    %31 = vector.load %arg15[%c8, %c0_28] : memref<72x512xbf16, #tpu.memory_space<vmem>>, vector<8x512xbf16>
    tpu.vector_store %arg15[%c8, %c0_28], %30 {strides = array<i32>} : memref<72x512xbf16, #tpu.memory_space<vmem>>, vector<8x512xbf16>,
    %c0_29 = arith.constant 0 : index
    %c111 = arith.constant 111 : index
    %32 = vector.load %arg14[%c0_29, %c111] : memref<8x768xbf16, #tpu.memory_space<vmem>>, vector<8x512xbf16>
    %c16 = arith.constant 16 : index
    %c0_30 = arith.constant 0 : index
    %33 = vector.load %arg15[%c16, %c0_30] : memref<72x512xbf16, #tpu.memory_space<vmem>>, vector<8x512xbf16>
    tpu.vector_store %arg15[%c16, %c0_30], %32 {strides = array<i32>} : memref<72x512xbf16, #tpu.memory_space<vmem>>, vector<8x512xbf16>,
    %c0_31 = arith.constant 0 : index
    %c127 = arith.constant 127 : index
    %34 = vector.load %arg14[%c0_31, %c127] : memref<8x768xbf16, #tpu.memory_space<vmem>>, vector<8x512xbf16>
    %c24 = arith.constant 24 : index
    %c0_32 = arith.constant 0 : index
    %35 = vector.load %arg15[%c24, %c0_32] : memref<72x512xbf16, #tpu.memory_space<vmem>>, vector<8x512xbf16>
    tpu.vector_store %arg15[%c24, %c0_32], %34 {strides = array<i32>} : memref<72x512xbf16, #tpu.memory_space<vmem>>, vector<8x512xbf16>,
    %c0_33 = arith.constant 0 : index
    %c128_34 = arith.constant 128 : index
    %36 = vector.load %arg14[%c0_33, %c128_34] : memref<8x768xbf16, #tpu.memory_space<vmem>>, vector<8x512xbf16>
    %c32 = arith.constant 32 : index
    %c0_35 = arith.constant 0 : index
    %37 = vector.load %arg15[%c32, %c0_35] : memref<72x512xbf16, #tpu.memory_space<vmem>>, vector<8x512xbf16>
    tpu.vector_store %arg15[%c32, %c0_35], %36 {strides = array<i32>} : memref<72x512xbf16, #tpu.memory_space<vmem>>, vector<8x512xbf16>,
    %c0_36 = arith.constant 0 : index
    %c129 = arith.constant 129 : index
    %38 = vector.load %arg14[%c0_36, %c129] : memref<8x768xbf16, #tpu.memory_space<vmem>>, vector<8x512xbf16>
    %c40 = arith.constant 40 : index
    %c0_37 = arith.constant 0 : index
    %39 = vector.load %arg15[%c40, %c0_37] : memref<72x512xbf16, #tpu.memory_space<vmem>>, vector<8x512xbf16>
    tpu.vector_store %arg15[%c40, %c0_37], %38 {strides = array<i32>} : memref<72x512xbf16, #tpu.memory_space<vmem>>, vector<8x512xbf16>,
    %c0_38 = arith.constant 0 : index
    %c145 = arith.constant 145 : index
    %40 = vector.load %arg14[%c0_38, %c145] : memref<8x768xbf16, #tpu.memory_space<vmem>>, vector<8x512xbf16>
    %c48 = arith.constant 48 : index
    %c0_39 = arith.constant 0 : index
    %41 = vector.load %arg15[%c48, %c0_39] : memref<72x512xbf16, #tpu.memory_space<vmem>>, vector<8x512xbf16>
    tpu.vector_store %arg15[%c48, %c0_39], %40 {strides = array<i32>} : memref<72x512xbf16, #tpu.memory_space<vmem>>, vector<8x512xbf16>,
    %c0_40 = arith.constant 0 : index
    %c146 = arith.constant 146 : index
    %42 = vector.load %arg14[%c0_40, %c146] : memref<8x768xbf16, #tpu.memory_space<vmem>>, vector<8x512xbf16>
    %c56 = arith.constant 56 : index
    %c0_41 = arith.constant 0 : index
    %43 = vector.load %arg15[%c56, %c0_41] : memref<72x512xbf16, #tpu.memory_space<vmem>>, vector<8x512xbf16>
    tpu.vector_store %arg15[%c56, %c0_41], %42 {strides = array<i32>} : memref<72x512xbf16, #tpu.memory_space<vmem>>, vector<8x512xbf16>,
    %c0_42 = arith.constant 0 : index
    %c147 = arith.constant 147 : index
    %44 = vector.load %arg14[%c0_42, %c147] : memref<8x768xbf16, #tpu.memory_space<vmem>>, vector<8x512xbf16>
    %c64 = arith.constant 64 : index
    %c0_43 = arith.constant 0 : index
    %45 = vector.load %arg15[%c64, %c0_43] : memref<72x512xbf16, #tpu.memory_space<vmem>>, vector<8x512xbf16>
    tpu.vector_store %arg15[%c64, %c0_43], %44 {strides = array<i32>} : memref<72x512xbf16, #tpu.memory_space<vmem>>, vector<8x512xbf16>,
    %c0_44 = arith.constant 0 : index
    %c0_45 = arith.constant 0 : index
    %46 = vector.load %arg8[%c0_44, %c0_45] : memref<8x72xbf16, #tpu.memory_space<vmem>>, vector<8x72xbf16>
    %c0_46 = arith.constant 0 : index
    %c0_47 = arith.constant 0 : index
    %47 = vector.load %arg15[%c0_46, %c0_47] : memref<72x512xbf16, #tpu.memory_space<vmem>>, vector<72x512xbf16>
    %cst_48 = arith.constant dense<0.000000e+00> : vector<8x512xf32>
    %48 = tpu.matmul %46, %47, %cst_48 {dimension_numbers = #tpu.dot_dimension_numbers<[1], [0], [0], [1], [0, 0, 1, 1], [], []>} : vector<8x72xbf16>, vector<72x512xbf16>, vector<8x512xf32> -> vector<8x512xf32>
    %49 = vector.extract_strided_slice %13 {offsets = [0, 128], sizes = [1, 512], strides = [1, 1]} : vector<1x768xf32> to vector<1x512xf32>
    %50 = vector.broadcast %49 : vector<1x512xf32> to vector<8x512xf32>
    %51 = arith.mulf %48, %50 : vector<8x512xf32>
    %52 = arith.truncf %51 : vector<8x512xf32> to vector<8x512xbf16>
    %c0_49 = arith.constant 0 : index
    %c0_50 = arith.constant 0 : index
    %53 = vector.load %arg11[%c0_49, %c0_50] : memref<8x512xbf16, #tpu.memory_space<vmem>>, vector<8x512xbf16>
    tpu.vector_store %arg11[%c0_49, %c0_50], %52 {strides = array<i32>} : memref<8x512xbf16, #tpu.memory_space<vmem>>, vector<8x512xbf16>,
    %c0_51 = arith.constant 0 : index
    %c0_52 = arith.constant 0 : index
    %c0_53 = arith.constant 0 : index
    %54 = vector.load %arg12[%c0_51, %c0_52, %c0_53] : memref<1x8x1xf32, #tpu.memory_space<vmem>>, vector<1x8x1xf32>
    %cst_54 = arith.constant dense<0.000000e+00> : vector<8xf32>
    %55 = vector.multi_reduction <add>, %51, %cst_54 [1] : vector<8x512xf32> to vector<8xf32>
    %56 = vector.shape_cast %55 : vector<8xf32> to vector<8x1xf32>
    %57 = vector.shape_cast %56 : vector<8x1xf32> to vector<1x8x1xf32>
    %58 = arith.addf %54, %57 : vector<1x8x1xf32>
    %c0_55 = arith.constant 0 : index
    %c0_56 = arith.constant 0 : index
    %c0_57 = arith.constant 0 : index
    %59 = vector.load %arg12[%c0_55, %c0_56, %c0_57] : memref<1x8x1xf32, #tpu.memory_space<vmem>>, vector<1x8x1xf32>
    tpu.vector_store %arg12[%c0_55, %c0_56, %c0_57], %58 {strides = array<i32>} : memref<1x8x1xf32, #tpu.memory_space<vmem>>, vector<1x8x1xf32>,
    %c0_58 = arith.constant 0 : index
    %c0_59 = arith.constant 0 : index
    %c0_60 = arith.constant 0 : index
    %60 = vector.load %arg13[%c0_58, %c0_59, %c0_60] : memref<1x8x1xf32, #tpu.memory_space<vmem>>, vector<1x8x1xf32>
    %61 = arith.mulf %51, %51 : vector<8x512xf32>
    %cst_61 = arith.constant dense<0.000000e+00> : vector<8xf32>
    %62 = vector.multi_reduction <add>, %61, %cst_61 [1] : vector<8x512xf32> to vector<8xf32>
    %63 = vector.shape_cast %62 : vector<8xf32> to vector<8x1xf32>
    %64 = vector.shape_cast %63 : vector<8x1xf32> to vector<1x8x1xf32>
    %65 = arith.addf %60, %64 : vector<1x8x1xf32>
    %c0_62 = arith.constant 0 : index
    %c0_63 = arith.constant 0 : index
    %c0_64 = arith.constant 0 : index
    %66 = vector.load %arg13[%c0_62, %c0_63, %c0_64] : memref<1x8x1xf32, #tpu.memory_space<vmem>>, vector<1x8x1xf32>
    tpu.vector_store %arg13[%c0_62, %c0_63, %c0_64], %65 {strides = array<i32>} : memref<1x8x1xf32, #tpu.memory_space<vmem>>, vector<1x8x1xf32>,
    return
  }
  func.func @transform_0(%arg0: i32, %arg1: i32) -> (i32, i32) {
    %c2_i32 = arith.constant 2 : i32
    %0 = arith.muli %arg0, %c2_i32 : i32
    %1 = arith.addi %0, %arg1 : i32
    %c0_i32 = arith.constant 0 : i32
    %c0_i32_0 = arith.constant 0 : i32
    return %c0_i32, %1 : i32, i32
  }
  func.func @transform_1(%arg0: i32, %arg1: i32) -> (i32, i32) {
    %c2_i32 = arith.constant 2 : i32
    %0 = arith.muli %arg0, %c2_i32 : i32
    %1 = arith.addi %0, %arg1 : i32
    %c4_i32 = arith.constant 4 : i32
    %2 = arith.muli %1, %c4_i32 : i32
    %c1_i32 = arith.constant 1 : i32
    %3 = arith.subi %2, %c1_i32 : i32
    %c0_i32 = arith.constant 0 : i32
    %4 = arith.maxsi %3, %c0_i32 : i32
    %c0_i32_0 = arith.constant 0 : i32
    %c0_i32_1 = arith.constant 0 : i32
    return %c0_i32_0, %4 : i32, i32
  }
  func.func @transform_2(%arg0: i32, %arg1: i32) -> (i32, i32) {
    %c2_i32 = arith.constant 2 : i32
    %0 = arith.muli %arg0, %c2_i32 : i32
    %1 = arith.addi %0, %arg1 : i32
    %c1_i32 = arith.constant 1 : i32
    %2 = arith.addi %1, %c1_i32 : i32
    %c4_i32 = arith.constant 4 : i32
    %3 = arith.muli %2, %c4_i32 : i32
    %c15_i32 = arith.constant 15 : i32
    %4 = arith.minsi %3, %c15_i32 : i32
    %c0_i32 = arith.constant 0 : i32
    %c0_i32_0 = arith.constant 0 : i32
    return %c0_i32, %4 : i32, i32
  }
  func.func @transform_3(%arg0: i32, %arg1: i32) -> (i32, i32) {
    %c2_i32 = arith.constant 2 : i32
    %0 = arith.muli %arg0, %c2_i32 : i32
    %1 = arith.addi %0, %arg1 : i32
    %c0_i32 = arith.constant 0 : i32
    %c0_i32_0 = arith.constant 0 : i32
    return %c0_i32, %1 : i32, i32
  }
  func.func @transform_4(%arg0: i32, %arg1: i32) -> (i32, i32) {
    %c2_i32 = arith.constant 2 : i32
    %0 = arith.muli %arg0, %c2_i32 : i32
    %1 = arith.addi %0, %arg1 : i32
    %c4_i32 = arith.constant 4 : i32
    %2 = arith.muli %1, %c4_i32 : i32
    %c1_i32 = arith.constant 1 : i32
    %3 = arith.subi %2, %c1_i32 : i32
    %c0_i32 = arith.constant 0 : i32
    %4 = arith.maxsi %3, %c0_i32 : i32
    %c0_i32_0 = arith.constant 0 : i32
    %c0_i32_1 = arith.constant 0 : i32
    return %c0_i32_0, %4 : i32, i32
  }
  func.func @transform_5(%arg0: i32, %arg1: i32) -> (i32, i32) {
    %c2_i32 = arith.constant 2 : i32
    %0 = arith.muli %arg0, %c2_i32 : i32
    %1 = arith.addi %0, %arg1 : i32
    %c1_i32 = arith.constant 1 : i32
    %2 = arith.addi %1, %c1_i32 : i32
    %c4_i32 = arith.constant 4 : i32
    %3 = arith.muli %2, %c4_i32 : i32
    %c15_i32 = arith.constant 15 : i32
    %4 = arith.minsi %3, %c15_i32 : i32
    %c0_i32 = arith.constant 0 : i32
    %c0_i32_0 = arith.constant 0 : i32
    return %c0_i32, %4 : i32, i32
  }
  func.func @transform_6(%arg0: i32, %arg1: i32) -> (i32, i32) {
    %c0_i32 = arith.constant 0 : i32
    %c0_i32_0 = arith.constant 0 : i32
    %c0_i32_1 = arith.constant 0 : i32
    return %c0_i32, %c0_i32_0 : i32, i32
  }
  func.func @transform_7(%arg0: i32, %arg1: i32) -> (i32, i32) {
    %c0_i32 = arith.constant 0 : i32
    %c0_i32_0 = arith.constant 0 : i32
    %c0_i32_1 = arith.constant 0 : i32
    return %c0_i32, %c0_i32_0 : i32, i32
  }
  func.func @transform_8(%arg0: i32, %arg1: i32) -> (i32, i32) {
    %c0_i32 = arith.constant 0 : i32
    %c0_i32_0 = arith.constant 0 : i32
    %c0_i32_1 = arith.constant 0 : i32
    return %c0_i32, %c0_i32_0 : i32, i32
  }
  func.func @transform_9(%arg0: i32, %arg1: i32) -> (i32, i32) {
    %c2_i32 = arith.constant 2 : i32
    %0 = arith.muli %arg0, %c2_i32 : i32
    %1 = arith.addi %0, %arg1 : i32
    %c0_i32 = arith.constant 0 : i32
    %c0_i32_0 = arith.constant 0 : i32
    return %c0_i32, %1 : i32, i32
  }
  func.func @transform_10(%arg0: i32, %arg1: i32) -> (i32, i32, i32) {
    %c0_i32 = arith.constant 0 : i32
    %c0_i32_0 = arith.constant 0 : i32
    %c0_i32_1 = arith.constant 0 : i32
    return %arg0, %c0_i32, %c0_i32_0 : i32, i32, i32
  }
  func.func @transform_11(%arg0: i32, %arg1: i32) -> (i32, i32, i32) {
    %c0_i32 = arith.constant 0 : i32
    %c0_i32_0 = arith.constant 0 : i32
    %c0_i32_1 = arith.constant 0 : i32
    return %arg0, %c0_i32, %c0_i32_0 : i32, i32, i32
  }
}

</mosaic_0001>

<llo_original>
// kernel: double_conv.5
$region0: #{double_conv.5}
  #allocation0 [shape = 'u32[]', space=smem, size = 0x4, offset = 0x4, fixed_abs, tag = 'smem constant byte address 0x4 - core index']
  #allocation1 [shape = 'u32[144,128]{1,0:T(1,128)}', space=vmem, size = 0x12000, scoped, tag = 'internal scratch']
  %s0 = inlined_call_operand.vmem [shape: bf16[8,2048], index: 0, kind: input, shape index: {}]
  %s1 = inlined_call_operand.vmem [shape: f32[8,1], index: 1, kind: input, shape index: {}]
  %s2 = inlined_call_operand.vmem [shape: f32[8,1], index: 2, kind: input, shape index: {}]
  %s3 = inlined_call_operand.vmem [shape: bf16[8,1024], index: 3, kind: output, shape index: {}]
  %s4 = sld [smem:[#allocation0]]
  $region45: #{double_conv.5} parent=0
    _
  %s6 = ssub.s32 1, %s4
  %s7 = scalar_select 0, %s6, %s4
  loop: start=0, step=1, limit=4
  $region2: #{double_conv.5} parent=0 // loop_pre_header
    _
  $region3: #{double_conv.5} parent=0 // loop_header
    %s9 = sphi 0, %s13
    %p10 = scmp.ge.s32.totalorder %s9, 4
    %s21 = sphi 0, %s23
    %s24 = sphi 0, %s21
    %s25 = sphi 0, %s24
    %s41 = sphi 0, %s25
    %s45 = sphi 0, %s45
    %s47 = sphi 0, %s45
    %s48 = sphi 0, %s47
    %s62 = sphi 0, %s48
    %s66 = sphi 0, %s66
    %s68 = sphi 0, %s66
    %s69 = sphi 0, %s68
    %s83 = sphi 0, %s69
    %s89 = sphi 0, %s91
    %s92 = sphi 0, %s89
    %s93 = sphi 0, %s92
    %s109 = sphi 0, %s93
  $region4: #{double_conv.5} parent=0 // loop_header_branch
    %12 = sbr.rel (%p10) target = $region8
  $region5: #{double_conv.5} parent=0 // loop_body
    %s14 = ssub.s32 %s9, 1
    %s15 = ssub.s32 %s9, 2
    %s16 = sadd.s32 %s9, 1
    %s17 = sadd.s32 %s9, 1
    %s18 = sadd.s32 %s16, 1
    %s19 = ssub.s32 %s17, %s18
    %p20 = scmp.eq.s32.totalorder %s19, 0
    %s22 = sadd.s32 %s21, 1
    %s23 = scalar_select %p20, %s21, %s22
    %p26 = pneg %p20
    %p27 = scmp.eq.s32.totalorder %s9, 1
    %p28 = por %p26, %p27
    %p29 = scmp.ne.s32.totalorder %s21, %s24
    %p30 = scmp.eq.s32.totalorder %s9, 0
    %p31 = por %p29, %p30
    %p32 = scmp.ne.s32.totalorder %s21, %s24
    %p33 = scmp.eq.s32.totalorder %s14, 1
    %p34 = por %p32, %p33
    %p35 = scmp.ne.s32.totalorder %s24, %s25
    %p36 = scmp.eq.s32.totalorder %s14, 0
    %p37 = por %p35, %p36
    %p38 = scmp.ne.s32.totalorder %s24, %s25
    %p39 = scmp.eq.s32.totalorder %s15, 1
    %p40 = por %p38, %p39
    %p42 = scmp.ne.s32.totalorder %s25, %s41
    %p43 = scmp.eq.s32.totalorder %s15, 0
    %p44 = por %p42, %p43
    %s46 = sadd.s32 %s45, 1
    %p49 = scmp.eq.s32.totalorder %s9, 1
    %p50 = scmp.ne.s32.totalorder %s45, %s47
    %p51 = scmp.eq.s32.totalorder %s9, 0
    %p52 = por %p50, %p51
    %p53 = scmp.ne.s32.totalorder %s45, %s47
    %p54 = scmp.eq.s32.totalorder %s14, 1
    %p55 = por %p53, %p54
    %p56 = scmp.ne.s32.totalorder %s47, %s48
    %p57 = scmp.eq.s32.totalorder %s14, 0
    %p58 = por %p56, %p57
    %p59 = scmp.ne.s32.totalorder %s47, %s48
    %p60 = scmp.eq.s32.totalorder %s15, 1
    %p61 = por %p59, %p60
    %p63 = scmp.ne.s32.totalorder %s48, %s62
    %p64 = scmp.eq.s32.totalorder %s15, 0
    %p65 = por %p63, %p64
    %s67 = sadd.s32 %s66, 1
    %p70 = scmp.eq.s32.totalorder %s9, 1
    %p71 = scmp.ne.s32.totalorder %s66, %s68
    %p72 = scmp.eq.s32.totalorder %s9, 0
    %p73 = por %p71, %p72
    %p74 = scmp.ne.s32.totalorder %s66, %s68
    %p75 = scmp.eq.s32.totalorder %s14, 1
    %p76 = por %p74, %p75
    %p77 = scmp.ne.s32.totalorder %s68, %s69
    %p78 = scmp.eq.s32.totalorder %s14, 0
    %p79 = por %p77, %p78
    %p80 = scmp.ne.s32.totalorder %s68, %s69
    %p81 = scmp.eq.s32.totalorder %s15, 1
    %p82 = por %p80, %p81
    %p84 = scmp.ne.s32.totalorder %s69, %s83
    %p85 = scmp.eq.s32.totalorder %s15, 0
    %p86 = por %p84, %p85
    %s87 = ssub.s32 %s9, %s16
    %p88 = scmp.eq.s32.totalorder %s87, 0
    %s90 = sadd.s32 %s89, 1
    %s91 = scalar_select %p88, %s89, %s90
    %p94 = pneg %p88
    %p95 = scmp.eq.s32.totalorder %s9, 1
    %p96 = por %p94, %p95
    %p97 = scmp.ne.s32.totalorder %s89, %s92
    %p98 = scmp.eq.s32.totalorder %s9, 0
    %p99 = por %p97, %p98
    %p100 = scmp.ne.s32.totalorder %s89, %s92
    %p101 = scmp.eq.s32.totalorder %s14, 1
    %p102 = por %p100, %p101
    %p103 = scmp.ne.s32.totalorder %s92, %s93
    %p104 = scmp.eq.s32.totalorder %s14, 0
    %p105 = por %p103, %p104
    %p106 = scmp.ne.s32.totalorder %s92, %s93
    %p107 = scmp.eq.s32.totalorder %s15, 1
    %p108 = por %p106, %p107
    %p110 = scmp.ne.s32.totalorder %s93, %s109
    %p111 = scmp.eq.s32.totalorder %s15, 0
    %p112 = por %p110, %p111
    %p113 = scmp.le.s32.totalorder 1, %s9
    %p114 = scmp.lt.s32.totalorder %s9, 3
    %p115 = pnand %p113, %p114
    %p116 = pneg %p115
    // Predicated region
    $region9: #{double_conv.5} parent=5 // pred_check
      _
    $region10: #{double_conv.5} parent=5 // pred_check_branch
      %118 = sbr.rel (%p115) target = $region12
    $region11: #{double_conv.5} parent=5 // pred_region
      %s119 = ssub.s32 %s9, 1
      // Predicated region
      $region13: #{double_conv.5} parent=11 // pred_check
        %p120 = pneg %p58
      $region14: #{double_conv.5} parent=11 // pred_check_branch
        %122 = sbr.rel (%p120) target = $region16
      $region15: #{double_conv.5} parent=11 // pred_region
        _
      $region16: #{double_conv.5} parent=11 // pred_fallthru
        _
      // Predicated region
      $region17: #{double_conv.5} parent=11 // pred_check
        %p123 = pneg %p79
      $region18: #{double_conv.5} parent=11 // pred_check_branch
        %125 = sbr.rel (%p123) target = $region20
      $region19: #{double_conv.5} parent=11 // pred_region
        _
      $region20: #{double_conv.5} parent=11 // pred_fallthru
        _
    $region12: #{double_conv.5} parent=5 // pred_fallthru
      _
    %p126 = scmp.lt.s32.totalorder %s9, 2
    // Predicated region
    $region21: #{double_conv.5} parent=5 // pred_check
      %p127 = pneg %p126
    $region22: #{double_conv.5} parent=5 // pred_check_branch
      %129 = sbr.rel (%p127) target = $region24
    $region23: #{double_conv.5} parent=5 // pred_region
      // Predicated region
      $region25: #{double_conv.5} parent=23 // pred_check
        %p130 = pneg %p31
      $region26: #{double_conv.5} parent=23 // pred_check_branch
        %132 = sbr.rel (%p130) target = $region28
      $region27: #{double_conv.5} parent=23 // pred_region
        %s133 = sadd.s32 %s9, 1
        %s134 = smul.u32 4, %s133
        %p135 = scmp.lt.s32.totalorder %s134, 15
        %s136 = scalar_select %p135, %s134, 15
        %s137 = smul.addr %s136, 4
        %s138 = scalar_lea.vmem %s0, %s137
        %s139 = sadd.s32 %s9, 1
        %s140 = smul.u32 4, %s139
      $region28: #{double_conv.5} parent=23 // pred_fallthru
        _
    $region24: #{double_conv.5} parent=5 // pred_fallthru
      _
    %p141 = scmp.le.s32.totalorder 1, %s9
    %p142 = scmp.lt.s32.totalorder %s9, 3
    %p143 = pnand %p141, %p142
    %p144 = pneg %p143
    // Predicated region
    $region29: #{double_conv.5} parent=5 // pred_check
      _
    $region30: #{double_conv.5} parent=5 // pred_check_branch
      %146 = sbr.rel (%p143) target = $region32
    $region31: #{double_conv.5} parent=5 // pred_region
      %s147 = ssub.s32 %s9, 1
      %s148 = sadd.s32 %s14, 1
      %s149 = smul.u32 4, %s148
      %p150 = scmp.lt.s32.totalorder %s149, 15
      %s151 = scalar_select %p150, %s149, 15
      %s152 = smul.addr %s151, 4
      %s153 = scalar_lea.vmem %s0, %s152
      %p154 = pneg %p37
      %p155 = pneg %p34
      %p156 = pneg %p58
      %p157 = pneg %p55
      %p158 = pneg %p79
      %p159 = pneg %p76
      %p160 = pneg %p105
      %p161 = pneg %p102
      %s162 = smul.u32 4, %s14
      %p163 = scmp.lt.s32.totalorder %s162, 7
      %s164 = scalar_select %p163, %s162, 7
      %s165 = smul.addr %s164, 4
      %s166 = scalar_lea.vmem %s3, %s165
      %s167 = sadd.s32 %s14, 1
      %s168 = smul.u32 4, %s167
      %p169 = scmp.lt.s32.totalorder %s168, 15
      %s170 = scalar_select %p169, %s168, 15
      %s171 = smul.addr %s170, 4
      %s172 = scalar_lea.vmem %s0, %s171
      %s173 = sadd.s32 %s14, 1
      %s174 = smul.u32 4, %s173
      %s175 = smul.u32 4, %s14
      %p176 = scmp.lt.s32.totalorder %s175, 7
      %s177 = scalar_select %p176, %s175, 7
      %s178 = smul.addr %s177, 4
      %s179 = scalar_lea.vmem %s3, %s178
      %s180 = smul.u32 4, %s14
      %v181 = vld [vmem:[%s172] sm:$0xff]
      %v182 = vld [vmem:[%s172 + $0x8] sm:$0xff]
      %v183 = vunpack.c.l.bf16 %v181
      %v184 = vunpack.c.h.bf16 %v181
      %v185 = vunpack.c.l.bf16 %v182
      %v186 = vunpack.c.h.bf16 %v182
      %v187 = vld [vmem:[%s1] sm:$0xff]
      %189 = vset.pattern.permute.xlu0 0
      %190 = vperm.xlu0 %189, %v187
      %v191 = vpop.permute.xlu0 %190
      %v193 = vmul.f32 %v183, %v191
      %v194 = vmul.f32 %v184, %v191
      %v195 = vmul.f32 %v185, %v191
      %v196 = vmul.f32 %v186, %v191
      %v197 = vld [vmem:[%s2] sm:$0xff]
      %199 = vset.pattern.permute.xlu0 0
      %200 = vperm.xlu0 %199, %v197
      %v201 = vpop.permute.xlu0 %200
      %v203 = vadd.f32 %v193, %v201
      %v204 = vadd.f32 %v194, %v201
      %v205 = vadd.f32 %v195, %v201
      %v206 = vadd.f32 %v196, %v201
      %v207 = vmax.f32 %v203, 0.0
      %v208 = vmax.f32 %v204, 0.0
      %v209 = vmax.f32 %v205, 0.0
      %v210 = vmax.f32 %v206, 0.0
      %v211 = vpack.c.bf16 %v207, %v207
      %v212 = vpack.c.bf16 %v208, %v208
      %v213 = vpack.c.bf16 %v209, %v209
      %v214 = vpack.c.bf16 %v210, %v210
      %v219 = vunpack.c.l.b16 %v211
      %v220 = vunpack.c.l.b16 %v212
      %v221 = vunpack.c.l.b16 %v213
      %v222 = vunpack.c.l.b16 %v214
      %v223 = vpack.c.b16 %v220, %v219
      %v224 = vpack.c.b16 %v222, %v221
      %227 = vst [vmem:[%s179] sm:$0xff] %v223
      %228 = vst [vmem:[%s179 + $0x8] sm:$0xff] %v224
      %s229 = smul.u32 4, %s14
      %p230 = scmp.lt.s32.totalorder %s229, 7
      %s231 = scalar_select %p230, %s229, 7
      %s232 = smul.addr %s231, 4
      %s233 = scalar_lea.vmem %s3, %s232
      // Predicated region
      $region33: #{double_conv.5} parent=31 // pred_check
        %p234 = pneg %p102
      $region34: #{double_conv.5} parent=31 // pred_check_branch
        %236 = sbr.rel (%p234) target = $region36
      $region35: #{double_conv.5} parent=31 // pred_region
        %s237 = smul.u32 4, %s14
      $region36: #{double_conv.5} parent=31 // pred_fallthru
        _
    $region32: #{double_conv.5} parent=5 // pred_fallthru
      _
    %p238 = scmp.le.s32.totalorder 2, %s9
    // Predicated region
    $region37: #{double_conv.5} parent=5 // pred_check
      %p239 = pneg %p238
    $region38: #{double_conv.5} parent=5 // pred_check_branch
      %241 = sbr.rel (%p239) target = $region40
    $region39: #{double_conv.5} parent=5 // pred_region
      %s242 = ssub.s32 %s9, 2
      // Predicated region
      $region41: #{double_conv.5} parent=39 // pred_check
        %p243 = pneg %p108
      $region42: #{double_conv.5} parent=39 // pred_check_branch
        %245 = sbr.rel (%p243) target = $region44
      $region43: #{double_conv.5} parent=39 // pred_region
        %s246 = smul.u32 4, %s15
        %p247 = scmp.lt.s32.totalorder %s246, 7
        %s248 = scalar_select %p247, %s246, 7
        %s249 = smul.addr %s248, 4
        %s250 = scalar_lea.vmem %s3, %s249
      $region44: #{double_conv.5} parent=39 // pred_fallthru
        _
    $region40: #{double_conv.5} parent=5 // pred_fallthru
      _
  $region6: #{double_conv.5} parent=0 // loop_footer
    %s13 = sadd.s32 1, %s9
  $region7: #{double_conv.5} parent=0 // loop_footer_branch
    %8 = sbr.rel target = $region3
  $region8: #{double_conv.5} parent=0 // loop_exit
    _

// kernel: double_conv.3
$region0: #{double_conv.3}
  #allocation0 [shape = 'u32[]', space=smem, size = 0x4, offset = 0x4, fixed_abs, tag = 'smem constant byte address 0x4 - core index']
  #allocation1 [shape = 'u32[144,128]{1,0:T(1,128)}', space=vmem, size = 0x12000, scoped, tag = 'internal scratch']
  #allocation2 [shape = 'bf16[4,768]{1,0:T(4,128)(2,1)}', space=vmem, size = 0x1800, scoped, tag = 'scratch operand']
  #allocation3 [shape = 'bf16[36,512]{1,0:T(8,128)(2,1)}', space=vmem, size = 0xa000, scoped, tag = 'scratch operand']
  %s0 = inlined_call_operand.vmem [shape: bf16[4,2048], index: 0, kind: input, shape index: {}, may-alias: {0,1,2}]
  %s1 = inlined_call_operand.vmem [shape: bf16[4,2048], index: 1, kind: input, shape index: {}, may-alias: {0,1,2}]
  %s2 = inlined_call_operand.vmem [shape: bf16[4,2048], index: 2, kind: input, shape index: {}, may-alias: {0,1,2}]
  %s3 = inlined_call_operand.vmem [shape: bf16[1,2048], index: 3, kind: input, shape index: {}, may-alias: {3,4,5}]
  %s4 = inlined_call_operand.vmem [shape: bf16[1,2048], index: 4, kind: input, shape index: {}, may-alias: {3,4,5}]
  %s5 = inlined_call_operand.vmem [shape: bf16[1,2048], index: 5, kind: input, shape index: {}, may-alias: {3,4,5}]
  %s6 = inlined_call_operand.vmem [shape: bf16[8,36], index: 6, kind: input, shape index: {}]
  %s7 = inlined_call_operand.vmem [shape: f32[4,1], index: 7, kind: input, shape index: {}]
  %s8 = inlined_call_operand.vmem [shape: f32[4,1], index: 8, kind: input, shape index: {}]
  %s9 = inlined_call_operand.vmem [shape: bf16[8,2048], index: 9, kind: output, shape index: {0}]
  %s10 = inlined_call_operand.vmem [shape: f32[2,8,1], index: 10, kind: output, shape index: {1}]
  %s11 = inlined_call_operand.vmem [shape: f32[2,8,1], index: 11, kind: output, shape index: {2}]
  %12 = xla_tuple %s9, %s10, %s11
  %s13 = sld [smem:[#allocation0]]
  $region89: #{double_conv.3} parent=0
    _
  %s15 = ssub.s32 1, %s13
  %s16 = scalar_select 0, %s15, %s13
  loop: start=0, step=1, limit=6
  $region2: #{double_conv.3} parent=0 // loop_pre_header
    _
  $region3: #{double_conv.3} parent=0 // loop_header
    %s18 = sphi 0, %s22
    %p19 = scmp.ge.s32.totalorder %s18, 6
    %s25 = sphi 0, %s37
    %s26 = sphi 0, %s33
    %s27 = sphi 0, %s25
    %s28 = sphi 0, %s26
    %s29 = sphi 0, %s27
    %s30 = sphi 0, %s28
    %s44 = sphi 0, %s46
    %s47 = sphi 0, %s44
    %s48 = sphi 0, %s47
    %s64 = sphi 0, %s48
    %s82 = sphi 0, %s84
    %s85 = sphi 0, %s82
    %s86 = sphi 0, %s85
    %s102 = sphi 0, %s86
    %s120 = sphi 0, %s122
    %s123 = sphi 0, %s120
    %s124 = sphi 0, %s123
    %s140 = sphi 0, %s124
    %s150 = sphi 0, %s152
    %s153 = sphi 0, %s150
    %s154 = sphi 0, %s153
    %s170 = sphi 0, %s154
    %s188 = sphi 0, %s190
    %s191 = sphi 0, %s188
    %s192 = sphi 0, %s191
    %s208 = sphi 0, %s192
    %s226 = sphi 0, %s228
    %s229 = sphi 0, %s226
    %s230 = sphi 0, %s229
    %s246 = sphi 0, %s230
    %s250 = sphi 0, %s250
    %s252 = sphi 0, %s250
    %s253 = sphi 0, %s252
    %s267 = sphi 0, %s253
    %s271 = sphi 0, %s271
    %s273 = sphi 0, %s271
    %s274 = sphi 0, %s273
    %s288 = sphi 0, %s274
    %s292 = sphi 0, %s292
    %s294 = sphi 0, %s292
    %s295 = sphi 0, %s294
    %s309 = sphi 0, %s295
    %s319 = sphi 0, %s321
    %s322 = sphi 0, %s319
    %s323 = sphi 0, %s322
    %s339 = sphi 0, %s323
    %s345 = sphi 0, %s347
    %s348 = sphi 0, %s345
    %s349 = sphi 0, %s348
    %s365 = sphi 0, %s349
    %s371 = sphi 0, %s373
    %s374 = sphi 0, %s371
    %s375 = sphi 0, %s374
    %s391 = sphi 0, %s375
  $region4: #{double_conv.3} parent=0 // loop_header_branch
    %21 = sbr.rel (%p19) target = $region8
  $region5: #{double_conv.3} parent=0 // loop_body
    %s23 = ssub.s32 %s18, 1
    %s24 = ssub.s32 %s18, 2
    %s31 = sadd.s32 1, %s26
    %p32 = scmp.ge.s32.totalorder %s31, 2
    %s33 = scalar_select %p32, 0, %s31
    %s34 = sadd.s32 1, %s25
    %s35 = scalar_select %p32, %s34, %s25
    %p36 = scmp.ge.s32.totalorder %s35, 2
    %s37 = scalar_select %p36, 0, %s35
    %s38 = smul.u32 %s25, 2
    %s39 = sadd.s32 %s38, %s26
    %s40 = smul.u32 %s37, 2
    %s41 = sadd.s32 %s40, %s33
    %s42 = ssub.s32 %s39, %s41
    %p43 = scmp.eq.s32.totalorder %s42, 0
    %s45 = sadd.s32 %s44, 1
    %s46 = scalar_select %p43, %s44, %s45
    %p49 = pneg %p43
    %p50 = scmp.eq.s32.totalorder %s18, 3
    %p51 = por %p49, %p50
    %p52 = scmp.ne.s32.totalorder %s44, %s47
    %p53 = scmp.eq.s32.totalorder %s18, 0
    %p54 = por %p52, %p53
    %p55 = scmp.ne.s32.totalorder %s44, %s47
    %p56 = scmp.eq.s32.totalorder %s23, 3
    %p57 = por %p55, %p56
    %p58 = scmp.ne.s32.totalorder %s47, %s48
    %p59 = scmp.eq.s32.totalorder %s23, 0
    %p60 = por %p58, %p59
    %p61 = scmp.ne.s32.totalorder %s47, %s48
    %p62 = scmp.eq.s32.totalorder %s24, 3
    %p63 = por %p61, %p62
    %p65 = scmp.ne.s32.totalorder %s48, %s64
    %p66 = scmp.eq.s32.totalorder %s24, 0
    %p67 = por %p65, %p66
    %s68 = smul.u32 %s25, 2
    %s69 = sadd.s32 %s68, %s26
    %s70 = smul.u32 %s69, 4
    %s71 = ssub.s32 %s70, 1
    %p72 = scmp.gt.s32.totalorder %s71, 0
    %s73 = scalar_select %p72, %s71, 0
    %s74 = smul.u32 %s37, 2
    %s75 = sadd.s32 %s74, %s33
    %s76 = smul.u32 %s75, 4
    %s77 = ssub.s32 %s76, 1
    %p78 = scmp.gt.s32.totalorder %s77, 0
    %s79 = scalar_select %p78, %s77, 0
    %s80 = ssub.s32 %s73, %s79
    %p81 = scmp.eq.s32.totalorder %s80, 0
    %s83 = sadd.s32 %s82, 1
    %s84 = scalar_select %p81, %s82, %s83
    %p87 = pneg %p81
    %p88 = scmp.eq.s32.totalorder %s18, 3
    %p89 = por %p87, %p88
    %p90 = scmp.ne.s32.totalorder %s82, %s85
    %p91 = scmp.eq.s32.totalorder %s18, 0
    %p92 = por %p90, %p91
    %p93 = scmp.ne.s32.totalorder %s82, %s85
    %p94 = scmp.eq.s32.totalorder %s23, 3
    %p95 = por %p93, %p94
    %p96 = scmp.ne.s32.totalorder %s85, %s86
    %p97 = scmp.eq.s32.totalorder %s23, 0
    %p98 = por %p96, %p97
    %p99 = scmp.ne.s32.totalorder %s85, %s86
    %p100 = scmp.eq.s32.totalorder %s24, 3
    %p101 = por %p99, %p100
    %p103 = scmp.ne.s32.totalorder %s86, %s102
    %p104 = scmp.eq.s32.totalorder %s24, 0
    %p105 = por %p103, %p104
    %s106 = smul.u32 %s25, 2
    %s107 = sadd.s32 %s106, %s26
    %s108 = sadd.s32 %s107, 1
    %s109 = smul.u32 %s108, 4
    %p110 = scmp.lt.s32.totalorder %s109, 15
    %s111 = scalar_select %p110, %s109, 15
    %s112 = smul.u32 %s37, 2
    %s113 = sadd.s32 %s112, %s33
    %s114 = sadd.s32 %s113, 1
    %s115 = smul.u32 %s114, 4
    %p116 = scmp.lt.s32.totalorder %s115, 15
    %s117 = scalar_select %p116, %s115, 15
    %s118 = ssub.s32 %s111, %s117
    %p119 = scmp.eq.s32.totalorder %s118, 0
    %s121 = sadd.s32 %s120, 1
    %s122 = scalar_select %p119, %s120, %s121
    %p125 = pneg %p119
    %p126 = scmp.eq.s32.totalorder %s18, 3
    %p127 = por %p125, %p126
    %p128 = scmp.ne.s32.totalorder %s120, %s123
    %p129 = scmp.eq.s32.totalorder %s18, 0
    %p130 = por %p128, %p129
    %p131 = scmp.ne.s32.totalorder %s120, %s123
    %p132 = scmp.eq.s32.totalorder %s23, 3
    %p133 = por %p131, %p132
    %p134 = scmp.ne.s32.totalorder %s123, %s124
    %p135 = scmp.eq.s32.totalorder %s23, 0
    %p136 = por %p134, %p135
    %p137 = scmp.ne.s32.totalorder %s123, %s124
    %p138 = scmp.eq.s32.totalorder %s24, 3
    %p139 = por %p137, %p138
    %p141 = scmp.ne.s32.totalorder %s124, %s140
    %p142 = scmp.eq.s32.totalorder %s24, 0
    %p143 = por %p141, %p142
    %s144 = smul.u32 %s25, 2
    %s145 = sadd.s32 %s144, %s26
    %s146 = smul.u32 %s37, 2
    %s147 = sadd.s32 %s146, %s33
    %s148 = ssub.s32 %s145, %s147
    %p149 = scmp.eq.s32.totalorder %s148, 0
    %s151 = sadd.s32 %s150, 1
    %s152 = scalar_select %p149, %s150, %s151
    %p155 = pneg %p149
    %p156 = scmp.eq.s32.totalorder %s18, 3
    %p157 = por %p155, %p156
    %p158 = scmp.ne.s32.totalorder %s150, %s153
    %p159 = scmp.eq.s32.totalorder %s18, 0
    %p160 = por %p158, %p159
    %p161 = scmp.ne.s32.totalorder %s150, %s153
    %p162 = scmp.eq.s32.totalorder %s23, 3
    %p163 = por %p161, %p162
    %p164 = scmp.ne.s32.totalorder %s153, %s154
    %p165 = scmp.eq.s32.totalorder %s23, 0
    %p166 = por %p164, %p165
    %p167 = scmp.ne.s32.totalorder %s153, %s154
    %p168 = scmp.eq.s32.totalorder %s24, 3
    %p169 = por %p167, %p168
    %p171 = scmp.ne.s32.totalorder %s154, %s170
    %p172 = scmp.eq.s32.totalorder %s24, 0
    %p173 = por %p171, %p172
    %s174 = smul.u32 %s25, 2
    %s175 = sadd.s32 %s174, %s26
    %s176 = smul.u32 %s175, 4
    %s177 = ssub.s32 %s176, 1
    %p178 = scmp.gt.s32.totalorder %s177, 0
    %s179 = scalar_select %p178, %s177, 0
    %s180 = smul.u32 %s37, 2
    %s181 = sadd.s32 %s180, %s33
    %s182 = smul.u32 %s181, 4
    %s183 = ssub.s32 %s182, 1
    %p184 = scmp.gt.s32.totalorder %s183, 0
    %s185 = scalar_select %p184, %s183, 0
    %s186 = ssub.s32 %s179, %s185
    %p187 = scmp.eq.s32.totalorder %s186, 0
    %s189 = sadd.s32 %s188, 1
    %s190 = scalar_select %p187, %s188, %s189
    %p193 = pneg %p187
    %p194 = scmp.eq.s32.totalorder %s18, 3
    %p195 = por %p193, %p194
    %p196 = scmp.ne.s32.totalorder %s188, %s191
    %p197 = scmp.eq.s32.totalorder %s18, 0
    %p198 = por %p196, %p197
    %p199 = scmp.ne.s32.totalorder %s188, %s191
    %p200 = scmp.eq.s32.totalorder %s23, 3
    %p201 = por %p199, %p200
    %p202 = scmp.ne.s32.totalorder %s191, %s192
    %p203 = scmp.eq.s32.totalorder %s23, 0
    %p204 = por %p202, %p203
    %p205 = scmp.ne.s32.totalorder %s191, %s192
    %p206 = scmp.eq.s32.totalorder %s24, 3
    %p207 = por %p205, %p206
    %p209 = scmp.ne.s32.totalorder %s192, %s208
    %p210 = scmp.eq.s32.totalorder %s24, 0
    %p211 = por %p209, %p210
    %s212 = smul.u32 %s25, 2
    %s213 = sadd.s32 %s212, %s26
    %s214 = sadd.s32 %s213, 1
    %s215 = smul.u32 %s214, 4
    %p216 = scmp.lt.s32.totalorder %s215, 15
    %s217 = scalar_select %p216, %s215, 15
    %s218 = smul.u32 %s37, 2
    %s219 = sadd.s32 %s218, %s33
    %s220 = sadd.s32 %s219, 1
    %s221 = smul.u32 %s220, 4
    %p222 = scmp.lt.s32.totalorder %s221, 15
    %s223 = scalar_select %p222, %s221, 15
    %s224 = ssub.s32 %s217, %s223
    %p225 = scmp.eq.s32.totalorder %s224, 0
    %s227 = sadd.s32 %s226, 1
    %s228 = scalar_select %p225, %s226, %s227
    %p231 = pneg %p225
    %p232 = scmp.eq.s32.totalorder %s18, 3
    %p233 = por %p231, %p232
    %p234 = scmp.ne.s32.totalorder %s226, %s229
    %p235 = scmp.eq.s32.totalorder %s18, 0
    %p236 = por %p234, %p235
    %p237 = scmp.ne.s32.totalorder %s226, %s229
    %p238 = scmp.eq.s32.totalorder %s23, 3
    %p239 = por %p237, %p238
    %p240 = scmp.ne.s32.totalorder %s229, %s230
    %p241 = scmp.eq.s32.totalorder %s23, 0
    %p242 = por %p240, %p241
    %p243 = scmp.ne.s32.totalorder %s229, %s230
    %p244 = scmp.eq.s32.totalorder %s24, 3
    %p245 = por %p243, %p244
    %p247 = scmp.ne.s32.totalorder %s230, %s246
    %p248 = scmp.eq.s32.totalorder %s24, 0
    %p249 = por %p247, %p248
    %s251 = sadd.s32 %s250, 1
    %p254 = scmp.eq.s32.totalorder %s18, 3
    %p255 = scmp.ne.s32.totalorder %s250, %s252
    %p256 = scmp.eq.s32.totalorder %s18, 0
    %p257 = por %p255, %p256
    %p258 = scmp.ne.s32.totalorder %s250, %s252
    %p259 = scmp.eq.s32.totalorder %s23, 3
    %p260 = por %p258, %p259
    %p261 = scmp.ne.s32.totalorder %s252, %s253
    %p262 = scmp.eq.s32.totalorder %s23, 0
    %p263 = por %p261, %p262
    %p264 = scmp.ne.s32.totalorder %s252, %s253
    %p265 = scmp.eq.s32.totalorder %s24, 3
    %p266 = por %p264, %p265
    %p268 = scmp.ne.s32.totalorder %s253, %s267
    %p269 = scmp.eq.s32.totalorder %s24, 0
    %p270 = por %p268, %p269
    %s272 = sadd.s32 %s271, 1
    %p275 = scmp.eq.s32.totalorder %s18, 3
    %p276 = scmp.ne.s32.totalorder %s271, %s273
    %p277 = scmp.eq.s32.totalorder %s18, 0
    %p278 = por %p276, %p277
    %p279 = scmp.ne.s32.totalorder %s271, %s273
    %p280 = scmp.eq.s32.totalorder %s23, 3
    %p281 = por %p279, %p280
    %p282 = scmp.ne.s32.totalorder %s273, %s274
    %p283 = scmp.eq.s32.totalorder %s23, 0
    %p284 = por %p282, %p283
    %p285 = scmp.ne.s32.totalorder %s273, %s274
    %p286 = scmp.eq.s32.totalorder %s24, 3
    %p287 = por %p285, %p286
    %p289 = scmp.ne.s32.totalorder %s274, %s288
    %p290 = scmp.eq.s32.totalorder %s24, 0
    %p291 = por %p289, %p290
    %s293 = sadd.s32 %s292, 1
    %p296 = scmp.eq.s32.totalorder %s18, 3
    %p297 = scmp.ne.s32.totalorder %s292, %s294
    %p298 = scmp.eq.s32.totalorder %s18, 0
    %p299 = por %p297, %p298
    %p300 = scmp.ne.s32.totalorder %s292, %s294
    %p301 = scmp.eq.s32.totalorder %s23, 3
    %p302 = por %p300, %p301
    %p303 = scmp.ne.s32.totalorder %s294, %s295
    %p304 = scmp.eq.s32.totalorder %s23, 0
    %p305 = por %p303, %p304
    %p306 = scmp.ne.s32.totalorder %s294, %s295
    %p307 = scmp.eq.s32.totalorder %s24, 3
    %p308 = por %p306, %p307
    %p310 = scmp.ne.s32.totalorder %s295, %s309
    %p311 = scmp.eq.s32.totalorder %s24, 0
    %p312 = por %p310, %p311
    %s313 = smul.u32 %s25, 2
    %s314 = sadd.s32 %s313, %s26
    %s315 = smul.u32 %s37, 2
    %s316 = sadd.s32 %s315, %s33
    %s317 = ssub.s32 %s314, %s316
    %p318 = scmp.eq.s32.totalorder %s317, 0
    %s320 = sadd.s32 %s319, 1
    %s321 = scalar_select %p318, %s319, %s320
    %p324 = pneg %p318
    %p325 = scmp.eq.s32.totalorder %s18, 3
    %p326 = por %p324, %p325
    %p327 = scmp.ne.s32.totalorder %s319, %s322
    %p328 = scmp.eq.s32.totalorder %s18, 0
    %p329 = por %p327, %p328
    %p330 = scmp.ne.s32.totalorder %s319, %s322
    %p331 = scmp.eq.s32.totalorder %s23, 3
    %p332 = por %p330, %p331
    %p333 = scmp.ne.s32.totalorder %s322, %s323
    %p334 = scmp.eq.s32.totalorder %s23, 0
    %p335 = por %p333, %p334
    %p336 = scmp.ne.s32.totalorder %s322, %s323
    %p337 = scmp.eq.s32.totalorder %s24, 3
    %p338 = por %p336, %p337
    %p340 = scmp.ne.s32.totalorder %s323, %s339
    %p341 = scmp.eq.s32.totalorder %s24, 0
    %p342 = por %p340, %p341
    %s343 = ssub.s32 %s25, %s37
    %p344 = scmp.eq.s32.totalorder %s343, 0
    %s346 = sadd.s32 %s345, 1
    %s347 = scalar_select %p344, %s345, %s346
    %p350 = pneg %p344
    %p351 = scmp.eq.s32.totalorder %s18, 3
    %p352 = por %p350, %p351
    %p353 = scmp.ne.s32.totalorder %s345, %s348
    %p354 = scmp.eq.s32.totalorder %s18, 0
    %p355 = por %p353, %p354
    %p356 = scmp.ne.s32.totalorder %s345, %s348
    %p357 = scmp.eq.s32.totalorder %s23, 3
    %p358 = por %p356, %p357
    %p359 = scmp.ne.s32.totalorder %s348, %s349
    %p360 = scmp.eq.s32.totalorder %s23, 0
    %p361 = por %p359, %p360
    %p362 = scmp.ne.s32.totalorder %s348, %s349
    %p363 = scmp.eq.s32.totalorder %s24, 3
    %p364 = por %p362, %p363
    %p366 = scmp.ne.s32.totalorder %s349, %s365
    %p367 = scmp.eq.s32.totalorder %s24, 0
    %p368 = por %p366, %p367
    %s369 = ssub.s32 %s25, %s37
    %p370 = scmp.eq.s32.totalorder %s369, 0
    %s372 = sadd.s32 %s371, 1
    %s373 = scalar_select %p370, %s371, %s372
    %p376 = pneg %p370
    %p377 = scmp.eq.s32.totalorder %s18, 3
    %p378 = por %p376, %p377
    %p379 = scmp.ne.s32.totalorder %s371, %s374
    %p380 = scmp.eq.s32.totalorder %s18, 0
    %p381 = por %p379, %p380
    %p382 = scmp.ne.s32.totalorder %s371, %s374
    %p383 = scmp.eq.s32.totalorder %s23, 3
    %p384 = por %p382, %p383
    %p385 = scmp.ne.s32.totalorder %s374, %s375
    %p386 = scmp.eq.s32.totalorder %s23, 0
    %p387 = por %p385, %p386
    %p388 = scmp.ne.s32.totalorder %s374, %s375
    %p389 = scmp.eq.s32.totalorder %s24, 3
    %p390 = por %p388, %p389
    %p392 = scmp.ne.s32.totalorder %s375, %s391
    %p393 = scmp.eq.s32.totalorder %s24, 0
    %p394 = por %p392, %p393
    %p395 = scmp.le.s32.totalorder 1, %s18
    %p396 = scmp.lt.s32.totalorder %s18, 5
    %p397 = pnand %p395, %p396
    %p398 = pneg %p397
    // Predicated region
    $region9: #{double_conv.3} parent=5 // pred_check
      _
    $region10: #{double_conv.3} parent=5 // pred_check_branch
      %400 = sbr.rel (%p397) target = $region12
    $region11: #{double_conv.3} parent=5 // pred_region
      %s401 = ssub.s32 %s18, 1
      // Predicated region
      $region13: #{double_conv.3} parent=11 // pred_check
        %p402 = pneg %p263
      $region14: #{double_conv.3} parent=11 // pred_check_branch
        %404 = sbr.rel (%p402) target = $region16
      $region15: #{double_conv.3} parent=11 // pred_region
        _
      $region16: #{double_conv.3} parent=11 // pred_fallthru
        _
      // Predicated region
      $region17: #{double_conv.3} parent=11 // pred_check
        %p405 = pneg %p284
      $region18: #{double_conv.3} parent=11 // pred_check_branch
        %407 = sbr.rel (%p405) target = $region20
      $region19: #{double_conv.3} parent=11 // pred_region
        _
      $region20: #{double_conv.3} parent=11 // pred_fallthru
        _
      // Predicated region
      $region21: #{double_conv.3} parent=11 // pred_check
        %p408 = pneg %p305
      $region22: #{double_conv.3} parent=11 // pred_check_branch
        %410 = sbr.rel (%p408) target = $region24
      $region23: #{double_conv.3} parent=11 // pred_region
        _
      $region24: #{double_conv.3} parent=11 // pred_fallthru
        _
    $region12: #{double_conv.3} parent=5 // pred_fallthru
      _
    %p411 = scmp.lt.s32.totalorder %s18, 4
    // Predicated region
    $region25: #{double_conv.3} parent=5 // pred_check
      %p412 = pneg %p411
    $region26: #{double_conv.3} parent=5 // pred_check_branch
      %414 = sbr.rel (%p412) target = $region28
    $region27: #{double_conv.3} parent=5 // pred_region
      // Predicated region
      $region29: #{double_conv.3} parent=27 // pred_check
        %p415 = pneg %p54
      $region30: #{double_conv.3} parent=27 // pred_check_branch
        %417 = sbr.rel (%p415) target = $region32
      $region31: #{double_conv.3} parent=27 // pred_region
        %s418 = smul.u32 %s25, 2
        %s419 = sadd.s32 %s418, %s26
        %s420 = smul.u32 4, %s419
        %p421 = scmp.lt.s32.totalorder %s420, 15
        %s422 = scalar_select %p421, %s420, 15
        %s423 = smul.addr %s422, 2
        %s424 = scalar_lea.vmem %s0, %s423
        %s425 = smul.u32 %s25, 2
        %s426 = sadd.s32 %s425, %s26
        %s427 = smul.u32 4, %s426
      $region32: #{double_conv.3} parent=27 // pred_fallthru
        _
      // Predicated region
      $region33: #{double_conv.3} parent=27 // pred_check
        %p428 = pneg %p92
      $region34: #{double_conv.3} parent=27 // pred_check_branch
        %430 = sbr.rel (%p428) target = $region36
      $region35: #{double_conv.3} parent=27 // pred_region
        %s431 = smul.u32 %s25, 2
        %s432 = sadd.s32 %s431, %s26
        %s433 = smul.u32 %s432, 4
        %s434 = ssub.s32 %s433, 1
        %p435 = scmp.gt.s32.totalorder %s434, 0
        %s436 = scalar_select %p435, %s434, 0
        %p437 = scmp.lt.s32.totalorder %s436, 15
        %s438 = scalar_select %p437, %s436, 15
        %s439 = smul.addr %s438, 2
        %s440 = scalar_lea.vmem %s1, %s439
        %s441 = smul.u32 %s25, 2
        %s442 = sadd.s32 %s441, %s26
        %s443 = smul.u32 %s442, 4
        %s444 = ssub.s32 %s443, 1
        %p445 = scmp.gt.s32.totalorder %s444, 0
        %s446 = scalar_select %p445, %s444, 0
      $region36: #{double_conv.3} parent=27 // pred_fallthru
        _
      // Predicated region
      $region37: #{double_conv.3} parent=27 // pred_check
        %p447 = pneg %p130
      $region38: #{double_conv.3} parent=27 // pred_check_branch
        %449 = sbr.rel (%p447) target = $region40
      $region39: #{double_conv.3} parent=27 // pred_region
        %s450 = smul.u32 %s25, 2
        %s451 = sadd.s32 %s450, %s26
        %s452 = sadd.s32 %s451, 1
        %s453 = smul.u32 %s452, 4
        %p454 = scmp.lt.s32.totalorder %s453, 15
        %s455 = scalar_select %p454, %s453, 15
        %p456 = scmp.lt.s32.totalorder %s455, 15
        %s457 = scalar_select %p456, %s455, 15
        %s458 = smul.addr %s457, 2
        %s459 = scalar_lea.vmem %s2, %s458
        %s460 = smul.u32 %s25, 2
        %s461 = sadd.s32 %s460, %s26
        %s462 = sadd.s32 %s461, 1
        %s463 = smul.u32 %s462, 4
        %p464 = scmp.lt.s32.totalorder %s463, 15
        %s465 = scalar_select %p464, %s463, 15
      $region40: #{double_conv.3} parent=27 // pred_fallthru
        _
      // Predicated region
      $region41: #{double_conv.3} parent=27 // pred_check
        %p466 = pneg %p160
      $region42: #{double_conv.3} parent=27 // pred_check_branch
        %468 = sbr.rel (%p466) target = $region44
      $region43: #{double_conv.3} parent=27 // pred_region
        %s469 = smul.u32 %s25, 2
        %s470 = sadd.s32 %s469, %s26
        %s471 = smul.u32 4, %s470
        %p472 = scmp.lt.s32.totalorder %s471, 15
        %s473 = scalar_select %p472, %s471, 15
        %s474 = scalar_lea.vmem %s3, %s473
        %s475 = smul.u32 %s25, 2
        %s476 = sadd.s32 %s475, %s26
        %s477 = smul.u32 4, %s476
      $region44: #{double_conv.3} parent=27 // pred_fallthru
        _
      // Predicated region
      $region45: #{double_conv.3} parent=27 // pred_check
        %p478 = pneg %p198
      $region46: #{double_conv.3} parent=27 // pred_check_branch
        %480 = sbr.rel (%p478) target = $region48
      $region47: #{double_conv.3} parent=27 // pred_region
        %s481 = smul.u32 %s25, 2
        %s482 = sadd.s32 %s481, %s26
        %s483 = smul.u32 %s482, 4
        %s484 = ssub.s32 %s483, 1
        %p485 = scmp.gt.s32.totalorder %s484, 0
        %s486 = scalar_select %p485, %s484, 0
        %p487 = scmp.lt.s32.totalorder %s486, 15
        %s488 = scalar_select %p487, %s486, 15
        %s489 = scalar_lea.vmem %s4, %s488
        %s490 = smul.u32 %s25, 2
        %s491 = sadd.s32 %s490, %s26
        %s492 = smul.u32 %s491, 4
        %s493 = ssub.s32 %s492, 1
        %p494 = scmp.gt.s32.totalorder %s493, 0
        %s495 = scalar_select %p494, %s493, 0
      $region48: #{double_conv.3} parent=27 // pred_fallthru
        _
      // Predicated region
      $region49: #{double_conv.3} parent=27 // pred_check
        %p496 = pneg %p236
      $region50: #{double_conv.3} parent=27 // pred_check_branch
        %498 = sbr.rel (%p496) target = $region52
      $region51: #{double_conv.3} parent=27 // pred_region
        %s499 = smul.u32 %s25, 2
        %s500 = sadd.s32 %s499, %s26
        %s501 = sadd.s32 %s500, 1
        %s502 = smul.u32 %s501, 4
        %p503 = scmp.lt.s32.totalorder %s502, 15
        %s504 = scalar_select %p503, %s502, 15
        %p505 = scmp.lt.s32.totalorder %s504, 15
        %s506 = scalar_select %p505, %s504, 15
        %s507 = scalar_lea.vmem %s5, %s506
        %s508 = smul.u32 %s25, 2
        %s509 = sadd.s32 %s508, %s26
        %s510 = sadd.s32 %s509, 1
        %s511 = smul.u32 %s510, 4
        %p512 = scmp.lt.s32.totalorder %s511, 15
        %s513 = scalar_select %p512, %s511, 15
      $region52: #{double_conv.3} parent=27 // pred_fallthru
        _
    $region28: #{double_conv.3} parent=5 // pred_fallthru
      _
    %p514 = scmp.le.s32.totalorder 1, %s18
    %p515 = scmp.lt.s32.totalorder %s18, 5
    %p516 = pnand %p514, %p515
    %p517 = pneg %p516
    // Predicated region
    $region53: #{double_conv.3} parent=5 // pred_check
      _
    $region54: #{double_conv.3} parent=5 // pred_check_branch
      %519 = sbr.rel (%p516) target = $region56
    $region55: #{double_conv.3} parent=5 // pred_region
      %s520 = ssub.s32 %s18, 1
      %s521 = smul.u32 %s27, 2
      %s522 = sadd.s32 %s521, %s28
      %s523 = smul.u32 4, %s522
      %p524 = scmp.lt.s32.totalorder %s523, 15
      %s525 = scalar_select %p524, %s523, 15
      %s526 = smul.addr %s525, 2
      %s527 = scalar_lea.vmem %s0, %s526
      %p528 = pneg %p60
      %p529 = pneg %p57
      %s530 = smul.u32 %s27, 2
      %s531 = sadd.s32 %s530, %s28
      %s532 = smul.u32 %s531, 4
      %s533 = ssub.s32 %s532, 1
      %p534 = scmp.gt.s32.totalorder %s533, 0
      %s535 = scalar_select %p534, %s533, 0
      %p536 = scmp.lt.s32.totalorder %s535, 15
      %s537 = scalar_select %p536, %s535, 15
      %s538 = smul.addr %s537, 2
      %s539 = scalar_lea.vmem %s1, %s538
      %p540 = pneg %p98
      %p541 = pneg %p95
      %s542 = smul.u32 %s27, 2
      %s543 = sadd.s32 %s542, %s28
      %s544 = sadd.s32 %s543, 1
      %s545 = smul.u32 %s544, 4
      %p546 = scmp.lt.s32.totalorder %s545, 15
      %s547 = scalar_select %p546, %s545, 15
      %p548 = scmp.lt.s32.totalorder %s547, 15
      %s549 = scalar_select %p548, %s547, 15
      %s550 = smul.addr %s549, 2
      %s551 = scalar_lea.vmem %s2, %s550
      %p552 = pneg %p136
      %p553 = pneg %p133
      %s554 = smul.u32 %s27, 2
      %s555 = sadd.s32 %s554, %s28
      %s556 = smul.u32 4, %s555
      %p557 = scmp.lt.s32.totalorder %s556, 15
      %s558 = scalar_select %p557, %s556, 15
      %s559 = scalar_lea.vmem %s3, %s558
      %p560 = pneg %p166
      %p561 = pneg %p163
      %s562 = smul.u32 %s27, 2
      %s563 = sadd.s32 %s562, %s28
      %s564 = smul.u32 %s563, 4
      %s565 = ssub.s32 %s564, 1
      %p566 = scmp.gt.s32.totalorder %s565, 0
      %s567 = scalar_select %p566, %s565, 0
      %p568 = scmp.lt.s32.totalorder %s567, 15
      %s569 = scalar_select %p568, %s567, 15
      %s570 = scalar_lea.vmem %s4, %s569
      %p571 = pneg %p204
      %p572 = pneg %p201
      %s573 = smul.u32 %s27, 2
      %s574 = sadd.s32 %s573, %s28
      %s575 = sadd.s32 %s574, 1
      %s576 = smul.u32 %s575, 4
      %p577 = scmp.lt.s32.totalorder %s576, 15
      %s578 = scalar_select %p577, %s576, 15
      %p579 = scmp.lt.s32.totalorder %s578, 15
      %s580 = scalar_select %p579, %s578, 15
      %s581 = scalar_lea.vmem %s5, %s580
      %p582 = pneg %p242
      %p583 = pneg %p239
      %p584 = pneg %p263
      %p585 = pneg %p260
      %p586 = pneg %p284
      %p587 = pneg %p281
      %p588 = pneg %p305
      %p589 = pneg %p302
      %p590 = pneg %p335
      %p591 = pneg %p332
      %s592 = smul.u32 %s27, 2
      %s593 = sadd.s32 %s592, %s28
      %s594 = smul.u32 4, %s593
      %p595 = scmp.lt.s32.totalorder %s594, 15
      %s596 = scalar_select %p595, %s594, 15
      %s597 = smul.addr %s596, 4
      %s598 = scalar_lea.vmem %s9, %s597
      %p599 = pneg %p361
      %p600 = pneg %p358
      %p601 = scmp.lt.s32.totalorder %s27, 1
      %s602 = scalar_select %p601, %s27, 1
      %s603 = smul.addr %s602, 8
      %s604 = scalar_lea.vmem %s10, %s603
      %p605 = pneg %p387
      %p606 = pneg %p384
      %p607 = scmp.lt.s32.totalorder %s27, 1
      %s608 = scalar_select %p607, %s27, 1
      %s609 = smul.addr %s608, 8
      %s610 = scalar_lea.vmem %s11, %s609
      %s611 = smul.u32 %s27, 2
      %s612 = sadd.s32 %s611, %s28
      %s613 = smul.u32 4, %s612
      %p614 = scmp.lt.s32.totalorder %s613, 15
      %s615 = scalar_select %p614, %s613, 15
      %s616 = smul.addr %s615, 2
      %s617 = scalar_lea.vmem %s0, %s616
      %s618 = smul.u32 %s27, 2
      %s619 = sadd.s32 %s618, %s28
      %s620 = smul.u32 4, %s619
      %s621 = smul.u32 %s27, 2
      %s622 = sadd.s32 %s621, %s28
      %s623 = smul.u32 %s622, 4
      %s624 = ssub.s32 %s623, 1
      %p625 = scmp.gt.s32.totalorder %s624, 0
      %s626 = scalar_select %p625, %s624, 0
      %p627 = scmp.lt.s32.totalorder %s626, 15
      %s628 = scalar_select %p627, %s626, 15
      %s629 = smul.addr %s628, 2
      %s630 = scalar_lea.vmem %s1, %s629
      %s631 = smul.u32 %s27, 2
      %s632 = sadd.s32 %s631, %s28
      %s633 = smul.u32 %s632, 4
      %s634 = ssub.s32 %s633, 1
      %p635 = scmp.gt.s32.totalorder %s634, 0
      %s636 = scalar_select %p635, %s634, 0
      %s637 = smul.u32 %s27, 2
      %s638 = sadd.s32 %s637, %s28
      %s639 = sadd.s32 %s638, 1
      %s640 = smul.u32 %s639, 4
      %p641 = scmp.lt.s32.totalorder %s640, 15
      %s642 = scalar_select %p641, %s640, 15
      %p643 = scmp.lt.s32.totalorder %s642, 15
      %s644 = scalar_select %p643, %s642, 15
      %s645 = smul.addr %s644, 2
      %s646 = scalar_lea.vmem %s2, %s645
      %s647 = smul.u32 %s27, 2
      %s648 = sadd.s32 %s647, %s28
      %s649 = sadd.s32 %s648, 1
      %s650 = smul.u32 %s649, 4
      %p651 = scmp.lt.s32.totalorder %s650, 15
      %s652 = scalar_select %p651, %s650, 15
      %s653 = smul.u32 %s27, 2
      %s654 = sadd.s32 %s653, %s28
      %s655 = smul.u32 4, %s654
      %p656 = scmp.lt.s32.totalorder %s655, 15
      %s657 = scalar_select %p656, %s655, 15
      %s658 = scalar_lea.vmem %s3, %s657
      %s659 = smul.u32 %s27, 2
      %s660 = sadd.s32 %s659, %s28
      %s661 = smul.u32 4, %s660
      %s662 = smul.u32 %s27, 2
      %s663 = sadd.s32 %s662, %s28
      %s664 = smul.u32 %s663, 4
      %s665 = ssub.s32 %s664, 1
      %p666 = scmp.gt.s32.totalorder %s665, 0
      %s667 = scalar_select %p666, %s665, 0
      %p668 = scmp.lt.s32.totalorder %s667, 15
      %s669 = scalar_select %p668, %s667, 15
      %s670 = scalar_lea.vmem %s4, %s669
      %s671 = smul.u32 %s27, 2
      %s672 = sadd.s32 %s671, %s28
      %s673 = smul.u32 %s672, 4
      %s674 = ssub.s32 %s673, 1
      %p675 = scmp.gt.s32.totalorder %s674, 0
      %s676 = scalar_select %p675, %s674, 0
      %s677 = smul.u32 %s27, 2
      %s678 = sadd.s32 %s677, %s28
      %s679 = sadd.s32 %s678, 1
      %s680 = smul.u32 %s679, 4
      %p681 = scmp.lt.s32.totalorder %s680, 15
      %s682 = scalar_select %p681, %s680, 15
      %p683 = scmp.lt.s32.totalorder %s682, 15
      %s684 = scalar_select %p683, %s682, 15
      %s685 = scalar_lea.vmem %s5, %s684
      %s686 = smul.u32 %s27, 2
      %s687 = sadd.s32 %s686, %s28
      %s688 = sadd.s32 %s687, 1
      %s689 = smul.u32 %s688, 4
      %p690 = scmp.lt.s32.totalorder %s689, 15
      %s691 = scalar_select %p690, %s689, 15
      %s692 = smul.u32 %s27, 2
      %s693 = sadd.s32 %s692, %s28
      %s694 = smul.u32 4, %s693
      %p695 = scmp.lt.s32.totalorder %s694, 15
      %s696 = scalar_select %p695, %s694, 15
      %s697 = smul.addr %s696, 4
      %s698 = scalar_lea.vmem %s9, %s697
      %s699 = smul.u32 %s27, 2
      %s700 = sadd.s32 %s699, %s28
      %s701 = smul.u32 4, %s700
      %p702 = scmp.lt.s32.totalorder %s27, 1
      %s703 = scalar_select %p702, %s27, 1
      %s704 = smul.addr %s703, 8
      %s705 = scalar_lea.vmem %s10, %s704
      %p706 = scmp.lt.s32.totalorder %s27, 1
      %s707 = scalar_select %p706, %s27, 1
      %s708 = smul.addr %s707, 8
      %s709 = scalar_lea.vmem %s11, %s708
      %p711 = scmp.eq.s32.totalorder %s28, 0
      // Predicated region
      $region57: #{double_conv.3} parent=55 // pred_check
        %p712 = pneg %p711
      $region58: #{double_conv.3} parent=55 // pred_check_branch
        %714 = sbr.rel (%p712) target = $region60
      $region59: #{double_conv.3} parent=55 // pred_region
        %vm715 = vcmask 7168
        %716 = vst.msk [vmem:[%s705] sm:$0xff] %vm715, 0.0
        %717 = vst.msk [vmem:[%s709] sm:$0xff] %vm715, 0.0
      $region60: #{double_conv.3} parent=55 // pred_fallthru
        _
      %v718 = vld [vmem:[%s630] sm:$0x3]
      %719 = vst [vmem:[#allocation2] sm:$0x3] %v718
      %v720 = vld [vmem:[%s617] sm:$0xff]
      %721 = vst [vmem:[#allocation2 + $0x2] sm:$0xff] %v720
      %v722 = vld [vmem:[%s646] sm:$0x3]
      %723 = vst [vmem:[#allocation2 + $0xa] sm:$0x3] %v722
      %v724 = vld [vmem:[%s658] sm:$0xf]
      %v727 = vunpack.c.l.s4 1966171168
      %v728 = vunpack.c.0.s8 %v727
      %v729 = vlaneseq
      %v730 = vshrl.u32 %v729, 7
      %v731 = vsub.s32 %v728, %v730
      %v732 = vrot.slane %v724, %v731
      %v733 = vcombine.high %v732, %v732
      %v735 = vunpack.c.l.s4 1966171168
      %v736 = vunpack.c.0.s8 %v735
      %v737 = vlaneseq
      %v738 = vshrl.u32 %v737, 7
      %v739 = vsub.s32 %v736, %v738
      %v740 = vrot.slane %v732, %v739
      %v742 = vunpack.c.l.s4 1966171168
      %v743 = vunpack.c.0.s8 %v742
      %v744 = vlaneseq
      %v745 = vshrl.u32 %v744, 7
      %v746 = vsub.s32 %v743, %v745
      %v747 = vrot.slane %v733, %v746
      %v748 = vcombine.high %v740, %v740
      %v749 = vcombine.high %v747, %v747
      %v754 = vunpack.c.l.bf16 %v740
      %v755 = vunpack.c.l.bf16 %v747
      %v756 = vunpack.c.l.bf16 %v748
      %v757 = vunpack.c.l.bf16 %v749
      %v758 = vld [vmem:[#allocation2] sm:$0xff]
      %v759 = vld [vmem:[#allocation2 + $0x8] sm:$0x3]
      %v762 = vcombine.high %v758, %v758
      %v764 = vunpack.c.l.s4 1983009808
      %v765 = vunpack.c.0.s8 %v764
      %v766 = vlaneseq
      %v767 = vshrl.u32 %v766, 7
      %v768 = vsub.s32 %v765, %v767
      %v769 = vrot.slane %v758, %v768
      %v771 = vunpack.c.l.s4 1983009808
      %v772 = vunpack.c.0.s8 %v771
      %v773 = vlaneseq
      %v774 = vshrl.u32 %v773, 7
      %v775 = vsub.s32 %v772, %v774
      %v776 = vrot.slane %v762, %v775
      %v778 = vunpack.c.l.s4 1983009808
      %v779 = vunpack.c.0.s8 %v778
      %v780 = vlaneseq
      %v781 = vshrl.u32 %v780, 7
      %v782 = vsub.s32 %v779, %v781
      %v783 = vrot.slane %v759, %v782
      %784 = vrot.lane.b32.xlu0 %v769, 19
      %v785 = vpop.permute.xlu0 %784
      %786 = vrot.lane.b32.xlu0 %v776, 19
      %v787 = vpop.permute.xlu0 %786
      %788 = vrot.lane.b32.xlu0 %v783, 19
      %v789 = vpop.permute.xlu0 %788
      %v790 = vrot.slane %v785, 4
      %v791 = vrot.slane %v787, 4
      %v792 = vrot.slane %v789, 4
      %vm793 = vcmask 1043456
      %v794 = vsel %vm793, %v790, %v791
      %vm795 = vcmask 154624
      %v796 = vsel %vm795, %v785, %v794
      %v797 = vsel %vm793, %v791, %v792
      %v798 = vsel %vm795, %v787, %v797
      %801 = vst [vmem:[#allocation3] sm:$0x33] %v796
      %802 = vst [vmem:[#allocation3 + $0x8] sm:$0x33] %v798
      %v803 = vld [vmem:[#allocation2] sm:$0xff]
      %v804 = vld [vmem:[#allocation2 + $0x8] sm:$0x3]
      %v807 = vcombine.low %v803, %v803
      %v809 = vunpack.c.l.s4 1983009808
      %v810 = vunpack.c.0.s8 %v809
      %v811 = vlaneseq
      %v812 = vshrl.u32 %v811, 7
      %v813 = vsub.s32 %v810, %v812
      %v814 = vrot.slane %v807, %v813
      %v816 = vunpack.c.l.s4 1983009808
      %v817 = vunpack.c.0.s8 %v816
      %v818 = vlaneseq
      %v819 = vshrl.u32 %v818, 7
      %v820 = vsub.s32 %v817, %v819
      %v821 = vrot.slane %v803, %v820
      %v822 = vcombine.low %v804, %v804
      %v824 = vunpack.c.l.s4 1983009808
      %v825 = vunpack.c.0.s8 %v824
      %v826 = vlaneseq
      %v827 = vshrl.u32 %v826, 7
      %v828 = vsub.s32 %v825, %v827
      %v829 = vrot.slane %v822, %v828
      %830 = vrot.lane.b32.xlu0 %v814, 18
      %v831 = vpop.permute.xlu0 %830
      %832 = vrot.lane.b32.xlu0 %v821, 18
      %v833 = vpop.permute.xlu0 %832
      %834 = vrot.lane.b32.xlu0 %v829, 18
      %v835 = vpop.permute.xlu0 %834
      %v836 = vrot.slane %v831, 4
      %v837 = vrot.slane %v833, 4
      %v838 = vrot.slane %v835, 4
      %v839 = vsel %vm793, %v836, %v837
      %vm840 = vcmask 146432
      %v841 = vsel %vm840, %v831, %v839
      %v842 = vsel %vm793, %v837, %v838
      %v843 = vsel %vm840, %v833, %v842
      %846 = vst [vmem:[#allocation3] sm:$0xcc] %v841
      %847 = vst [vmem:[#allocation3 + $0x8] sm:$0xcc] %v843
      %v848 = vld [vmem:[#allocation2] sm:$0xff]
      %v849 = vld [vmem:[#allocation2 + $0x8] sm:$0x3]
      %v852 = vcombine.high %v848, %v848
      %v854 = vunpack.c.l.s4 1983009808
      %v855 = vunpack.c.0.s8 %v854
      %v856 = vlaneseq
      %v857 = vshrl.u32 %v856, 7
      %v858 = vsub.s32 %v855, %v857
      %v859 = vrot.slane %v848, %v858
      %v861 = vunpack.c.l.s4 1983009808
      %v862 = vunpack.c.0.s8 %v861
      %v863 = vlaneseq
      %v864 = vshrl.u32 %v863, 7
      %v865 = vsub.s32 %v862, %v864
      %v866 = vrot.slane %v852, %v865
      %v868 = vunpack.c.l.s4 1983009808
      %v869 = vunpack.c.0.s8 %v868
      %v870 = vlaneseq
      %v871 = vshrl.u32 %v870, 7
      %v872 = vsub.s32 %v869, %v871
      %v873 = vrot.slane %v849, %v872
      %874 = vrot.lane.b32.xlu0 %v859, 17
      %v875 = vpop.permute.xlu0 %874
      %876 = vrot.lane.b32.xlu0 %v866, 17
      %v877 = vpop.permute.xlu0 %876
      %878 = vrot.lane.b32.xlu0 %v873, 17
      %v879 = vpop.permute.xlu0 %878
      %v880 = vrot.slane %v875, 4
      %v881 = vrot.slane %v877, 4
      %v882 = vrot.slane %v879, 4
      %v883 = vsel %vm793, %v880, %v881
      %vm884 = vcmask 138240
      %v885 = vsel %vm884, %v875, %v883
      %v886 = vsel %vm793, %v881, %v882
      %v887 = vsel %vm884, %v877, %v886
      %890 = vst [vmem:[#allocation3 + $0x10] sm:$0x33] %v885
      %891 = vst [vmem:[#allocation3 + $0x18] sm:$0x33] %v887
      %v892 = vld [vmem:[#allocation2] sm:$0xff]
      %v893 = vld [vmem:[#allocation2 + $0x8] sm:$0x3]
      %v896 = vcombine.low %v892, %v892
      %v898 = vunpack.c.l.s4 1983009808
      %v899 = vunpack.c.0.s8 %v898
      %v900 = vlaneseq
      %v901 = vshrl.u32 %v900, 7
      %v902 = vsub.s32 %v899, %v901
      %v903 = vrot.slane %v896, %v902
      %v905 = vunpack.c.l.s4 1983009808
      %v906 = vunpack.c.0.s8 %v905
      %v907 = vlaneseq
      %v908 = vshrl.u32 %v907, 7
      %v909 = vsub.s32 %v906, %v908
      %v910 = vrot.slane %v892, %v909
      %v911 = vcombine.low %v893, %v893
      %v913 = vunpack.c.l.s4 1983009808
      %v914 = vunpack.c.0.s8 %v913
      %v915 = vlaneseq
      %v916 = vshrl.u32 %v915, 7
      %v917 = vsub.s32 %v914, %v916
      %v918 = vrot.slane %v911, %v917
      %919 = vrot.lane.b32.xlu0 %v903, 1
      %v920 = vpop.permute.xlu0 %919
      %921 = vrot.lane.b32.xlu0 %v910, 1
      %v922 = vpop.permute.xlu0 %921
      %923 = vrot.lane.b32.xlu0 %v918, 1
      %v924 = vpop.permute.xlu0 %923
      %v925 = vrot.slane %v920, 4
      %v926 = vrot.slane %v922, 4
      %v927 = vrot.slane %v924, 4
      %v928 = vsel %vm793, %v925, %v926
      %vm929 = vcmask 7168
      %v930 = vsel %vm929, %v920, %v928
      %v931 = vsel %vm793, %v926, %v927
      %v932 = vsel %vm929, %v922, %v931
      %935 = vst [vmem:[#allocation3 + $0x10] sm:$0xcc] %v930
      %936 = vst [vmem:[#allocation3 + $0x18] sm:$0xcc] %v932
      %v937 = vld [vmem:[#allocation2 + $0x2] sm:$0xff]
      %v939 = vcombine.high %v937, %v937
      %v941 = vunpack.c.l.s4 1983009808
      %v942 = vunpack.c.0.s8 %v941
      %v943 = vlaneseq
      %v944 = vshrl.u32 %v943, 7
      %v945 = vsub.s32 %v942, %v944
      %v946 = vrot.slane %v937, %v945
      %v948 = vunpack.c.l.s4 1983009808
      %v949 = vunpack.c.0.s8 %v948
      %v950 = vlaneseq
      %v951 = vshrl.u32 %v950, 7
      %v952 = vsub.s32 %v949, %v951
      %v953 = vrot.slane %v939, %v952
      %956 = vst [vmem:[#allocation3 + $0x20] sm:$0x33] %v946
      %957 = vst [vmem:[#allocation3 + $0x28] sm:$0x33] %v953
      %v958 = vld [vmem:[#allocation2 + $0x2] sm:$0xff]
      %v959 = vld [vmem:[#allocation2 + $0xa] sm:$0x3]
      %v962 = vcombine.low %v958, %v958
      %v964 = vunpack.c.l.s4 1983009808
      %v965 = vunpack.c.0.s8 %v964
      %v966 = vlaneseq
      %v967 = vshrl.u32 %v966, 7
      %v968 = vsub.s32 %v965, %v967
      %v969 = vrot.slane %v962, %v968
      %v971 = vunpack.c.l.s4 1983009808
      %v972 = vunpack.c.0.s8 %v971
      %v973 = vlaneseq
      %v974 = vshrl.u32 %v973, 7
      %v975 = vsub.s32 %v972, %v974
      %v976 = vrot.slane %v958, %v975
      %v977 = vcombine.low %v959, %v959
      %v979 = vunpack.c.l.s4 1983009808
      %v980 = vunpack.c.0.s8 %v979
      %v981 = vlaneseq
      %v982 = vshrl.u32 %v981, 7
      %v983 = vsub.s32 %v980, %v982
      %v984 = vrot.slane %v977, %v983
      %985 = vrot.lane.b32.xlu0 %v969, 127
      %v986 = vpop.permute.xlu0 %985
      %987 = vrot.lane.b32.xlu0 %v976, 127
      %v988 = vpop.permute.xlu0 %987
      %989 = vrot.lane.b32.xlu0 %v984, 127
      %v990 = vpop.permute.xlu0 %989
      %v991 = vrot.slane %v986, 4
      %v992 = vrot.slane %v988, 4
      %v993 = vrot.slane %v990, 4
      %v994 = vsel %vm793, %v991, %v992
      %vm995 = vcmask 1039360
      %v996 = vsel %vm995, %v986, %v994
      %v997 = vsel %vm793, %v992, %v993
      %v998 = vsel %vm995, %v988, %v997
      %1001 = vst [vmem:[#allocation3 + $0x20] sm:$0xcc] %v996
      %1002 = vst [vmem:[#allocation3 + $0x28] sm:$0xcc] %v998
      %v1003 = vld [vmem:[#allocation2 + $0x2] sm:$0xff]
      %v1004 = vld [vmem:[#allocation2 + $0xa] sm:$0x3]
      %v1007 = vcombine.high %v1003, %v1003
      %v1009 = vunpack.c.l.s4 1983009808
      %v1010 = vunpack.c.0.s8 %v1009
      %v1011 = vlaneseq
      %v1012 = vshrl.u32 %v1011, 7
      %v1013 = vsub.s32 %v1010, %v1012
      %v1014 = vrot.slane %v1003, %v1013
      %v1016 = vunpack.c.l.s4 1983009808
      %v1017 = vunpack.c.0.s8 %v1016
      %v1018 = vlaneseq
      %v1019 = vshrl.u32 %v1018, 7
      %v1020 = vsub.s32 %v1017, %v1019
      %v1021 = vrot.slane %v1007, %v1020
      %v1023 = vunpack.c.l.s4 1983009808
      %v1024 = vunpack.c.0.s8 %v1023
      %v1025 = vlaneseq
      %v1026 = vshrl.u32 %v1025, 7
      %v1027 = vsub.s32 %v1024, %v1026
      %v1028 = vrot.slane %v1004, %v1027
      %1029 = vrot.lane.b32.xlu0 %v1014, 111
      %v1030 = vpop.permute.xlu0 %1029
      %1031 = vrot.lane.b32.xlu0 %v1021, 111
      %v1032 = vpop.permute.xlu0 %1031
      %1033 = vrot.lane.b32.xlu0 %v1028, 111
      %v1034 = vpop.permute.xlu0 %1033
      %v1035 = vrot.slane %v1030, 4
      %v1036 = vrot.slane %v1032, 4
      %v1037 = vrot.slane %v1034, 4
      %v1038 = vsel %vm793, %v1035, %v1036
      %vm1039 = vcmask 908288
      %v1040 = vsel %vm1039, %v1030, %v1038
      %v1041 = vsel %vm793, %v1036, %v1037
      %v1042 = vsel %vm1039, %v1032, %v1041
      %1045 = vst [vmem:[#allocation3 + $0x30] sm:$0x33] %v1040
      %1046 = vst [vmem:[#allocation3 + $0x38] sm:$0x33] %v1042
      %v1047 = vld [vmem:[#allocation2 + $0x2] sm:$0xff]
      %v1048 = vld [vmem:[#allocation2 + $0xa] sm:$0x3]
      %v1051 = vcombine.low %v1047, %v1047
      %v1053 = vunpack.c.l.s4 1983009808
      %v1054 = vunpack.c.0.s8 %v1053
      %v1055 = vlaneseq
      %v1056 = vshrl.u32 %v1055, 7
      %v1057 = vsub.s32 %v1054, %v1056
      %v1058 = vrot.slane %v1051, %v1057
      %v1060 = vunpack.c.l.s4 1983009808
      %v1061 = vunpack.c.0.s8 %v1060
      %v1062 = vlaneseq
      %v1063 = vshrl.u32 %v1062, 7
      %v1064 = vsub.s32 %v1061, %v1063
      %v1065 = vrot.slane %v1047, %v1064
      %v1066 = vcombine.low %v1048, %v1048
      %v1068 = vunpack.c.l.s4 1983009808
      %v1069 = vunpack.c.0.s8 %v1068
      %v1070 = vlaneseq
      %v1071 = vshrl.u32 %v1070, 7
      %v1072 = vsub.s32 %v1069, %v1071
      %v1073 = vrot.slane %v1066, %v1072
      %1074 = vrot.lane.b32.xlu0 %v1058, 110
      %v1075 = vpop.permute.xlu0 %1074
      %1076 = vrot.lane.b32.xlu0 %v1065, 110
      %v1077 = vpop.permute.xlu0 %1076
      %1078 = vrot.lane.b32.xlu0 %v1073, 110
      %v1079 = vpop.permute.xlu0 %1078
      %v1080 = vrot.slane %v1075, 4
      %v1081 = vrot.slane %v1077, 4
      %v1082 = vrot.slane %v1079, 4
      %v1083 = vsel %vm793, %v1080, %v1081
      %vm1084 = vcmask 900096
      %v1085 = vsel %vm1084, %v1075, %v1083
      %v1086 = vsel %vm793, %v1081, %v1082
      %v1087 = vsel %vm1084, %v1077, %v1086
      %1090 = vst [vmem:[#allocation3 + $0x30] sm:$0xcc] %v1085
      %1091 = vst [vmem:[#allocation3 + $0x38] sm:$0xcc] %v1087
      %v1092 = vld [vmem:[#allocation2 + $0x2] sm:$0xff]
      %v1093 = vld [vmem:[#allocation2 + $0xa] sm:$0x3]
      %v1096 = vcombine.high %v1092, %v1092
      %v1098 = vunpack.c.l.s4 1983009808
      %v1099 = vunpack.c.0.s8 %v1098
      %v1100 = vlaneseq
      %v1101 = vshrl.u32 %v1100, 7
      %v1102 = vsub.s32 %v1099, %v1101
      %v1103 = vrot.slane %v1092, %v1102
      %v1105 = vunpack.c.l.s4 1983009808
      %v1106 = vunpack.c.0.s8 %v1105
      %v1107 = vlaneseq
      %v1108 = vshrl.u32 %v1107, 7
      %v1109 = vsub.s32 %v1106, %v1108
      %v1110 = vrot.slane %v1096, %v1109
      %v1112 = vunpack.c.l.s4 1983009808
      %v1113 = vunpack.c.0.s8 %v1112
      %v1114 = vlaneseq
      %v1115 = vshrl.u32 %v1114, 7
      %v1116 = vsub.s32 %v1113, %v1115
      %v1117 = vrot.slane %v1093, %v1116
      %1118 = vrot.lane.b32.xlu0 %v1103, 109
      %v1119 = vpop.permute.xlu0 %1118
      %1120 = vrot.lane.b32.xlu0 %v1110, 109
      %v1121 = vpop.permute.xlu0 %1120
      %1122 = vrot.lane.b32.xlu0 %v1117, 109
      %v1123 = vpop.permute.xlu0 %1122
      %v1124 = vrot.slane %v1119, 4
      %v1125 = vrot.slane %v1121, 4
      %v1126 = vrot.slane %v1123, 4
      %v1127 = vsel %vm793, %v1124, %v1125
      %vm1128 = vcmask 891904
      %v1129 = vsel %vm1128, %v1119, %v1127
      %v1130 = vsel %vm793, %v1125, %v1126
      %v1131 = vsel %vm1128, %v1121, %v1130
      %1134 = vst [vmem:[#allocation3 + $0x40] sm:$0x33] %v1129
      %1135 = vst [vmem:[#allocation3 + $0x48] sm:$0x33] %v1131
      %v1136 = vld [vmem:[%s6] sm:$0xf]
      %v1137 = vld [vmem:[#allocation3] sm:$0xff]
      %v1138 = vld [vmem:[#allocation3 + $0x8] sm:$0xff]
      %v1139 = vld [vmem:[#allocation3 + $0x10] sm:$0xff]
      %v1140 = vld [vmem:[#allocation3 + $0x18] sm:$0xff]
      %v1141 = vld [vmem:[#allocation3 + $0x20] sm:$0xff]
      %v1142 = vld [vmem:[#allocation3 + $0x28] sm:$0xff]
      %v1143 = vld [vmem:[#allocation3 + $0x30] sm:$0xff]
      %v1144 = vld [vmem:[#allocation3 + $0x38] sm:$0xff]
      %v1145 = vld [vmem:[#allocation3 + $0x40] sm:$0x33]
      %v1146 = vld [vmem:[#allocation3 + $0x48] sm:$0x33]
      %v1157 = vunpack.c.l.b16 %v1137
      %v1158 = vunpack.c.h.b16 %v1137
      %v1159 = vunpack.c.l.b16 %v1138
      %v1160 = vunpack.c.h.b16 %v1138
      %v1161 = vunpack.c.l.b16 %v1139
      %v1162 = vunpack.c.h.b16 %v1139
      %v1163 = vunpack.c.l.b16 %v1140
      %v1164 = vunpack.c.h.b16 %v1140
      %v1165 = vunpack.c.l.b16 %v1141
      %v1166 = vunpack.c.h.b16 %v1141
      %v1167 = vunpack.c.l.b16 %v1142
      %v1168 = vunpack.c.h.b16 %v1142
      %v1169 = vunpack.c.l.b16 %v1143
      %v1170 = vunpack.c.h.b16 %v1143
      %v1171 = vunpack.c.l.b16 %v1144
      %v1172 = vunpack.c.h.b16 %v1144
      %v1173 = vunpack.c.l.b16 %v1145
      %v1174 = vunpack.c.h.b16 %v1145
      %v1175 = vunpack.c.l.b16 %v1146
      %v1176 = vunpack.c.h.b16 %v1146
      %v1177 = vpack.c.b16 %v1161, %v1157
      %v1178 = vpack.c.b16 %v1162, %v1158
      %v1179 = vpack.c.b16 %v1163, %v1159
      %v1180 = vpack.c.b16 %v1164, %v1160
      %v1181 = vpack.c.b16 %v1169, %v1165
      %v1182 = vpack.c.b16 %v1170, %v1166
      %v1183 = vpack.c.b16 %v1171, %v1167
      %v1184 = vpack.c.b16 %v1172, %v1168
      %v1185 = vpack.c.b16 %v1173, %v1173
      %v1186 = vpack.c.b16 %v1174, %v1174
      %v1187 = vpack.c.b16 %v1175, %v1175
      %v1188 = vpack.c.b16 %v1176, %v1176
      %vm1197 = vcmask 293888
      %v1199 = vsel %vm1197, %v1136, 0
      %vm1201 = vcmask 1041408
      %v1203 = vsel %vm1201, %v1185, 0
      %v1206 = vsel %vm1201, %v1186, 0
      %v1209 = vsel %vm1201, %v1187, 0
      %v1212 = vsel %vm1201, %v1188, 0
      %1214 = vmatprep.subr.bf16.mxu0 %v1178
      %1215 = vmatpush1.bf16.msra.mxu0 %v1177
      %1216 = vmatprep.subr.bf16.mxu0 %v1182
      %1217 = vmatpush1.bf16.msra.mxu0 %v1181
      %1218 = vmatprep.subr.bf16.mxu0 %v1206
      %1219 = vmatpush1.bf16.msra.mxu0 %v1203
      %1220 = vmatprep.subr.bf16.mxu0 0
      %1221 = vmatpush1.bf16.msra.mxu0 0
      %1222 = vmatprep.subr.bf16.mxu0 0
      %1223 = vmatpush1.bf16.msra.mxu0 0
      %1224 = vmatprep.subr.bf16.mxu0 0
      %1225 = vmatpush1.bf16.msra.mxu0 0
      %1226 = vmatprep.subr.bf16.mxu0 0
      %1227 = vmatpush1.bf16.msra.mxu0 0
      %1228 = vmatprep.subr.bf16.mxu0 0
      %1229 = vmatpush1.bf16.msra.mxu0 0
      %1230 = vmatprep.subr.bf16.mxu0 0
      %1231 = vmatpush1.bf16.msra.mxu0 0
      %1232 = vmatprep.subr.bf16.mxu0 0
      %1233 = vmatpush1.bf16.msra.mxu0 0
      %1234 = vmatprep.subr.bf16.mxu0 0
      %1235 = vmatpush1.bf16.msra.mxu0 0
      %1236 = vmatprep.subr.bf16.mxu0 0
      %1237 = vmatpush1.bf16.msra.mxu0 0
      %1238 = vmatprep.subr.bf16.mxu0 0
      %1239 = vmatpush1.bf16.msra.mxu0 0
      %1240 = vmatprep.subr.bf16.mxu0 0
      %1241 = vmatpush1.bf16.msra.mxu0 0
      %1242 = vmatprep.subr.bf16.mxu0 0
      %1243 = vmatpush1.bf16.msra.mxu0 0
      %1244 = vmatprep.subr.bf16.mxu0 0
      %1245 = vmatpush1.bf16.msra.mxu0 0
      %1246 = vmatprep.mubr.bf16.mxu0 0
      %1247 = vmatmul.mubr.bf16.gmra.mrb[0].mxu0 %v1199
      %v1248 = vpop.f32.mrb[0].mxu0
      %v1249 = vadd.f32 0.0, %v1248
      %v1250 = vpop.f32.mrb[0].mxu0
      %v1251 = vadd.f32 0.0, %v1250
      %v1252 = vpop.f32.mrb[0].mxu0
      %v1253 = vpop.f32.mrb[0].mxu0
      %1254 = vdwg.mxu0
      %1255 = vmatprep.subr.bf16.mxu0 %v1180
      %1256 = vmatpush1.bf16.msra.mxu0 %v1179
      %1257 = vmatprep.subr.bf16.mxu0 %v1184
      %1258 = vmatpush1.bf16.msra.mxu0 %v1183
      %1259 = vmatprep.subr.bf16.mxu0 %v1212
      %1260 = vmatpush1.bf16.msra.mxu0 %v1209
      %1261 = vmatprep.subr.bf16.mxu0 0
      %1262 = vmatpush1.bf16.msra.mxu0 0
      %1263 = vmatprep.subr.bf16.mxu0 0
      %1264 = vmatpush1.bf16.msra.mxu0 0
      %1265 = vmatprep.subr.bf16.mxu0 0
      %1266 = vmatpush1.bf16.msra.mxu0 0
      %1267 = vmatprep.subr.bf16.mxu0 0
      %1268 = vmatpush1.bf16.msra.mxu0 0
      %1269 = vmatprep.subr.bf16.mxu0 0
      %1270 = vmatpush1.bf16.msra.mxu0 0
      %1271 = vmatprep.subr.bf16.mxu0 0
      %1272 = vmatpush1.bf16.msra.mxu0 0
      %1273 = vmatprep.subr.bf16.mxu0 0
      %1274 = vmatpush1.bf16.msra.mxu0 0
      %1275 = vmatprep.subr.bf16.mxu0 0
      %1276 = vmatpush1.bf16.msra.mxu0 0
      %1277 = vmatprep.subr.bf16.mxu0 0
      %1278 = vmatpush1.bf16.msra.mxu0 0
      %1279 = vmatprep.subr.bf16.mxu0 0
      %1280 = vmatpush1.bf16.msra.mxu0 0
      %1281 = vmatprep.subr.bf16.mxu0 0
      %1282 = vmatpush1.bf16.msra.mxu0 0
      %1283 = vmatprep.subr.bf16.mxu0 0
      %1284 = vmatpush1.bf16.msra.mxu0 0
      %1285 = vmatprep.subr.bf16.mxu0 0
      %1286 = vmatpush1.bf16.msra.mxu0 0
      %1287 = vmatprep.mubr.bf16.mxu0 0
      %1288 = vmatmul.mubr.bf16.gmra.mrb[0].mxu0 %v1199
      %v1289 = vpop.f32.mrb[0].mxu0
      %v1290 = vadd.f32 0.0, %v1289
      %v1291 = vpop.f32.mrb[0].mxu0
      %v1292 = vadd.f32 0.0, %v1291
      %v1293 = vpop.f32.mrb[0].mxu0
      %v1294 = vpop.f32.mrb[0].mxu0
      %1295 = vdwg.mxu0
      %v1296 = vlaneseq
      %v1297 = vshrl.u32 %v1296, 7
      %v1298 = vsub.s32 0, %v1297
      %v1299 = vrot.slane %v754, %v1298
      %v1300 = vlaneseq
      %v1301 = vshrl.u32 %v1300, 7
      %v1302 = vsub.s32 0, %v1301
      %v1303 = vrot.slane %v755, %v1302
      %v1304 = vlaneseq
      %v1305 = vshrl.u32 %v1304, 7
      %v1306 = vsub.s32 0, %v1305
      %v1307 = vrot.slane %v756, %v1306
      %v1308 = vlaneseq
      %v1309 = vshrl.u32 %v1308, 7
      %v1310 = vsub.s32 0, %v1309
      %v1311 = vrot.slane %v757, %v1310
      %v1312 = vmul.f32 %v1249, %v1299
      %v1313 = vmul.f32 %v1251, %v1303
      %v1314 = vmul.f32 %v1290, %v1307
      %v1315 = vmul.f32 %v1292, %v1311
      %v1316 = vpack.c.bf16 %v1312, %v1312
      %v1317 = vpack.c.bf16 %v1313, %v1313
      %v1318 = vpack.c.bf16 %v1314, %v1314
      %v1319 = vpack.c.bf16 %v1315, %v1315
      %v1324 = vunpack.c.l.b16 %v1316
      %v1325 = vunpack.c.l.b16 %v1317
      %v1326 = vunpack.c.l.b16 %v1318
      %v1327 = vunpack.c.l.b16 %v1319
      %v1328 = vpack.c.b16 %v1325, %v1324
      %v1329 = vpack.c.b16 %v1327, %v1326
      %1332 = vst [vmem:[%s698] sm:$0xff] %v1328
      %1333 = vst [vmem:[%s698 + $0x8] sm:$0xff] %v1329
      %v1334 = vld [vmem:[%s705] sm:$0xff]
      %v1335 = vadd.f32 %v1312, %v1313
      %v1336 = vadd.f32 %v1335, %v1314
      %v1337 = vadd.f32 %v1336, %v1315
      %1338 = vadd.xlane.f32.xlu0 %v1337
      %v1339 = vpop.xlane.xlu0 %1338
      %v1340 = vadd.f32 %v1334, %v1339
      %vm1341 = vcmask 7168
      %1342 = vst.msk [vmem:[%s705] sm:$0xff] %vm1341, %v1340
      %v1343 = vld [vmem:[%s709] sm:$0xff]
      %v1344 = vmul.f32 %v1312, %v1312
      %v1345 = vmul.f32 %v1313, %v1313
      %v1346 = vmul.f32 %v1314, %v1314
      %v1347 = vmul.f32 %v1315, %v1315
      %v1348 = vadd.f32 %v1344, %v1345
      %v1349 = vadd.f32 %v1348, %v1346
      %v1350 = vadd.f32 %v1349, %v1347
      %1351 = vadd.xlane.f32.xlu0 %v1350
      %v1352 = vpop.xlane.xlu0 %1351
      %v1353 = vadd.f32 %v1343, %v1352
      %1354 = vst.msk [vmem:[%s709] sm:$0xff] %vm1341, %v1353
      %s1355 = smul.u32 %s27, 2
      %s1356 = sadd.s32 %s1355, %s28
      %s1357 = smul.u32 4, %s1356
      %p1358 = scmp.lt.s32.totalorder %s1357, 15
      %s1359 = scalar_select %p1358, %s1357, 15
      %s1360 = smul.addr %s1359, 4
      %s1361 = scalar_lea.vmem %s9, %s1360
      %p1362 = scmp.lt.s32.totalorder %s27, 1
      %s1363 = scalar_select %p1362, %s27, 1
      %s1364 = smul.addr %s1363, 8
      %s1365 = scalar_lea.vmem %s10, %s1364
      %p1366 = scmp.lt.s32.totalorder %s27, 1
      %s1367 = scalar_select %p1366, %s27, 1
      %s1368 = smul.addr %s1367, 8
      %s1369 = scalar_lea.vmem %s11, %s1368
      // Predicated region
      $region61: #{double_conv.3} parent=55 // pred_check
        %p1370 = pneg %p332
      $region62: #{double_conv.3} parent=55 // pred_check_branch
        %1372 = sbr.rel (%p1370) target = $region64
      $region63: #{double_conv.3} parent=55 // pred_region
        %s1373 = smul.u32 %s27, 2
        %s1374 = sadd.s32 %s1373, %s28
        %s1375 = smul.u32 4, %s1374
      $region64: #{double_conv.3} parent=55 // pred_fallthru
        _
      // Predicated region
      $region65: #{double_conv.3} parent=55 // pred_check
        %p1376 = pneg %p358
      $region66: #{double_conv.3} parent=55 // pred_check_branch
        %1378 = sbr.rel (%p1376) target = $region68
      $region67: #{double_conv.3} parent=55 // pred_region
        _
      $region68: #{double_conv.3} parent=55 // pred_fallthru
        _
      // Predicated region
      $region69: #{double_conv.3} parent=55 // pred_check
        %p1379 = pneg %p384
      $region70: #{double_conv.3} parent=55 // pred_check_branch
        %1381 = sbr.rel (%p1379) target = $region72
      $region71: #{double_conv.3} parent=55 // pred_region
        _
      $region72: #{double_conv.3} parent=55 // pred_fallthru
        _
    $region56: #{double_conv.3} parent=5 // pred_fallthru
      _
    %p1382 = scmp.le.s32.totalorder 2, %s18
    // Predicated region
    $region73: #{double_conv.3} parent=5 // pred_check
      %p1383 = pneg %p1382
    $region74: #{double_conv.3} parent=5 // pred_check_branch
      %1385 = sbr.rel (%p1383) target = $region76
    $region75: #{double_conv.3} parent=5 // pred_region
      %s1386 = ssub.s32 %s18, 2
      // Predicated region
      $region77: #{double_conv.3} parent=75 // pred_check
        %p1387 = pneg %p338
      $region78: #{double_conv.3} parent=75 // pred_check_branch
        %1389 = sbr.rel (%p1387) target = $region80
      $region79: #{double_conv.3} parent=75 // pred_region
        %s1390 = smul.u32 %s29, 2
        %s1391 = sadd.s32 %s1390, %s30
        %s1392 = smul.u32 4, %s1391
        %p1393 = scmp.lt.s32.totalorder %s1392, 15
        %s1394 = scalar_select %p1393, %s1392, 15
        %s1395 = smul.addr %s1394, 4
        %s1396 = scalar_lea.vmem %s9, %s1395
      $region80: #{double_conv.3} parent=75 // pred_fallthru
        _
      // Predicated region
      $region81: #{double_conv.3} parent=75 // pred_check
        %p1397 = pneg %p364
      $region82: #{double_conv.3} parent=75 // pred_check_branch
        %1399 = sbr.rel (%p1397) target = $region84
      $region83: #{double_conv.3} parent=75 // pred_region
        %p1400 = scmp.lt.s32.totalorder %s29, 1
        %s1401 = scalar_select %p1400, %s29, 1
        %s1402 = smul.addr %s1401, 8
        %s1403 = scalar_lea.vmem %s10, %s1402
      $region84: #{double_conv.3} parent=75 // pred_fallthru
        _
      // Predicated region
      $region85: #{double_conv.3} parent=75 // pred_check
        %p1404 = pneg %p390
      $region86: #{double_conv.3} parent=75 // pred_check_branch
        %1406 = sbr.rel (%p1404) target = $region88
      $region87: #{double_conv.3} parent=75 // pred_region
        %p1407 = scmp.lt.s32.totalorder %s29, 1
        %s1408 = scalar_select %p1407, %s29, 1
        %s1409 = smul.addr %s1408, 8
        %s1410 = scalar_lea.vmem %s11, %s1409
      $region88: #{double_conv.3} parent=75 // pred_fallthru
        _
    $region76: #{double_conv.3} parent=5 // pred_fallthru
      _
  $region6: #{double_conv.3} parent=0 // loop_footer
    %s22 = sadd.s32 1, %s18
  $region7: #{double_conv.3} parent=0 // loop_footer_branch
    %17 = sbr.rel target = $region3
  $region8: #{double_conv.3} parent=0 // loop_exit
    _

// kernel: double_conv.4
$region0: #{double_conv.4}
  #allocation0 [shape = 'u32[]', space=smem, size = 0x4, offset = 0x4, fixed_abs, tag = 'smem constant byte address 0x4 - core index']
  #allocation1 [shape = 'u32[144,128]{1,0:T(1,128)}', space=vmem, size = 0x12000, scoped, tag = 'internal scratch']
  #allocation2 [shape = 'bf16[8,768]{1,0:T(8,128)(2,1)}', space=vmem, size = 0x3000, scoped, tag = 'scratch operand']
  #allocation3 [shape = 'bf16[72,512]{1,0:T(8,128)(2,1)}', space=vmem, size = 0x12000, scoped, tag = 'scratch operand']
  %s0 = inlined_call_operand.vmem [shape: bf16[8,2048], index: 0, kind: input, shape index: {}, may-alias: {0,1,2}]
  %s1 = inlined_call_operand.vmem [shape: bf16[8,2048], index: 1, kind: input, shape index: {}, may-alias: {0,1,2}]
  %s2 = inlined_call_operand.vmem [shape: bf16[8,2048], index: 2, kind: input, shape index: {}, may-alias: {0,1,2}]
  %s3 = inlined_call_operand.vmem [shape: bf16[1,2048], index: 3, kind: input, shape index: {}, may-alias: {3,4,5}]
  %s4 = inlined_call_operand.vmem [shape: bf16[1,2048], index: 4, kind: input, shape index: {}, may-alias: {3,4,5}]
  %s5 = inlined_call_operand.vmem [shape: bf16[1,2048], index: 5, kind: input, shape index: {}, may-alias: {3,4,5}]
  %s6 = inlined_call_operand.vmem [shape: bf16[8,72], index: 6, kind: input, shape index: {}]
  %s7 = inlined_call_operand.vmem [shape: f32[8,1], index: 7, kind: input, shape index: {}]
  %s8 = inlined_call_operand.vmem [shape: f32[8,1], index: 8, kind: input, shape index: {}]
  %s9 = inlined_call_operand.vmem [shape: bf16[8,2048], index: 9, kind: output, shape index: {0}]
  %s10 = inlined_call_operand.vmem [shape: f32[2,8,1], index: 10, kind: output, shape index: {1}]
  %s11 = inlined_call_operand.vmem [shape: f32[2,8,1], index: 11, kind: output, shape index: {2}]
  %12 = xla_tuple %s9, %s10, %s11
  %s13 = sld [smem:[#allocation0]]
  $region89: #{double_conv.4} parent=0
    _
  %s15 = ssub.s32 1, %s13
  %s16 = scalar_select 0, %s15, %s13
  loop: start=0, step=1, limit=6
  $region2: #{double_conv.4} parent=0 // loop_pre_header
    _
  $region3: #{double_conv.4} parent=0 // loop_header
    %s18 = sphi 0, %s22
    %p19 = scmp.ge.s32.totalorder %s18, 6
    %s25 = sphi 0, %s37
    %s26 = sphi 0, %s33
    %s27 = sphi 0, %s25
    %s28 = sphi 0, %s26
    %s29 = sphi 0, %s27
    %s30 = sphi 0, %s28
    %s44 = sphi 0, %s46
    %s47 = sphi 0, %s44
    %s48 = sphi 0, %s47
    %s64 = sphi 0, %s48
    %s82 = sphi 0, %s84
    %s85 = sphi 0, %s82
    %s86 = sphi 0, %s85
    %s102 = sphi 0, %s86
    %s120 = sphi 0, %s122
    %s123 = sphi 0, %s120
    %s124 = sphi 0, %s123
    %s140 = sphi 0, %s124
    %s150 = sphi 0, %s152
    %s153 = sphi 0, %s150
    %s154 = sphi 0, %s153
    %s170 = sphi 0, %s154
    %s188 = sphi 0, %s190
    %s191 = sphi 0, %s188
    %s192 = sphi 0, %s191
    %s208 = sphi 0, %s192
    %s226 = sphi 0, %s228
    %s229 = sphi 0, %s226
    %s230 = sphi 0, %s229
    %s246 = sphi 0, %s230
    %s250 = sphi 0, %s250
    %s252 = sphi 0, %s250
    %s253 = sphi 0, %s252
    %s267 = sphi 0, %s253
    %s271 = sphi 0, %s271
    %s273 = sphi 0, %s271
    %s274 = sphi 0, %s273
    %s288 = sphi 0, %s274
    %s292 = sphi 0, %s292
    %s294 = sphi 0, %s292
    %s295 = sphi 0, %s294
    %s309 = sphi 0, %s295
    %s319 = sphi 0, %s321
    %s322 = sphi 0, %s319
    %s323 = sphi 0, %s322
    %s339 = sphi 0, %s323
    %s345 = sphi 0, %s347
    %s348 = sphi 0, %s345
    %s349 = sphi 0, %s348
    %s365 = sphi 0, %s349
    %s371 = sphi 0, %s373
    %s374 = sphi 0, %s371
    %s375 = sphi 0, %s374
    %s391 = sphi 0, %s375
  $region4: #{double_conv.4} parent=0 // loop_header_branch
    %21 = sbr.rel (%p19) target = $region8
  $region5: #{double_conv.4} parent=0 // loop_body
    %s23 = ssub.s32 %s18, 1
    %s24 = ssub.s32 %s18, 2
    %s31 = sadd.s32 1, %s26
    %p32 = scmp.ge.s32.totalorder %s31, 2
    %s33 = scalar_select %p32, 0, %s31
    %s34 = sadd.s32 1, %s25
    %s35 = scalar_select %p32, %s34, %s25
    %p36 = scmp.ge.s32.totalorder %s35, 2
    %s37 = scalar_select %p36, 0, %s35
    %s38 = smul.u32 %s25, 2
    %s39 = sadd.s32 %s38, %s26
    %s40 = smul.u32 %s37, 2
    %s41 = sadd.s32 %s40, %s33
    %s42 = ssub.s32 %s39, %s41
    %p43 = scmp.eq.s32.totalorder %s42, 0
    %s45 = sadd.s32 %s44, 1
    %s46 = scalar_select %p43, %s44, %s45
    %p49 = pneg %p43
    %p50 = scmp.eq.s32.totalorder %s18, 3
    %p51 = por %p49, %p50
    %p52 = scmp.ne.s32.totalorder %s44, %s47
    %p53 = scmp.eq.s32.totalorder %s18, 0
    %p54 = por %p52, %p53
    %p55 = scmp.ne.s32.totalorder %s44, %s47
    %p56 = scmp.eq.s32.totalorder %s23, 3
    %p57 = por %p55, %p56
    %p58 = scmp.ne.s32.totalorder %s47, %s48
    %p59 = scmp.eq.s32.totalorder %s23, 0
    %p60 = por %p58, %p59
    %p61 = scmp.ne.s32.totalorder %s47, %s48
    %p62 = scmp.eq.s32.totalorder %s24, 3
    %p63 = por %p61, %p62
    %p65 = scmp.ne.s32.totalorder %s48, %s64
    %p66 = scmp.eq.s32.totalorder %s24, 0
    %p67 = por %p65, %p66
    %s68 = smul.u32 %s25, 2
    %s69 = sadd.s32 %s68, %s26
    %s70 = smul.u32 %s69, 4
    %s71 = ssub.s32 %s70, 1
    %p72 = scmp.gt.s32.totalorder %s71, 0
    %s73 = scalar_select %p72, %s71, 0
    %s74 = smul.u32 %s37, 2
    %s75 = sadd.s32 %s74, %s33
    %s76 = smul.u32 %s75, 4
    %s77 = ssub.s32 %s76, 1
    %p78 = scmp.gt.s32.totalorder %s77, 0
    %s79 = scalar_select %p78, %s77, 0
    %s80 = ssub.s32 %s73, %s79
    %p81 = scmp.eq.s32.totalorder %s80, 0
    %s83 = sadd.s32 %s82, 1
    %s84 = scalar_select %p81, %s82, %s83
    %p87 = pneg %p81
    %p88 = scmp.eq.s32.totalorder %s18, 3
    %p89 = por %p87, %p88
    %p90 = scmp.ne.s32.totalorder %s82, %s85
    %p91 = scmp.eq.s32.totalorder %s18, 0
    %p92 = por %p90, %p91
    %p93 = scmp.ne.s32.totalorder %s82, %s85
    %p94 = scmp.eq.s32.totalorder %s23, 3
    %p95 = por %p93, %p94
    %p96 = scmp.ne.s32.totalorder %s85, %s86
    %p97 = scmp.eq.s32.totalorder %s23, 0
    %p98 = por %p96, %p97
    %p99 = scmp.ne.s32.totalorder %s85, %s86
    %p100 = scmp.eq.s32.totalorder %s24, 3
    %p101 = por %p99, %p100
    %p103 = scmp.ne.s32.totalorder %s86, %s102
    %p104 = scmp.eq.s32.totalorder %s24, 0
    %p105 = por %p103, %p104
    %s106 = smul.u32 %s25, 2
    %s107 = sadd.s32 %s106, %s26
    %s108 = sadd.s32 %s107, 1
    %s109 = smul.u32 %s108, 4
    %p110 = scmp.lt.s32.totalorder %s109, 15
    %s111 = scalar_select %p110, %s109, 15
    %s112 = smul.u32 %s37, 2
    %s113 = sadd.s32 %s112, %s33
    %s114 = sadd.s32 %s113, 1
    %s115 = smul.u32 %s114, 4
    %p116 = scmp.lt.s32.totalorder %s115, 15
    %s117 = scalar_select %p116, %s115, 15
    %s118 = ssub.s32 %s111, %s117
    %p119 = scmp.eq.s32.totalorder %s118, 0
    %s121 = sadd.s32 %s120, 1
    %s122 = scalar_select %p119, %s120, %s121
    %p125 = pneg %p119
    %p126 = scmp.eq.s32.totalorder %s18, 3
    %p127 = por %p125, %p126
    %p128 = scmp.ne.s32.totalorder %s120, %s123
    %p129 = scmp.eq.s32.totalorder %s18, 0
    %p130 = por %p128, %p129
    %p131 = scmp.ne.s32.totalorder %s120, %s123
    %p132 = scmp.eq.s32.totalorder %s23, 3
    %p133 = por %p131, %p132
    %p134 = scmp.ne.s32.totalorder %s123, %s124
    %p135 = scmp.eq.s32.totalorder %s23, 0
    %p136 = por %p134, %p135
    %p137 = scmp.ne.s32.totalorder %s123, %s124
    %p138 = scmp.eq.s32.totalorder %s24, 3
    %p139 = por %p137, %p138
    %p141 = scmp.ne.s32.totalorder %s124, %s140
    %p142 = scmp.eq.s32.totalorder %s24, 0
    %p143 = por %p141, %p142
    %s144 = smul.u32 %s25, 2
    %s145 = sadd.s32 %s144, %s26
    %s146 = smul.u32 %s37, 2
    %s147 = sadd.s32 %s146, %s33
    %s148 = ssub.s32 %s145, %s147
    %p149 = scmp.eq.s32.totalorder %s148, 0
    %s151 = sadd.s32 %s150, 1
    %s152 = scalar_select %p149, %s150, %s151
    %p155 = pneg %p149
    %p156 = scmp.eq.s32.totalorder %s18, 3
    %p157 = por %p155, %p156
    %p158 = scmp.ne.s32.totalorder %s150, %s153
    %p159 = scmp.eq.s32.totalorder %s18, 0
    %p160 = por %p158, %p159
    %p161 = scmp.ne.s32.totalorder %s150, %s153
    %p162 = scmp.eq.s32.totalorder %s23, 3
    %p163 = por %p161, %p162
    %p164 = scmp.ne.s32.totalorder %s153, %s154
    %p165 = scmp.eq.s32.totalorder %s23, 0
    %p166 = por %p164, %p165
    %p167 = scmp.ne.s32.totalorder %s153, %s154
    %p168 = scmp.eq.s32.totalorder %s24, 3
    %p169 = por %p167, %p168
    %p171 = scmp.ne.s32.totalorder %s154, %s170
    %p172 = scmp.eq.s32.totalorder %s24, 0
    %p173 = por %p171, %p172
    %s174 = smul.u32 %s25, 2
    %s175 = sadd.s32 %s174, %s26
    %s176 = smul.u32 %s175, 4
    %s177 = ssub.s32 %s176, 1
    %p178 = scmp.gt.s32.totalorder %s177, 0
    %s179 = scalar_select %p178, %s177, 0
    %s180 = smul.u32 %s37, 2
    %s181 = sadd.s32 %s180, %s33
    %s182 = smul.u32 %s181, 4
    %s183 = ssub.s32 %s182, 1
    %p184 = scmp.gt.s32.totalorder %s183, 0
    %s185 = scalar_select %p184, %s183, 0
    %s186 = ssub.s32 %s179, %s185
    %p187 = scmp.eq.s32.totalorder %s186, 0
    %s189 = sadd.s32 %s188, 1
    %s190 = scalar_select %p187, %s188, %s189
    %p193 = pneg %p187
    %p194 = scmp.eq.s32.totalorder %s18, 3
    %p195 = por %p193, %p194
    %p196 = scmp.ne.s32.totalorder %s188, %s191
    %p197 = scmp.eq.s32.totalorder %s18, 0
    %p198 = por %p196, %p197
    %p199 = scmp.ne.s32.totalorder %s188, %s191
    %p200 = scmp.eq.s32.totalorder %s23, 3
    %p201 = por %p199, %p200
    %p202 = scmp.ne.s32.totalorder %s191, %s192
    %p203 = scmp.eq.s32.totalorder %s23, 0
    %p204 = por %p202, %p203
    %p205 = scmp.ne.s32.totalorder %s191, %s192
    %p206 = scmp.eq.s32.totalorder %s24, 3
    %p207 = por %p205, %p206
    %p209 = scmp.ne.s32.totalorder %s192, %s208
    %p210 = scmp.eq.s32.totalorder %s24, 0
    %p211 = por %p209, %p210
    %s212 = smul.u32 %s25, 2
    %s213 = sadd.s32 %s212, %s26
    %s214 = sadd.s32 %s213, 1
    %s215 = smul.u32 %s214, 4
    %p216 = scmp.lt.s32.totalorder %s215, 15
    %s217 = scalar_select %p216, %s215, 15
    %s218 = smul.u32 %s37, 2
    %s219 = sadd.s32 %s218, %s33
    %s220 = sadd.s32 %s219, 1
    %s221 = smul.u32 %s220, 4
    %p222 = scmp.lt.s32.totalorder %s221, 15
    %s223 = scalar_select %p222, %s221, 15
    %s224 = ssub.s32 %s217, %s223
    %p225 = scmp.eq.s32.totalorder %s224, 0
    %s227 = sadd.s32 %s226, 1
    %s228 = scalar_select %p225, %s226, %s227
    %p231 = pneg %p225
    %p232 = scmp.eq.s32.totalorder %s18, 3
    %p233 = por %p231, %p232
    %p234 = scmp.ne.s32.totalorder %s226, %s229
    %p235 = scmp.eq.s32.totalorder %s18, 0
    %p236 = por %p234, %p235
    %p237 = scmp.ne.s32.totalorder %s226, %s229
    %p238 = scmp.eq.s32.totalorder %s23, 3
    %p239 = por %p237, %p238
    %p240 = scmp.ne.s32.totalorder %s229, %s230
    %p241 = scmp.eq.s32.totalorder %s23, 0
    %p242 = por %p240, %p241
    %p243 = scmp.ne.s32.totalorder %s229, %s230
    %p244 = scmp.eq.s32.totalorder %s24, 3
    %p245 = por %p243, %p244
    %p247 = scmp.ne.s32.totalorder %s230, %s246
    %p248 = scmp.eq.s32.totalorder %s24, 0
    %p249 = por %p247, %p248
    %s251 = sadd.s32 %s250, 1
    %p254 = scmp.eq.s32.totalorder %s18, 3
    %p255 = scmp.ne.s32.totalorder %s250, %s252
    %p256 = scmp.eq.s32.totalorder %s18, 0
    %p257 = por %p255, %p256
    %p258 = scmp.ne.s32.totalorder %s250, %s252
    %p259 = scmp.eq.s32.totalorder %s23, 3
    %p260 = por %p258, %p259
    %p261 = scmp.ne.s32.totalorder %s252, %s253
    %p262 = scmp.eq.s32.totalorder %s23, 0
    %p263 = por %p261, %p262
    %p264 = scmp.ne.s32.totalorder %s252, %s253
    %p265 = scmp.eq.s32.totalorder %s24, 3
    %p266 = por %p264, %p265
    %p268 = scmp.ne.s32.totalorder %s253, %s267
    %p269 = scmp.eq.s32.totalorder %s24, 0
    %p270 = por %p268, %p269
    %s272 = sadd.s32 %s271, 1
    %p275 = scmp.eq.s32.totalorder %s18, 3
    %p276 = scmp.ne.s32.totalorder %s271, %s273
    %p277 = scmp.eq.s32.totalorder %s18, 0
    %p278 = por %p276, %p277
    %p279 = scmp.ne.s32.totalorder %s271, %s273
    %p280 = scmp.eq.s32.totalorder %s23, 3
    %p281 = por %p279, %p280
    %p282 = scmp.ne.s32.totalorder %s273, %s274
    %p283 = scmp.eq.s32.totalorder %s23, 0
    %p284 = por %p282, %p283
    %p285 = scmp.ne.s32.totalorder %s273, %s274
    %p286 = scmp.eq.s32.totalorder %s24, 3
    %p287 = por %p285, %p286
    %p289 = scmp.ne.s32.totalorder %s274, %s288
    %p290 = scmp.eq.s32.totalorder %s24, 0
    %p291 = por %p289, %p290
    %s293 = sadd.s32 %s292, 1
    %p296 = scmp.eq.s32.totalorder %s18, 3
    %p297 = scmp.ne.s32.totalorder %s292, %s294
    %p298 = scmp.eq.s32.totalorder %s18, 0
    %p299 = por %p297, %p298
    %p300 = scmp.ne.s32.totalorder %s292, %s294
    %p301 = scmp.eq.s32.totalorder %s23, 3
    %p302 = por %p300, %p301
    %p303 = scmp.ne.s32.totalorder %s294, %s295
    %p304 = scmp.eq.s32.totalorder %s23, 0
    %p305 = por %p303, %p304
    %p306 = scmp.ne.s32.totalorder %s294, %s295
    %p307 = scmp.eq.s32.totalorder %s24, 3
    %p308 = por %p306, %p307
    %p310 = scmp.ne.s32.totalorder %s295, %s309
    %p311 = scmp.eq.s32.totalorder %s24, 0
    %p312 = por %p310, %p311
    %s313 = smul.u32 %s25, 2
    %s314 = sadd.s32 %s313, %s26
    %s315 = smul.u32 %s37, 2
    %s316 = sadd.s32 %s315, %s33
    %s317 = ssub.s32 %s314, %s316
    %p318 = scmp.eq.s32.totalorder %s317, 0
    %s320 = sadd.s32 %s319, 1
    %s321 = scalar_select %p318, %s319, %s320
    %p324 = pneg %p318
    %p325 = scmp.eq.s32.totalorder %s18, 3
    %p326 = por %p324, %p325
    %p327 = scmp.ne.s32.totalorder %s319, %s322
    %p328 = scmp.eq.s32.totalorder %s18, 0
    %p329 = por %p327, %p328
    %p330 = scmp.ne.s32.totalorder %s319, %s322
    %p331 = scmp.eq.s32.totalorder %s23, 3
    %p332 = por %p330, %p331
    %p333 = scmp.ne.s32.totalorder %s322, %s323
    %p334 = scmp.eq.s32.totalorder %s23, 0
    %p335 = por %p333, %p334
    %p336 = scmp.ne.s32.totalorder %s322, %s323
    %p337 = scmp.eq.s32.totalorder %s24, 3
    %p338 = por %p336, %p337
    %p340 = scmp.ne.s32.totalorder %s323, %s339
    %p341 = scmp.eq.s32.totalorder %s24, 0
    %p342 = por %p340, %p341
    %s343 = ssub.s32 %s25, %s37
    %p344 = scmp.eq.s32.totalorder %s343, 0
    %s346 = sadd.s32 %s345, 1
    %s347 = scalar_select %p344, %s345, %s346
    %p350 = pneg %p344
    %p351 = scmp.eq.s32.totalorder %s18, 3
    %p352 = por %p350, %p351
    %p353 = scmp.ne.s32.totalorder %s345, %s348
    %p354 = scmp.eq.s32.totalorder %s18, 0
    %p355 = por %p353, %p354
    %p356 = scmp.ne.s32.totalorder %s345, %s348
    %p357 = scmp.eq.s32.totalorder %s23, 3
    %p358 = por %p356, %p357
    %p359 = scmp.ne.s32.totalorder %s348, %s349
    %p360 = scmp.eq.s32.totalorder %s23, 0
    %p361 = por %p359, %p360
    %p362 = scmp.ne.s32.totalorder %s348, %s349
    %p363 = scmp.eq.s32.totalorder %s24, 3
    %p364 = por %p362, %p363
    %p366 = scmp.ne.s32.totalorder %s349, %s365
    %p367 = scmp.eq.s32.totalorder %s24, 0
    %p368 = por %p366, %p367
    %s369 = ssub.s32 %s25, %s37
    %p370 = scmp.eq.s32.totalorder %s369, 0
    %s372 = sadd.s32 %s371, 1
    %s373 = scalar_select %p370, %s371, %s372
    %p376 = pneg %p370
    %p377 = scmp.eq.s32.totalorder %s18, 3
    %p378 = por %p376, %p377
    %p379 = scmp.ne.s32.totalorder %s371, %s374
    %p380 = scmp.eq.s32.totalorder %s18, 0
    %p381 = por %p379, %p380
    %p382 = scmp.ne.s32.totalorder %s371, %s374
    %p383 = scmp.eq.s32.totalorder %s23, 3
    %p384 = por %p382, %p383
    %p385 = scmp.ne.s32.totalorder %s374, %s375
    %p386 = scmp.eq.s32.totalorder %s23, 0
    %p387 = por %p385, %p386
    %p388 = scmp.ne.s32.totalorder %s374, %s375
    %p389 = scmp.eq.s32.totalorder %s24, 3
    %p390 = por %p388, %p389
    %p392 = scmp.ne.s32.totalorder %s375, %s391
    %p393 = scmp.eq.s32.totalorder %s24, 0
    %p394 = por %p392, %p393
    %p395 = scmp.le.s32.totalorder 1, %s18
    %p396 = scmp.lt.s32.totalorder %s18, 5
    %p397 = pnand %p395, %p396
    %p398 = pneg %p397
    // Predicated region
    $region9: #{double_conv.4} parent=5 // pred_check
      _
    $region10: #{double_conv.4} parent=5 // pred_check_branch
      %400 = sbr.rel (%p397) target = $region12
    $region11: #{double_conv.4} parent=5 // pred_region
      %s401 = ssub.s32 %s18, 1
      // Predicated region
      $region13: #{double_conv.4} parent=11 // pred_check
        %p402 = pneg %p263
      $region14: #{double_conv.4} parent=11 // pred_check_branch
        %404 = sbr.rel (%p402) target = $region16
      $region15: #{double_conv.4} parent=11 // pred_region
        _
      $region16: #{double_conv.4} parent=11 // pred_fallthru
        _
      // Predicated region
      $region17: #{double_conv.4} parent=11 // pred_check
        %p405 = pneg %p284
      $region18: #{double_conv.4} parent=11 // pred_check_branch
        %407 = sbr.rel (%p405) target = $region20
      $region19: #{double_conv.4} parent=11 // pred_region
        _
      $region20: #{double_conv.4} parent=11 // pred_fallthru
        _
      // Predicated region
      $region21: #{double_conv.4} parent=11 // pred_check
        %p408 = pneg %p305
      $region22: #{double_conv.4} parent=11 // pred_check_branch
        %410 = sbr.rel (%p408) target = $region24
      $region23: #{double_conv.4} parent=11 // pred_region
        _
      $region24: #{double_conv.4} parent=11 // pred_fallthru
        _
    $region12: #{double_conv.4} parent=5 // pred_fallthru
      _
    %p411 = scmp.lt.s32.totalorder %s18, 4
    // Predicated region
    $region25: #{double_conv.4} parent=5 // pred_check
      %p412 = pneg %p411
    $region26: #{double_conv.4} parent=5 // pred_check_branch
      %414 = sbr.rel (%p412) target = $region28
    $region27: #{double_conv.4} parent=5 // pred_region
      // Predicated region
      $region29: #{double_conv.4} parent=27 // pred_check
        %p415 = pneg %p54
      $region30: #{double_conv.4} parent=27 // pred_check_branch
        %417 = sbr.rel (%p415) target = $region32
      $region31: #{double_conv.4} parent=27 // pred_region
        %s418 = smul.u32 %s25, 2
        %s419 = sadd.s32 %s418, %s26
        %s420 = smul.u32 4, %s419
        %p421 = scmp.lt.s32.totalorder %s420, 15
        %s422 = scalar_select %p421, %s420, 15
        %s423 = smul.addr %s422, 4
        %s424 = scalar_lea.vmem %s0, %s423
        %s425 = smul.u32 %s25, 2
        %s426 = sadd.s32 %s425, %s26
        %s427 = smul.u32 4, %s426
      $region32: #{double_conv.4} parent=27 // pred_fallthru
        _
      // Predicated region
      $region33: #{double_conv.4} parent=27 // pred_check
        %p428 = pneg %p92
      $region34: #{double_conv.4} parent=27 // pred_check_branch
        %430 = sbr.rel (%p428) target = $region36
      $region35: #{double_conv.4} parent=27 // pred_region
        %s431 = smul.u32 %s25, 2
        %s432 = sadd.s32 %s431, %s26
        %s433 = smul.u32 %s432, 4
        %s434 = ssub.s32 %s433, 1
        %p435 = scmp.gt.s32.totalorder %s434, 0
        %s436 = scalar_select %p435, %s434, 0
        %p437 = scmp.lt.s32.totalorder %s436, 15
        %s438 = scalar_select %p437, %s436, 15
        %s439 = smul.addr %s438, 4
        %s440 = scalar_lea.vmem %s1, %s439
        %s441 = smul.u32 %s25, 2
        %s442 = sadd.s32 %s441, %s26
        %s443 = smul.u32 %s442, 4
        %s444 = ssub.s32 %s443, 1
        %p445 = scmp.gt.s32.totalorder %s444, 0
        %s446 = scalar_select %p445, %s444, 0
      $region36: #{double_conv.4} parent=27 // pred_fallthru
        _
      // Predicated region
      $region37: #{double_conv.4} parent=27 // pred_check
        %p447 = pneg %p130
      $region38: #{double_conv.4} parent=27 // pred_check_branch
        %449 = sbr.rel (%p447) target = $region40
      $region39: #{double_conv.4} parent=27 // pred_region
        %s450 = smul.u32 %s25, 2
        %s451 = sadd.s32 %s450, %s26
        %s452 = sadd.s32 %s451, 1
        %s453 = smul.u32 %s452, 4
        %p454 = scmp.lt.s32.totalorder %s453, 15
        %s455 = scalar_select %p454, %s453, 15
        %p456 = scmp.lt.s32.totalorder %s455, 15
        %s457 = scalar_select %p456, %s455, 15
        %s458 = smul.addr %s457, 4
        %s459 = scalar_lea.vmem %s2, %s458
        %s460 = smul.u32 %s25, 2
        %s461 = sadd.s32 %s460, %s26
        %s462 = sadd.s32 %s461, 1
        %s463 = smul.u32 %s462, 4
        %p464 = scmp.lt.s32.totalorder %s463, 15
        %s465 = scalar_select %p464, %s463, 15
      $region40: #{double_conv.4} parent=27 // pred_fallthru
        _
      // Predicated region
      $region41: #{double_conv.4} parent=27 // pred_check
        %p466 = pneg %p160
      $region42: #{double_conv.4} parent=27 // pred_check_branch
        %468 = sbr.rel (%p466) target = $region44
      $region43: #{double_conv.4} parent=27 // pred_region
        %s469 = smul.u32 %s25, 2
        %s470 = sadd.s32 %s469, %s26
        %s471 = smul.u32 4, %s470
        %p472 = scmp.lt.s32.totalorder %s471, 15
        %s473 = scalar_select %p472, %s471, 15
        %s474 = scalar_lea.vmem %s3, %s473
        %s475 = smul.u32 %s25, 2
        %s476 = sadd.s32 %s475, %s26
        %s477 = smul.u32 4, %s476
      $region44: #{double_conv.4} parent=27 // pred_fallthru
        _
      // Predicated region
      $region45: #{double_conv.4} parent=27 // pred_check
        %p478 = pneg %p198
      $region46: #{double_conv.4} parent=27 // pred_check_branch
        %480 = sbr.rel (%p478) target = $region48
      $region47: #{double_conv.4} parent=27 // pred_region
        %s481 = smul.u32 %s25, 2
        %s482 = sadd.s32 %s481, %s26
        %s483 = smul.u32 %s482, 4
        %s484 = ssub.s32 %s483, 1
        %p485 = scmp.gt.s32.totalorder %s484, 0
        %s486 = scalar_select %p485, %s484, 0
        %p487 = scmp.lt.s32.totalorder %s486, 15
        %s488 = scalar_select %p487, %s486, 15
        %s489 = scalar_lea.vmem %s4, %s488
        %s490 = smul.u32 %s25, 2
        %s491 = sadd.s32 %s490, %s26
        %s492 = smul.u32 %s491, 4
        %s493 = ssub.s32 %s492, 1
        %p494 = scmp.gt.s32.totalorder %s493, 0
        %s495 = scalar_select %p494, %s493, 0
      $region48: #{double_conv.4} parent=27 // pred_fallthru
        _
      // Predicated region
      $region49: #{double_conv.4} parent=27 // pred_check
        %p496 = pneg %p236
      $region50: #{double_conv.4} parent=27 // pred_check_branch
        %498 = sbr.rel (%p496) target = $region52
      $region51: #{double_conv.4} parent=27 // pred_region
        %s499 = smul.u32 %s25, 2
        %s500 = sadd.s32 %s499, %s26
        %s501 = sadd.s32 %s500, 1
        %s502 = smul.u32 %s501, 4
        %p503 = scmp.lt.s32.totalorder %s502, 15
        %s504 = scalar_select %p503, %s502, 15
        %p505 = scmp.lt.s32.totalorder %s504, 15
        %s506 = scalar_select %p505, %s504, 15
        %s507 = scalar_lea.vmem %s5, %s506
        %s508 = smul.u32 %s25, 2
        %s509 = sadd.s32 %s508, %s26
        %s510 = sadd.s32 %s509, 1
        %s511 = smul.u32 %s510, 4
        %p512 = scmp.lt.s32.totalorder %s511, 15
        %s513 = scalar_select %p512, %s511, 15
      $region52: #{double_conv.4} parent=27 // pred_fallthru
        _
    $region28: #{double_conv.4} parent=5 // pred_fallthru
      _
    %p514 = scmp.le.s32.totalorder 1, %s18
    %p515 = scmp.lt.s32.totalorder %s18, 5
    %p516 = pnand %p514, %p515
    %p517 = pneg %p516
    // Predicated region
    $region53: #{double_conv.4} parent=5 // pred_check
      _
    $region54: #{double_conv.4} parent=5 // pred_check_branch
      %519 = sbr.rel (%p516) target = $region56
    $region55: #{double_conv.4} parent=5 // pred_region
      %s520 = ssub.s32 %s18, 1
      %s521 = smul.u32 %s27, 2
      %s522 = sadd.s32 %s521, %s28
      %s523 = smul.u32 4, %s522
      %p524 = scmp.lt.s32.totalorder %s523, 15
      %s525 = scalar_select %p524, %s523, 15
      %s526 = smul.addr %s525, 4
      %s527 = scalar_lea.vmem %s0, %s526
      %p528 = pneg %p60
      %p529 = pneg %p57
      %s530 = smul.u32 %s27, 2
      %s531 = sadd.s32 %s530, %s28
      %s532 = smul.u32 %s531, 4
      %s533 = ssub.s32 %s532, 1
      %p534 = scmp.gt.s32.totalorder %s533, 0
      %s535 = scalar_select %p534, %s533, 0
      %p536 = scmp.lt.s32.totalorder %s535, 15
      %s537 = scalar_select %p536, %s535, 15
      %s538 = smul.addr %s537, 4
      %s539 = scalar_lea.vmem %s1, %s538
      %p540 = pneg %p98
      %p541 = pneg %p95
      %s542 = smul.u32 %s27, 2
      %s543 = sadd.s32 %s542, %s28
      %s544 = sadd.s32 %s543, 1
      %s545 = smul.u32 %s544, 4
      %p546 = scmp.lt.s32.totalorder %s545, 15
      %s547 = scalar_select %p546, %s545, 15
      %p548 = scmp.lt.s32.totalorder %s547, 15
      %s549 = scalar_select %p548, %s547, 15
      %s550 = smul.addr %s549, 4
      %s551 = scalar_lea.vmem %s2, %s550
      %p552 = pneg %p136
      %p553 = pneg %p133
      %s554 = smul.u32 %s27, 2
      %s555 = sadd.s32 %s554, %s28
      %s556 = smul.u32 4, %s555
      %p557 = scmp.lt.s32.totalorder %s556, 15
      %s558 = scalar_select %p557, %s556, 15
      %s559 = scalar_lea.vmem %s3, %s558
      %p560 = pneg %p166
      %p561 = pneg %p163
      %s562 = smul.u32 %s27, 2
      %s563 = sadd.s32 %s562, %s28
      %s564 = smul.u32 %s563, 4
      %s565 = ssub.s32 %s564, 1
      %p566 = scmp.gt.s32.totalorder %s565, 0
      %s567 = scalar_select %p566, %s565, 0
      %p568 = scmp.lt.s32.totalorder %s567, 15
      %s569 = scalar_select %p568, %s567, 15
      %s570 = scalar_lea.vmem %s4, %s569
      %p571 = pneg %p204
      %p572 = pneg %p201
      %s573 = smul.u32 %s27, 2
      %s574 = sadd.s32 %s573, %s28
      %s575 = sadd.s32 %s574, 1
      %s576 = smul.u32 %s575, 4
      %p577 = scmp.lt.s32.totalorder %s576, 15
      %s578 = scalar_select %p577, %s576, 15
      %p579 = scmp.lt.s32.totalorder %s578, 15
      %s580 = scalar_select %p579, %s578, 15
      %s581 = scalar_lea.vmem %s5, %s580
      %p582 = pneg %p242
      %p583 = pneg %p239
      %p584 = pneg %p263
      %p585 = pneg %p260
      %p586 = pneg %p284
      %p587 = pneg %p281
      %p588 = pneg %p305
      %p589 = pneg %p302
      %p590 = pneg %p335
      %p591 = pneg %p332
      %s592 = smul.u32 %s27, 2
      %s593 = sadd.s32 %s592, %s28
      %s594 = smul.u32 4, %s593
      %p595 = scmp.lt.s32.totalorder %s594, 15
      %s596 = scalar_select %p595, %s594, 15
      %s597 = smul.addr %s596, 4
      %s598 = scalar_lea.vmem %s9, %s597
      %p599 = pneg %p361
      %p600 = pneg %p358
      %p601 = scmp.lt.s32.totalorder %s27, 1
      %s602 = scalar_select %p601, %s27, 1
      %s603 = smul.addr %s602, 8
      %s604 = scalar_lea.vmem %s10, %s603
      %p605 = pneg %p387
      %p606 = pneg %p384
      %p607 = scmp.lt.s32.totalorder %s27, 1
      %s608 = scalar_select %p607, %s27, 1
      %s609 = smul.addr %s608, 8
      %s610 = scalar_lea.vmem %s11, %s609
      %s611 = smul.u32 %s27, 2
      %s612 = sadd.s32 %s611, %s28
      %s613 = smul.u32 4, %s612
      %p614 = scmp.lt.s32.totalorder %s613, 15
      %s615 = scalar_select %p614, %s613, 15
      %s616 = smul.addr %s615, 4
      %s617 = scalar_lea.vmem %s0, %s616
      %s618 = smul.u32 %s27, 2
      %s619 = sadd.s32 %s618, %s28
      %s620 = smul.u32 4, %s619
      %s621 = smul.u32 %s27, 2
      %s622 = sadd.s32 %s621, %s28
      %s623 = smul.u32 %s622, 4
      %s624 = ssub.s32 %s623, 1
      %p625 = scmp.gt.s32.totalorder %s624, 0
      %s626 = scalar_select %p625, %s624, 0
      %p627 = scmp.lt.s32.totalorder %s626, 15
      %s628 = scalar_select %p627, %s626, 15
      %s629 = smul.addr %s628, 4
      %s630 = scalar_lea.vmem %s1, %s629
      %s631 = smul.u32 %s27, 2
      %s632 = sadd.s32 %s631, %s28
      %s633 = smul.u32 %s632, 4
      %s634 = ssub.s32 %s633, 1
      %p635 = scmp.gt.s32.totalorder %s634, 0
      %s636 = scalar_select %p635, %s634, 0
      %s637 = smul.u32 %s27, 2
      %s638 = sadd.s32 %s637, %s28
      %s639 = sadd.s32 %s638, 1
      %s640 = smul.u32 %s639, 4
      %p641 = scmp.lt.s32.totalorder %s640, 15
      %s642 = scalar_select %p641, %s640, 15
      %p643 = scmp.lt.s32.totalorder %s642, 15
      %s644 = scalar_select %p643, %s642, 15
      %s645 = smul.addr %s644, 4
      %s646 = scalar_lea.vmem %s2, %s645
      %s647 = smul.u32 %s27, 2
      %s648 = sadd.s32 %s647, %s28
      %s649 = sadd.s32 %s648, 1
      %s650 = smul.u32 %s649, 4
      %p651 = scmp.lt.s32.totalorder %s650, 15
      %s652 = scalar_select %p651, %s650, 15
      %s653 = smul.u32 %s27, 2
      %s654 = sadd.s32 %s653, %s28
      %s655 = smul.u32 4, %s654
      %p656 = scmp.lt.s32.totalorder %s655, 15
      %s657 = scalar_select %p656, %s655, 15
      %s658 = scalar_lea.vmem %s3, %s657
      %s659 = smul.u32 %s27, 2
      %s660 = sadd.s32 %s659, %s28
      %s661 = smul.u32 4, %s660
      %s662 = smul.u32 %s27, 2
      %s663 = sadd.s32 %s662, %s28
      %s664 = smul.u32 %s663, 4
      %s665 = ssub.s32 %s664, 1
      %p666 = scmp.gt.s32.totalorder %s665, 0
      %s667 = scalar_select %p666, %s665, 0
      %p668 = scmp.lt.s32.totalorder %s667, 15
      %s669 = scalar_select %p668, %s667, 15
      %s670 = scalar_lea.vmem %s4, %s669
      %s671 = smul.u32 %s27, 2
      %s672 = sadd.s32 %s671, %s28
      %s673 = smul.u32 %s672, 4
      %s674 = ssub.s32 %s673, 1
      %p675 = scmp.gt.s32.totalorder %s674, 0
      %s676 = scalar_select %p675, %s674, 0
      %s677 = smul.u32 %s27, 2
      %s678 = sadd.s32 %s677, %s28
      %s679 = sadd.s32 %s678, 1
      %s680 = smul.u32 %s679, 4
      %p681 = scmp.lt.s32.totalorder %s680, 15
      %s682 = scalar_select %p681, %s680, 15
      %p683 = scmp.lt.s32.totalorder %s682, 15
      %s684 = scalar_select %p683, %s682, 15
      %s685 = scalar_lea.vmem %s5, %s684
      %s686 = smul.u32 %s27, 2
      %s687 = sadd.s32 %s686, %s28
      %s688 = sadd.s32 %s687, 1
      %s689 = smul.u32 %s688, 4
      %p690 = scmp.lt.s32.totalorder %s689, 15
      %s691 = scalar_select %p690, %s689, 15
      %s692 = smul.u32 %s27, 2
      %s693 = sadd.s32 %s692, %s28
      %s694 = smul.u32 4, %s693
      %p695 = scmp.lt.s32.totalorder %s694, 15
      %s696 = scalar_select %p695, %s694, 15
      %s697 = smul.addr %s696, 4
      %s698 = scalar_lea.vmem %s9, %s697
      %s699 = smul.u32 %s27, 2
      %s700 = sadd.s32 %s699, %s28
      %s701 = smul.u32 4, %s700
      %p702 = scmp.lt.s32.totalorder %s27, 1
      %s703 = scalar_select %p702, %s27, 1
      %s704 = smul.addr %s703, 8
      %s705 = scalar_lea.vmem %s10, %s704
      %p706 = scmp.lt.s32.totalorder %s27, 1
      %s707 = scalar_select %p706, %s27, 1
      %s708 = smul.addr %s707, 8
      %s709 = scalar_lea.vmem %s11, %s708
      %p711 = scmp.eq.s32.totalorder %s28, 0
      // Predicated region
      $region57: #{double_conv.4} parent=55 // pred_check
        %p712 = pneg %p711
      $region58: #{double_conv.4} parent=55 // pred_check_branch
        %714 = sbr.rel (%p712) target = $region60
      $region59: #{double_conv.4} parent=55 // pred_region
        %vm715 = vcmask 7168
        %716 = vst.msk [vmem:[%s705] sm:$0xff] %vm715, 0.0
        %717 = vst.msk [vmem:[%s709] sm:$0xff] %vm715, 0.0
      $region60: #{double_conv.4} parent=55 // pred_fallthru
        _
      %v718 = vld [vmem:[%s630] sm:$0xf]
      %719 = vst [vmem:[#allocation2] sm:$0xf] %v718
      %v720 = vld [vmem:[%s617] sm:$0xff]
      %v721 = vld [vmem:[%s617 + $0x8] sm:$0xff]
      %722 = vst [vmem:[#allocation2 + $0x4] sm:$0xff] %v720
      %723 = vst [vmem:[#allocation2 + $0xc] sm:$0xff] %v721
      %v724 = vld [vmem:[%s646] sm:$0xf]
      %725 = vst [vmem:[#allocation2 + $0x14] sm:$0xf] %v724
      %v726 = vld [vmem:[%s670] sm:$0x1]
      %v727 = vld [vmem:[%s658] sm:$0xf]
      %v728 = vld [vmem:[%s685] sm:$0x1]
      %v731 = vunpack.c.l.s4 1966171168
      %v732 = vunpack.c.0.s8 %v731
      %v733 = vlaneseq
      %v734 = vshrl.u32 %v733, 7
      %v735 = vsub.s32 %v732, %v734
      %v736 = vrot.slane %v727, %v735
      %v737 = vcombine.high %v736, %v736
      %v739 = vunpack.c.l.s4 1966171168
      %v740 = vunpack.c.0.s8 %v739
      %v741 = vlaneseq
      %v742 = vshrl.u32 %v741, 7
      %v743 = vsub.s32 %v740, %v742
      %v744 = vrot.slane %v736, %v743
      %v746 = vunpack.c.l.s4 1966171168
      %v747 = vunpack.c.0.s8 %v746
      %v748 = vlaneseq
      %v749 = vshrl.u32 %v748, 7
      %v750 = vsub.s32 %v747, %v749
      %v751 = vrot.slane %v737, %v750
      %v752 = vcombine.high %v744, %v744
      %v753 = vcombine.high %v751, %v751
      %v758 = vunpack.c.l.bf16 %v726
      %v759 = vunpack.c.l.bf16 %v744
      %v760 = vunpack.c.l.bf16 %v751
      %v761 = vunpack.c.l.bf16 %v752
      %v762 = vunpack.c.l.bf16 %v753
      %v763 = vunpack.c.l.bf16 %v728
      %v764 = vld [vmem:[#allocation2] sm:$0xff]
      %v765 = vld [vmem:[#allocation2 + $0x8] sm:$0xff]
      %v766 = vld [vmem:[#allocation2 + $0x10] sm:$0xff]
      %v767 = vunpack.c.l.bf16 %v764
      %v768 = vunpack.c.h.bf16 %v764
      %v769 = vunpack.c.l.bf16 %v765
      %v770 = vunpack.c.h.bf16 %v765
      %v771 = vunpack.c.l.bf16 %v766
      %v772 = vunpack.c.h.bf16 %v766
      %v773 = vld [vmem:[%s7] sm:$0xff]
      %775 = vset.pattern.permute.xlu0 0
      %776 = vperm.xlu0 %775, %v773
      %v777 = vpop.permute.xlu0 %776
      %v779 = vmul.f32 %v767, %v777
      %v780 = vmul.f32 %v768, %v777
      %v781 = vmul.f32 %v769, %v777
      %v782 = vmul.f32 %v770, %v777
      %v783 = vmul.f32 %v771, %v777
      %v784 = vmul.f32 %v772, %v777
      %v785 = vld [vmem:[%s8] sm:$0xff]
      %787 = vset.pattern.permute.xlu0 0
      %788 = vperm.xlu0 %787, %v785
      %v789 = vpop.permute.xlu0 %788
      %v791 = vadd.f32 %v779, %v789
      %v792 = vadd.f32 %v780, %v789
      %v793 = vadd.f32 %v781, %v789
      %v794 = vadd.f32 %v782, %v789
      %v795 = vadd.f32 %v783, %v789
      %v796 = vadd.f32 %v784, %v789
      %v797 = vmax.f32 %v791, 0.0
      %v798 = vmax.f32 %v792, 0.0
      %v799 = vmax.f32 %v793, 0.0
      %v800 = vmax.f32 %v794, 0.0
      %v801 = vmax.f32 %v795, 0.0
      %v802 = vmax.f32 %v796, 0.0
      %v803 = vlaneseq
      %v804 = vshrl.u32 %v803, 7
      %v805 = vsub.s32 0, %v804
      %v806 = vrot.slane %v758, %v805
      %v807 = vlaneseq
      %v808 = vshrl.u32 %v807, 7
      %v809 = vsub.s32 0, %v808
      %v810 = vrot.slane %v759, %v809
      %v811 = vlaneseq
      %v812 = vshrl.u32 %v811, 7
      %v813 = vsub.s32 0, %v812
      %v814 = vrot.slane %v760, %v813
      %v815 = vlaneseq
      %v816 = vshrl.u32 %v815, 7
      %v817 = vsub.s32 0, %v816
      %v818 = vrot.slane %v761, %v817
      %v819 = vlaneseq
      %v820 = vshrl.u32 %v819, 7
      %v821 = vsub.s32 0, %v820
      %v822 = vrot.slane %v762, %v821
      %v823 = vlaneseq
      %v824 = vshrl.u32 %v823, 7
      %v825 = vsub.s32 0, %v824
      %v826 = vrot.slane %v763, %v825
      %v827 = vmul.f32 %v797, %v806
      %v828 = vmul.f32 %v798, %v810
      %v829 = vmul.f32 %v799, %v814
      %v830 = vmul.f32 %v800, %v818
      %v831 = vmul.f32 %v801, %v822
      %v832 = vmul.f32 %v802, %v826
      %v833 = vpack.c.bf16 %v827, %v827
      %v834 = vpack.c.bf16 %v828, %v828
      %v835 = vpack.c.bf16 %v829, %v829
      %v836 = vpack.c.bf16 %v830, %v830
      %v837 = vpack.c.bf16 %v831, %v831
      %v838 = vpack.c.bf16 %v832, %v832
      %v845 = vunpack.c.l.b16 %v833
      %v846 = vunpack.c.l.b16 %v834
      %v847 = vunpack.c.l.b16 %v835
      %v848 = vunpack.c.l.b16 %v836
      %v849 = vunpack.c.l.b16 %v837
      %v850 = vunpack.c.l.b16 %v838
      %v851 = vpack.c.b16 %v846, %v845
      %v852 = vpack.c.b16 %v848, %v847
      %v853 = vpack.c.b16 %v850, %v849
      %857 = vst [vmem:[#allocation2] sm:$0xff] %v851
      %858 = vst [vmem:[#allocation2 + $0x8] sm:$0xff] %v852
      %859 = vst [vmem:[#allocation2 + $0x10] sm:$0xff] %v853
      %v860 = vld [vmem:[#allocation2] sm:$0xff]
      %v861 = vld [vmem:[#allocation2 + $0x8] sm:$0xff]
      %v862 = vld [vmem:[#allocation2 + $0x10] sm:$0xf]
      %866 = vrot.lane.b32.xlu0 %v860, 19
      %v867 = vpop.permute.xlu0 %866
      %868 = vrot.lane.b32.xlu0 %v861, 19
      %v869 = vpop.permute.xlu0 %868
      %870 = vrot.lane.b32.xlu0 %v862, 19
      %v871 = vpop.permute.xlu0 %870
      %v872 = vrot.slane %v867, 4
      %v873 = vrot.slane %v869, 4
      %v874 = vrot.slane %v871, 4
      %vm875 = vcmask 1043456
      %v876 = vsel %vm875, %v872, %v873
      %vm877 = vcmask 154624
      %v878 = vsel %vm877, %v867, %v876
      %v879 = vsel %vm875, %v873, %v874
      %v880 = vsel %vm877, %v869, %v879
      %883 = vst [vmem:[#allocation3] sm:$0xff] %v878
      %884 = vst [vmem:[#allocation3 + $0x8] sm:$0xff] %v880
      %v885 = vld [vmem:[#allocation2] sm:$0xff]
      %v886 = vld [vmem:[#allocation2 + $0x8] sm:$0xff]
      %v887 = vld [vmem:[#allocation2 + $0x10] sm:$0xf]
      %891 = vrot.lane.b32.xlu0 %v885, 18
      %v892 = vpop.permute.xlu0 %891
      %893 = vrot.lane.b32.xlu0 %v886, 18
      %v894 = vpop.permute.xlu0 %893
      %895 = vrot.lane.b32.xlu0 %v887, 18
      %v896 = vpop.permute.xlu0 %895
      %v897 = vrot.slane %v892, 4
      %v898 = vrot.slane %v894, 4
      %v899 = vrot.slane %v896, 4
      %v900 = vsel %vm875, %v897, %v898
      %vm901 = vcmask 146432
      %v902 = vsel %vm901, %v892, %v900
      %v903 = vsel %vm875, %v898, %v899
      %v904 = vsel %vm901, %v894, %v903
      %907 = vst [vmem:[#allocation3 + $0x10] sm:$0xff] %v902
      %908 = vst [vmem:[#allocation3 + $0x18] sm:$0xff] %v904
      %v909 = vld [vmem:[#allocation2] sm:$0xff]
      %v910 = vld [vmem:[#allocation2 + $0x8] sm:$0xff]
      %v911 = vld [vmem:[#allocation2 + $0x10] sm:$0xf]
      %915 = vrot.lane.b32.xlu0 %v909, 17
      %v916 = vpop.permute.xlu0 %915
      %917 = vrot.lane.b32.xlu0 %v910, 17
      %v918 = vpop.permute.xlu0 %917
      %919 = vrot.lane.b32.xlu0 %v911, 17
      %v920 = vpop.permute.xlu0 %919
      %v921 = vrot.slane %v916, 4
      %v922 = vrot.slane %v918, 4
      %v923 = vrot.slane %v920, 4
      %v924 = vsel %vm875, %v921, %v922
      %vm925 = vcmask 138240
      %v926 = vsel %vm925, %v916, %v924
      %v927 = vsel %vm875, %v922, %v923
      %v928 = vsel %vm925, %v918, %v927
      %931 = vst [vmem:[#allocation3 + $0x20] sm:$0xff] %v926
      %932 = vst [vmem:[#allocation3 + $0x28] sm:$0xff] %v928
      %v933 = vld [vmem:[#allocation2] sm:$0xff]
      %v934 = vld [vmem:[#allocation2 + $0x8] sm:$0xff]
      %v935 = vld [vmem:[#allocation2 + $0x10] sm:$0xf]
      %939 = vrot.lane.b32.xlu0 %v933, 1
      %v940 = vpop.permute.xlu0 %939
      %941 = vrot.lane.b32.xlu0 %v934, 1
      %v942 = vpop.permute.xlu0 %941
      %943 = vrot.lane.b32.xlu0 %v935, 1
      %v944 = vpop.permute.xlu0 %943
      %v945 = vrot.slane %v940, 4
      %v946 = vrot.slane %v942, 4
      %v947 = vrot.slane %v944, 4
      %v948 = vsel %vm875, %v945, %v946
      %vm949 = vcmask 7168
      %v950 = vsel %vm949, %v940, %v948
      %v951 = vsel %vm875, %v946, %v947
      %v952 = vsel %vm949, %v942, %v951
      %955 = vst [vmem:[#allocation3 + $0x30] sm:$0xff] %v950
      %956 = vst [vmem:[#allocation3 + $0x38] sm:$0xff] %v952
      %v957 = vld [vmem:[#allocation2 + $0x4] sm:$0xff]
      %v958 = vld [vmem:[#allocation2 + $0xc] sm:$0xff]
      %959 = vst [vmem:[#allocation3 + $0x40] sm:$0xff] %v957
      %960 = vst [vmem:[#allocation3 + $0x48] sm:$0xff] %v958
      %v961 = vld [vmem:[#allocation2 + $0x4] sm:$0xff]
      %v962 = vld [vmem:[#allocation2 + $0xc] sm:$0xff]
      %v963 = vld [vmem:[#allocation2 + $0x14] sm:$0xf]
      %967 = vrot.lane.b32.xlu0 %v961, 127
      %v968 = vpop.permute.xlu0 %967
      %969 = vrot.lane.b32.xlu0 %v962, 127
      %v970 = vpop.permute.xlu0 %969
      %971 = vrot.lane.b32.xlu0 %v963, 127
      %v972 = vpop.permute.xlu0 %971
      %v973 = vrot.slane %v968, 4
      %v974 = vrot.slane %v970, 4
      %v975 = vrot.slane %v972, 4
      %v976 = vsel %vm875, %v973, %v974
      %vm977 = vcmask 1039360
      %v978 = vsel %vm977, %v968, %v976
      %v979 = vsel %vm875, %v974, %v975
      %v980 = vsel %vm977, %v970, %v979
      %983 = vst [vmem:[#allocation3 + $0x50] sm:$0xff] %v978
      %984 = vst [vmem:[#allocation3 + $0x58] sm:$0xff] %v980
      %v985 = vld [vmem:[#allocation2 + $0x4] sm:$0xff]
      %v986 = vld [vmem:[#allocation2 + $0xc] sm:$0xff]
      %v987 = vld [vmem:[#allocation2 + $0x14] sm:$0xf]
      %991 = vrot.lane.b32.xlu0 %v985, 111
      %v992 = vpop.permute.xlu0 %991
      %993 = vrot.lane.b32.xlu0 %v986, 111
      %v994 = vpop.permute.xlu0 %993
      %995 = vrot.lane.b32.xlu0 %v987, 111
      %v996 = vpop.permute.xlu0 %995
      %v997 = vrot.slane %v992, 4
      %v998 = vrot.slane %v994, 4
      %v999 = vrot.slane %v996, 4
      %v1000 = vsel %vm875, %v997, %v998
      %vm1001 = vcmask 908288
      %v1002 = vsel %vm1001, %v992, %v1000
      %v1003 = vsel %vm875, %v998, %v999
      %v1004 = vsel %vm1001, %v994, %v1003
      %1007 = vst [vmem:[#allocation3 + $0x60] sm:$0xff] %v1002
      %1008 = vst [vmem:[#allocation3 + $0x68] sm:$0xff] %v1004
      %v1009 = vld [vmem:[#allocation2 + $0x4] sm:$0xff]
      %v1010 = vld [vmem:[#allocation2 + $0xc] sm:$0xff]
      %v1011 = vld [vmem:[#allocation2 + $0x14] sm:$0xf]
      %1015 = vrot.lane.b32.xlu0 %v1009, 110
      %v1016 = vpop.permute.xlu0 %1015
      %1017 = vrot.lane.b32.xlu0 %v1010, 110
      %v1018 = vpop.permute.xlu0 %1017
      %1019 = vrot.lane.b32.xlu0 %v1011, 110
      %v1020 = vpop.permute.xlu0 %1019
      %v1021 = vrot.slane %v1016, 4
      %v1022 = vrot.slane %v1018, 4
      %v1023 = vrot.slane %v1020, 4
      %v1024 = vsel %vm875, %v1021, %v1022
      %vm1025 = vcmask 900096
      %v1026 = vsel %vm1025, %v1016, %v1024
      %v1027 = vsel %vm875, %v1022, %v1023
      %v1028 = vsel %vm1025, %v1018, %v1027
      %1031 = vst [vmem:[#allocation3 + $0x70] sm:$0xff] %v1026
      %1032 = vst [vmem:[#allocation3 + $0x78] sm:$0xff] %v1028
      %v1033 = vld [vmem:[#allocation2 + $0x4] sm:$0xff]
      %v1034 = vld [vmem:[#allocation2 + $0xc] sm:$0xff]
      %v1035 = vld [vmem:[#allocation2 + $0x14] sm:$0xf]
      %1039 = vrot.lane.b32.xlu0 %v1033, 109
      %v1040 = vpop.permute.xlu0 %1039
      %1041 = vrot.lane.b32.xlu0 %v1034, 109
      %v1042 = vpop.permute.xlu0 %1041
      %1043 = vrot.lane.b32.xlu0 %v1035, 109
      %v1044 = vpop.permute.xlu0 %1043
      %v1045 = vrot.slane %v1040, 4
      %v1046 = vrot.slane %v1042, 4
      %v1047 = vrot.slane %v1044, 4
      %v1048 = vsel %vm875, %v1045, %v1046
      %vm1049 = vcmask 891904
      %v1050 = vsel %vm1049, %v1040, %v1048
      %v1051 = vsel %vm875, %v1046, %v1047
      %v1052 = vsel %vm1049, %v1042, %v1051
      %1055 = vst [vmem:[#allocation3 + $0x80] sm:$0xff] %v1050
      %1056 = vst [vmem:[#allocation3 + $0x88] sm:$0xff] %v1052
      %v1057 = vld [vmem:[%s6] sm:$0xf]
      %v1058 = vld [vmem:[#allocation3] sm:$0xff]
      %v1059 = vld [vmem:[#allocation3 + $0x8] sm:$0xff]
      %v1060 = vld [vmem:[#allocation3 + $0x10] sm:$0xff]
      %v1061 = vld [vmem:[#allocation3 + $0x18] sm:$0xff]
      %v1062 = vld [vmem:[#allocation3 + $0x20] sm:$0xff]
      %v1063 = vld [vmem:[#allocation3 + $0x28] sm:$0xff]
      %v1064 = vld [vmem:[#allocation3 + $0x30] sm:$0xff]
      %v1065 = vld [vmem:[#allocation3 + $0x38] sm:$0xff]
      %v1066 = vld [vmem:[#allocation3 + $0x40] sm:$0xff]
      %v1067 = vld [vmem:[#allocation3 + $0x48] sm:$0xff]
      %v1068 = vld [vmem:[#allocation3 + $0x50] sm:$0xff]
      %v1069 = vld [vmem:[#allocation3 + $0x58] sm:$0xff]
      %v1070 = vld [vmem:[#allocation3 + $0x60] sm:$0xff]
      %v1071 = vld [vmem:[#allocation3 + $0x68] sm:$0xff]
      %v1072 = vld [vmem:[#allocation3 + $0x70] sm:$0xff]
      %v1073 = vld [vmem:[#allocation3 + $0x78] sm:$0xff]
      %v1074 = vld [vmem:[#allocation3 + $0x80] sm:$0xff]
      %v1075 = vld [vmem:[#allocation3 + $0x88] sm:$0xff]
      %v1094 = vunpack.c.l.b16 %v1058
      %v1095 = vunpack.c.h.b16 %v1058
      %v1096 = vunpack.c.l.b16 %v1059
      %v1097 = vunpack.c.h.b16 %v1059
      %v1098 = vunpack.c.l.b16 %v1060
      %v1099 = vunpack.c.h.b16 %v1060
      %v1100 = vunpack.c.l.b16 %v1061
      %v1101 = vunpack.c.h.b16 %v1061
      %v1102 = vunpack.c.l.b16 %v1062
      %v1103 = vunpack.c.h.b16 %v1062
      %v1104 = vunpack.c.l.b16 %v1063
      %v1105 = vunpack.c.h.b16 %v1063
      %v1106 = vunpack.c.l.b16 %v1064
      %v1107 = vunpack.c.h.b16 %v1064
      %v1108 = vunpack.c.l.b16 %v1065
      %v1109 = vunpack.c.h.b16 %v1065
      %v1110 = vunpack.c.l.b16 %v1066
      %v1111 = vunpack.c.h.b16 %v1066
      %v1112 = vunpack.c.l.b16 %v1067
      %v1113 = vunpack.c.h.b16 %v1067
      %v1114 = vunpack.c.l.b16 %v1068
      %v1115 = vunpack.c.h.b16 %v1068
      %v1116 = vunpack.c.l.b16 %v1069
      %v1117 = vunpack.c.h.b16 %v1069
      %v1118 = vunpack.c.l.b16 %v1070
      %v1119 = vunpack.c.h.b16 %v1070
      %v1120 = vunpack.c.l.b16 %v1071
      %v1121 = vunpack.c.h.b16 %v1071
      %v1122 = vunpack.c.l.b16 %v1072
      %v1123 = vunpack.c.h.b16 %v1072
      %v1124 = vunpack.c.l.b16 %v1073
      %v1125 = vunpack.c.h.b16 %v1073
      %v1126 = vunpack.c.l.b16 %v1074
      %v1127 = vunpack.c.h.b16 %v1074
      %v1128 = vunpack.c.l.b16 %v1075
      %v1129 = vunpack.c.h.b16 %v1075
      %v1130 = vpack.c.b16 %v1098, %v1094
      %v1131 = vpack.c.b16 %v1099, %v1095
      %v1132 = vpack.c.b16 %v1100, %v1096
      %v1133 = vpack.c.b16 %v1101, %v1097
      %v1134 = vpack.c.b16 %v1106, %v1102
      %v1135 = vpack.c.b16 %v1107, %v1103
      %v1136 = vpack.c.b16 %v1108, %v1104
      %v1137 = vpack.c.b16 %v1109, %v1105
      %v1138 = vpack.c.b16 %v1114, %v1110
      %v1139 = vpack.c.b16 %v1115, %v1111
      %v1140 = vpack.c.b16 %v1116, %v1112
      %v1141 = vpack.c.b16 %v1117, %v1113
      %v1142 = vpack.c.b16 %v1122, %v1118
      %v1143 = vpack.c.b16 %v1123, %v1119
      %v1144 = vpack.c.b16 %v1124, %v1120
      %v1145 = vpack.c.b16 %v1125, %v1121
      %v1146 = vpack.c.b16 %v1126, %v1126
      %v1147 = vpack.c.b16 %v1127, %v1127
      %v1148 = vpack.c.b16 %v1128, %v1128
      %v1149 = vpack.c.b16 %v1129, %v1129
      %vm1166 = vcmask 588800
      %v1168 = vsel %vm1166, %v1057, 0
      %vm1170 = vcmask 1043456
      %v1172 = vsel %vm1170, %v1146, 0
      %v1175 = vsel %vm1170, %v1147, 0
      %v1178 = vsel %vm1170, %v1148, 0
      %v1181 = vsel %vm1170, %v1149, 0
      %1183 = vmatprep.subr.bf16.mxu0 %v1131
      %1184 = vmatpush1.bf16.msra.mxu0 %v1130
      %1185 = vmatprep.subr.bf16.mxu0 %v1135
      %1186 = vmatpush1.bf16.msra.mxu0 %v1134
      %1187 = vmatprep.subr.bf16.mxu0 %v1139
      %1188 = vmatpush1.bf16.msra.mxu0 %v1138
      %1189 = vmatprep.subr.bf16.mxu0 %v1143
      %1190 = vmatpush1.bf16.msra.mxu0 %v1142
      %1191 = vmatprep.subr.bf16.mxu0 %v1175
      %1192 = vmatpush1.bf16.msra.mxu0 %v1172
      %1193 = vmatprep.subr.bf16.mxu0 0
      %1194 = vmatpush1.bf16.msra.mxu0 0
      %1195 = vmatprep.subr.bf16.mxu0 0
      %1196 = vmatpush1.bf16.msra.mxu0 0
      %1197 = vmatprep.subr.bf16.mxu0 0
      %1198 = vmatpush1.bf16.msra.mxu0 0
      %1199 = vmatprep.subr.bf16.mxu0 0
      %1200 = vmatpush1.bf16.msra.mxu0 0
      %1201 = vmatprep.subr.bf16.mxu0 0
      %1202 = vmatpush1.bf16.msra.mxu0 0
      %1203 = vmatprep.subr.bf16.mxu0 0
      %1204 = vmatpush1.bf16.msra.mxu0 0
      %1205 = vmatprep.subr.bf16.mxu0 0
      %1206 = vmatpush1.bf16.msra.mxu0 0
      %1207 = vmatprep.subr.bf16.mxu0 0
      %1208 = vmatpush1.bf16.msra.mxu0 0
      %1209 = vmatprep.subr.bf16.mxu0 0
      %1210 = vmatpush1.bf16.msra.mxu0 0
      %1211 = vmatprep.subr.bf16.mxu0 0
      %1212 = vmatpush1.bf16.msra.mxu0 0
      %1213 = vmatprep.subr.bf16.mxu0 0
      %1214 = vmatpush1.bf16.msra.mxu0 0
      %1215 = vmatprep.mubr.bf16.mxu0 0
      %1216 = vmatmul.mubr.bf16.gmra.mrb[0].mxu0 %v1168
      %v1217 = vpop.f32.mrb[0].mxu0
      %v1218 = vadd.f32 0.0, %v1217
      %v1219 = vpop.f32.mrb[0].mxu0
      %v1220 = vadd.f32 0.0, %v1219
      %v1221 = vpop.f32.mrb[0].mxu0
      %v1222 = vpop.f32.mrb[0].mxu0
      %1223 = vdwg.mxu0
      %1224 = vmatprep.subr.bf16.mxu0 %v1133
      %1225 = vmatpush1.bf16.msra.mxu0 %v1132
      %1226 = vmatprep.subr.bf16.mxu0 %v1137
      %1227 = vmatpush1.bf16.msra.mxu0 %v1136
      %1228 = vmatprep.subr.bf16.mxu0 %v1141
      %1229 = vmatpush1.bf16.msra.mxu0 %v1140
      %1230 = vmatprep.subr.bf16.mxu0 %v1145
      %1231 = vmatpush1.bf16.msra.mxu0 %v1144
      %1232 = vmatprep.subr.bf16.mxu0 %v1181
      %1233 = vmatpush1.bf16.msra.mxu0 %v1178
      %1234 = vmatprep.subr.bf16.mxu0 0
      %1235 = vmatpush1.bf16.msra.mxu0 0
      %1236 = vmatprep.subr.bf16.mxu0 0
      %1237 = vmatpush1.bf16.msra.mxu0 0
      %1238 = vmatprep.subr.bf16.mxu0 0
      %1239 = vmatpush1.bf16.msra.mxu0 0
      %1240 = vmatprep.subr.bf16.mxu0 0
      %1241 = vmatpush1.bf16.msra.mxu0 0
      %1242 = vmatprep.subr.bf16.mxu0 0
      %1243 = vmatpush1.bf16.msra.mxu0 0
      %1244 = vmatprep.subr.bf16.mxu0 0
      %1245 = vmatpush1.bf16.msra.mxu0 0
      %1246 = vmatprep.subr.bf16.mxu0 0
      %1247 = vmatpush1.bf16.msra.mxu0 0
      %1248 = vmatprep.subr.bf16.mxu0 0
      %1249 = vmatpush1.bf16.msra.mxu0 0
      %1250 = vmatprep.subr.bf16.mxu0 0
      %1251 = vmatpush1.bf16.msra.mxu0 0
      %1252 = vmatprep.subr.bf16.mxu0 0
      %1253 = vmatpush1.bf16.msra.mxu0 0
      %1254 = vmatprep.subr.bf16.mxu0 0
      %1255 = vmatpush1.bf16.msra.mxu0 0
      %1256 = vmatprep.mubr.bf16.mxu0 0
      %1257 = vmatmul.mubr.bf16.gmra.mrb[0].mxu0 %v1168
      %v1258 = vpop.f32.mrb[0].mxu0
      %v1259 = vadd.f32 0.0, %v1258
      %v1260 = vpop.f32.mrb[0].mxu0
      %v1261 = vadd.f32 0.0, %v1260
      %v1262 = vpop.f32.mrb[0].mxu0
      %v1263 = vpop.f32.mrb[0].mxu0
      %1264 = vdwg.mxu0
      %v1265 = vmul.f32 %v1218, %v810
      %v1266 = vmul.f32 %v1220, %v814
      %v1267 = vmul.f32 %v1259, %v818
      %v1268 = vmul.f32 %v1261, %v822
      %v1269 = vpack.c.bf16 %v1265, %v1265
      %v1270 = vpack.c.bf16 %v1266, %v1266
      %v1271 = vpack.c.bf16 %v1267, %v1267
      %v1272 = vpack.c.bf16 %v1268, %v1268
      %v1277 = vunpack.c.l.b16 %v1269
      %v1278 = vunpack.c.l.b16 %v1270
      %v1279 = vunpack.c.l.b16 %v1271
      %v1280 = vunpack.c.l.b16 %v1272
      %v1281 = vpack.c.b16 %v1278, %v1277
      %v1282 = vpack.c.b16 %v1280, %v1279
      %1285 = vst [vmem:[%s698] sm:$0xff] %v1281
      %1286 = vst [vmem:[%s698 + $0x8] sm:$0xff] %v1282
      %v1287 = vld [vmem:[%s705] sm:$0xff]
      %v1288 = vadd.f32 %v1265, %v1266
      %v1289 = vadd.f32 %v1288, %v1267
      %v1290 = vadd.f32 %v1289, %v1268
      %1291 = vadd.xlane.f32.xlu0 %v1290
      %v1292 = vpop.xlane.xlu0 %1291
      %v1293 = vadd.f32 %v1287, %v1292
      %vm1294 = vcmask 7168
      %1295 = vst.msk [vmem:[%s705] sm:$0xff] %vm1294, %v1293
      %v1296 = vld [vmem:[%s709] sm:$0xff]
      %v1297 = vmul.f32 %v1265, %v1265
      %v1298 = vmul.f32 %v1266, %v1266
      %v1299 = vmul.f32 %v1267, %v1267
      %v1300 = vmul.f32 %v1268, %v1268
      %v1301 = vadd.f32 %v1297, %v1298
      %v1302 = vadd.f32 %v1301, %v1299
      %v1303 = vadd.f32 %v1302, %v1300
      %1304 = vadd.xlane.f32.xlu0 %v1303
      %v1305 = vpop.xlane.xlu0 %1304
      %v1306 = vadd.f32 %v1296, %v1305
      %1307 = vst.msk [vmem:[%s709] sm:$0xff] %vm1294, %v1306
      %s1308 = smul.u32 %s27, 2
      %s1309 = sadd.s32 %s1308, %s28
      %s1310 = smul.u32 4, %s1309
      %p1311 = scmp.lt.s32.totalorder %s1310, 15
      %s1312 = scalar_select %p1311, %s1310, 15
      %s1313 = smul.addr %s1312, 4
      %s1314 = scalar_lea.vmem %s9, %s1313
      %p1315 = scmp.lt.s32.totalorder %s27, 1
      %s1316 = scalar_select %p1315, %s27, 1
      %s1317 = smul.addr %s1316, 8
      %s1318 = scalar_lea.vmem %s10, %s1317
      %p1319 = scmp.lt.s32.totalorder %s27, 1
      %s1320 = scalar_select %p1319, %s27, 1
      %s1321 = smul.addr %s1320, 8
      %s1322 = scalar_lea.vmem %s11, %s1321
      // Predicated region
      $region61: #{double_conv.4} parent=55 // pred_check
        %p1323 = pneg %p332
      $region62: #{double_conv.4} parent=55 // pred_check_branch
        %1325 = sbr.rel (%p1323) target = $region64
      $region63: #{double_conv.4} parent=55 // pred_region
        %s1326 = smul.u32 %s27, 2
        %s1327 = sadd.s32 %s1326, %s28
        %s1328 = smul.u32 4, %s1327
      $region64: #{double_conv.4} parent=55 // pred_fallthru
        _
      // Predicated region
      $region65: #{double_conv.4} parent=55 // pred_check
        %p1329 = pneg %p358
      $region66: #{double_conv.4} parent=55 // pred_check_branch
        %1331 = sbr.rel (%p1329) target = $region68
      $region67: #{double_conv.4} parent=55 // pred_region
        _
      $region68: #{double_conv.4} parent=55 // pred_fallthru
        _
      // Predicated region
      $region69: #{double_conv.4} parent=55 // pred_check
        %p1332 = pneg %p384
      $region70: #{double_conv.4} parent=55 // pred_check_branch
        %1334 = sbr.rel (%p1332) target = $region72
      $region71: #{double_conv.4} parent=55 // pred_region
        _
      $region72: #{double_conv.4} parent=55 // pred_fallthru
        _
    $region56: #{double_conv.4} parent=5 // pred_fallthru
      _
    %p1335 = scmp.le.s32.totalorder 2, %s18
    // Predicated region
    $region73: #{double_conv.4} parent=5 // pred_check
      %p1336 = pneg %p1335
    $region74: #{double_conv.4} parent=5 // pred_check_branch
      %1338 = sbr.rel (%p1336) target = $region76
    $region75: #{double_conv.4} parent=5 // pred_region
      %s1339 = ssub.s32 %s18, 2
      // Predicated region
      $region77: #{double_conv.4} parent=75 // pred_check
        %p1340 = pneg %p338
      $region78: #{double_conv.4} parent=75 // pred_check_branch
        %1342 = sbr.rel (%p1340) target = $region80
      $region79: #{double_conv.4} parent=75 // pred_region
        %s1343 = smul.u32 %s29, 2
        %s1344 = sadd.s32 %s1343, %s30
        %s1345 = smul.u32 4, %s1344
        %p1346 = scmp.lt.s32.totalorder %s1345, 15
        %s1347 = scalar_select %p1346, %s1345, 15
        %s1348 = smul.addr %s1347, 4
        %s1349 = scalar_lea.vmem %s9, %s1348
      $region80: #{double_conv.4} parent=75 // pred_fallthru
        _
      // Predicated region
      $region81: #{double_conv.4} parent=75 // pred_check
        %p1350 = pneg %p364
      $region82: #{double_conv.4} parent=75 // pred_check_branch
        %1352 = sbr.rel (%p1350) target = $region84
      $region83: #{double_conv.4} parent=75 // pred_region
        %p1353 = scmp.lt.s32.totalorder %s29, 1
        %s1354 = scalar_select %p1353, %s29, 1
        %s1355 = smul.addr %s1354, 8
        %s1356 = scalar_lea.vmem %s10, %s1355
      $region84: #{double_conv.4} parent=75 // pred_fallthru
        _
      // Predicated region
      $region85: #{double_conv.4} parent=75 // pred_check
        %p1357 = pneg %p390
      $region86: #{double_conv.4} parent=75 // pred_check_branch
        %1359 = sbr.rel (%p1357) target = $region88
      $region87: #{double_conv.4} parent=75 // pred_region
        %p1360 = scmp.lt.s32.totalorder %s29, 1
        %s1361 = scalar_select %p1360, %s29, 1
        %s1362 = smul.addr %s1361, 8
        %s1363 = scalar_lea.vmem %s11, %s1362
      $region88: #{double_conv.4} parent=75 // pred_fallthru
        _
    $region76: #{double_conv.4} parent=5 // pred_fallthru
      _
  $region6: #{double_conv.4} parent=0 // loop_footer
    %s22 = sadd.s32 1, %s18
  $region7: #{double_conv.4} parent=0 // loop_footer_branch
    %17 = sbr.rel target = $region3
  $region8: #{double_conv.4} parent=0 // loop_exit
    _

</llo_original>
